<compile_context>
chip_gen: v7x
topology: tpu7x:2x2x1
jax: 0.10.0
libtpu: 0.0.40
codegen_flags: <defaults>
</compile_context>

<pallas_src>
import jax
import jax.numpy as jnp
from jax.experimental import pallas as pl
from jax.experimental.pallas import tpu as pltpu


# ---------------------------------------------------------------------------
# Helpers
# ---------------------------------------------------------------------------
def _align_corners_matrix(n_in, n_out):
    """Row-stochastic matrix for 1-D bilinear upsample with align_corners=True."""
    if n_in == 1:
        return jnp.ones((n_out, 1), jnp.float32)
    i = jnp.arange(n_out, dtype=jnp.float32)
    src = i * (n_in - 1) / (n_out - 1)
    lo = jnp.clip(jnp.floor(src).astype(jnp.int32), 0, n_in - 2)
    frac = src - lo.astype(jnp.float32)
    oh_lo = jax.nn.one_hot(lo, n_in, dtype=jnp.float32)
    oh_hi = jax.nn.one_hot(lo + 1, n_in, dtype=jnp.float32)
    return (1.0 - frac)[:, None] * oh_lo + frac[:, None] * oh_hi


def _make_bn_fold(key, c):
    k1, k2, k3, k4 = jax.random.split(key, 4)
    gamma = jax.random.normal(k1, (c,), jnp.float32) * 0.1 + 1.0
    beta = jax.random.normal(k2, (c,), jnp.float32) * 0.1
    run_mean = jax.random.normal(k3, (c,), jnp.float32) * 0.1
    run_var = jax.random.uniform(k4, (c,), jnp.float32, 0.5, 1.5)
    eps = 1e-5
    scale = gamma / jnp.sqrt(run_var + eps)
    shift = beta - run_mean * scale
    return scale, shift


# ---------------------------------------------------------------------------
# Fused Up4 forward: upsample + pad + concat + (conv3x3 + BN + ReLU) x 2
# ---------------------------------------------------------------------------
def up4_forward(x1, x2, params):
    """x1, x2 in PyTorch NCHW layout; returns NCHW output."""
    N, C1, H1, W1 = x1.shape
    _, C2, H, W = x2.shape
    Ccat = C1 + C2
    Cmid = params['w1'].shape[-1]
    Cout = params['w2'].shape[-1]
    Hp, Wp = H + 2, W + 2
    Lp = Hp * Wp           # flat length of the conv-zero-padded image
    LpA = Lp + 2           # +2 so every tap slice [off, off + H*Wp) stays in bounds
    HWp = H * Wp           # flat output window length (incl. 2 garbage cols per row)

    # --- fold upsample(align_corners) + F.pad(diff//4,...) + conv zero-pad into
    #     a single placement matrix U so that  x1_flat (C1,H1*W1) @ U -> (C1,LpA)
    Ah = _align_corners_matrix(H1, 2 * H1)           # (2H1, H1)
    Aw = _align_corners_matrix(W1, 2 * W1)           # (2W1, W1)
    diffY, diffX = H - 2 * H1, W - 2 * W1
    Ah_full = jnp.zeros((H, H1), jnp.float32).at[diffY // 4: diffY // 4 + 2 * H1].set(Ah)
    Aw_full = jnp.zeros((W, W1), jnp.float32).at[diffX // 4: diffX // 4 + 2 * W1].set(Aw)
    U4 = jnp.zeros((H1, W1, Hp, Wp), jnp.float32)
    U4 = U4.at[:, :, 1:1 + H, 1:1 + W].set(jnp.einsum('oh,pw->hwop', Ah_full, Aw_full))
    U = jnp.pad(U4.reshape(H1 * W1, Lp), ((0, 0), (0, LpA - Lp)))

    # --- fold BN (eval) scale into conv weights; reorder to (tap, cout, cin)
    w1 = params['w1'] * params['s1'][None, None, None, :]     # (3,3,Ccat,Cmid)
    w2 = params['w2'] * params['s2'][None, None, None, :]     # (3,3,Cmid,Cout)
    w1t = jnp.transpose(w1, (0, 1, 3, 2)).reshape(9, Cmid, Ccat)
    w2t = jnp.transpose(w2, (0, 1, 3, 2)).reshape(9, Cout, Cmid)
    b1 = params['b1'].reshape(Cmid, 1).astype(jnp.float32)
    b2 = params['b2'].reshape(Cout, 1).astype(jnp.float32)

    # --- lane-flat inputs (channels on sublanes, flattened spatial on lanes)
    x1f = x1.reshape(N, C1, H1 * W1)
    x2p = jnp.pad(x2, ((0, 0), (0, 0), (1, 1), (1, 1))).reshape(N, C2, Lp)
    x2p = jnp.pad(x2p, ((0, 0), (0, 0), (0, LpA - Lp)))

    # column-validity mask: zeroes the 2 garbage columns per flattened row
    mask = (jnp.arange(HWp) % Wp < W).astype(jnp.float32).reshape(1, HWp)

    def kernel(x1_ref, x2p_ref, u_ref, w1_ref, b1_ref, w2_ref, b2_ref,
               mask_ref, o_ref, xp_ref, mid_ref):
        # ---- upsample+pad x1 (single matmul) and concat with pre-padded x2 ----
        xp_ref[0:C2, :] = x2p_ref[0]
        xp_ref[C2:Ccat, :] = jnp.dot(x1_ref[0], u_ref[...],
                                     preferred_element_type=jnp.float32)

        # ---- conv1 (3x3, pad=1) + folded BN + ReLU ----
        acc1 = jnp.zeros((Cmid, HWp), jnp.float32)
        for kh in range(3):
            for kw in range(3):
                off = kh * Wp + kw
                acc1 = acc1 + jnp.dot(w1_ref[kh * 3 + kw],
                                      xp_ref[:, off:off + HWp],
                                      preferred_element_type=jnp.float32)
        mid = jnp.maximum(acc1 + b1_ref[...], 0.0) * mask_ref[...]

        # re-embed mid into the zero-padded flat layout expected by conv2
        mid_ref[...] = jnp.zeros_like(mid_ref)
        mid_ref[:, Wp + 1:Wp + 1 + HWp] = mid

        # ---- conv2 (3x3, pad=1) + folded BN + ReLU ----
        acc2 = jnp.zeros((Cout, HWp), jnp.float32)
        for kh in range(3):
            for kw in range(3):
                off = kh * Wp + kw
                acc2 = acc2 + jnp.dot(w2_ref[kh * 3 + kw],
                                      mid_ref[:, off:off + HWp],
                                      preferred_element_type=jnp.float32)
        o_ref[0] = jnp.maximum(acc2 + b2_ref[...], 0.0)

    out_flat = pl.pallas_call(
        kernel,
        out_shape=jax.ShapeDtypeStruct((N, Cout, HWp), jnp.float32),
        grid=(N,),
        in_specs=[
            pl.BlockSpec((1, C1, H1 * W1), lambda n: (n, 0, 0)),
            pl.BlockSpec((1, C2, LpA), lambda n: (n, 0, 0)),
            pl.BlockSpec((H1 * W1, LpA), lambda n: (0, 0)),
            pl.BlockSpec((9, Cmid, Ccat), lambda n: (0, 0, 0)),
            pl.BlockSpec((Cmid, 1), lambda n: (0, 0)),
            pl.BlockSpec((9, Cout, Cmid), lambda n: (0, 0, 0)),
            pl.BlockSpec((Cout, 1), lambda n: (0, 0)),
            pl.BlockSpec((1, HWp), lambda n: (0, 0)),
        ],
        out_specs=pl.BlockSpec((1, Cout, HWp), lambda n: (n, 0, 0)),
        scratch_shapes=[
            pltpu.VMEM((Ccat, LpA), jnp.float32),   # concatenated padded input
            pltpu.VMEM((Cmid, LpA), jnp.float32),   # mid activation, padded
        ],
        compiler_params=pltpu.CompilerParams(
            dimension_semantics=("parallel",)),
    )(x1f, x2p, U, w1t, b1, w2t, b2, mask)

    # drop the 2 garbage columns per row; output is already NCHW
    return out_flat.reshape(N, Cout, H, Wp)[:, :, :, :W]


# ---------------------------------------------------------------------------
# Pure-JAX (XLA) reference for the correctness check
# ---------------------------------------------------------------------------
def _ref_conv_bn_relu(x_nhwc, w, scale, shift):
    y = jax.lax.conv_general_dilated(
        x_nhwc, w, window_strides=(1, 1), padding=((1, 1), (1, 1)),
        dimension_numbers=('NHWC', 'HWIO', 'NHWC'),
        precision=jax.lax.Precision.HIGHEST)
    return jnp.maximum(y * scale + shift, 0.0)


def _ref_up4(x1, x2, params):
    _, _, H1, W1 = x1.shape
    Ah = _align_corners_matrix(H1, 2 * H1)
    Aw = _align_corners_matrix(W1, 2 * W1)
    x1_up = jnp.einsum('oh,nchw,pw->ncop', Ah, x1, Aw,
                       precision=jax.lax.Precision.HIGHEST)
    dY = x2.shape[2] - x1_up.shape[2]
    dX = x2.shape[3] - x1_up.shape[3]
    x1_up = jnp.pad(x1_up, ((0, 0), (0, 0),
                            (dY // 4, dY - dY // 4),
                            (dX // 4, dX - dX // 4)))
    x = jnp.transpose(jnp.concatenate([x2, x1_up], axis=1), (0, 2, 3, 1))
    y = _ref_conv_bn_relu(x, params['w1'], params['s1'], params['b1'])
    y = _ref_conv_bn_relu(y, params['w2'], params['s2'], params['b2'])
    return jnp.transpose(y, (0, 3, 1, 2))


if __name__ == "__main__":
    # Up4(in_channels=8, out_channels=4, bilinear=True)
    #   -> DoubleConv(8, 4, mid_channels=4)
    in_channels, out_channels = 8, 4
    mid_channels = in_channels // 2
    N, Hs, Ws = 2, 8, 16          # x1 spatial 8x8; x2 spatial 16x16

    key = jax.random.PRNGKey(0)
    k_x1, k_x2, k_w1, k_w2, k_bn1, k_bn2 = jax.random.split(key, 6)

    x1 = jax.random.normal(k_x1, (N, in_channels // 2, Hs, Hs), jnp.float32)
    x2 = jax.random.normal(k_x2, (N, in_channels // 2, Ws, Ws), jnp.float32)

    # Conv weights in HWIO (3,3,Cin,Cout), bias=False (standard DoubleConv).
    w1 = jax.random.normal(k_w1, (3, 3, in_channels, mid_channels),
                           jnp.float32) * 0.1
    w2 = jax.random.normal(k_w2, (3, 3, mid_channels, out_channels),
                           jnp.float32) * 0.1
    s1, b1 = _make_bn_fold(k_bn1, mid_channels)
    s2, b2 = _make_bn_fold(k_bn2, out_channels)
    params = dict(w1=w1, s1=s1, b1=b1, w2=w2, s2=s2, b2=b2)

    out = jax.block_until_ready(jax.jit(up4_forward)(x1, x2, params))
    assert out.shape == (N, out_channels, Ws, Ws), out.shape

    ref = _ref_up4(x1, x2, params)
    # Kernel matmuls run at DEFAULT MXU precision (bf16 passes) vs an f32
    # HIGHEST-precision reference -> loose-but-structural tolerance.
    if not jnp.allclose(out, ref, rtol=5e-2, atol=5e-2):
        err = float(jnp.max(jnp.abs(out - ref)))
        raise RuntimeError(
            f"Pallas Up4 output mismatch vs JAX reference (max abs err {err})")

    print("KERNEL_OK")
</pallas_src>

<mosaic_0001>
module attributes {stable_mosaic.version = 11 : i64} {
  func.func @kernel(%arg0: i32, %arg1: memref<1x4x64xf32, #tpu.memory_space<vmem>>, %arg2: memref<1x4x326xf32, #tpu.memory_space<vmem>>, %arg3: memref<64x326xf32, #tpu.memory_space<vmem>>, %arg4: memref<9x4x8xf32, #tpu.memory_space<vmem>>, %arg5: memref<4x1xf32, #tpu.memory_space<vmem>>, %arg6: memref<9x4x4xf32, #tpu.memory_space<vmem>>, %arg7: memref<4x1xf32, #tpu.memory_space<vmem>>, %arg8: memref<1x288xf32, #tpu.memory_space<vmem>>, %arg9: memref<1x4x288xf32, #tpu.memory_space<vmem>>, %arg10: memref<8x326xf32, #tpu.memory_space<vmem>>, %arg11: memref<4x326xf32, #tpu.memory_space<vmem>>) attributes {dimension_semantics = [#tpu.dimension_semantics<parallel>], iteration_bounds = array<i64: 2>, scalar_prefetch = 0 : i64, scratch_operands = 2 : i64, tpu.core_type = #tpu.core_type<tc>, window_params = [{transform_indices = @transform_0, window_bounds = array<i64: 1, 4, 64>}, {transform_indices = @transform_1, window_bounds = array<i64: 1, 4, 326>}, {pipeline_mode = #tpu.pipeline_mode<synchronous>, transform_indices = @transform_2, window_bounds = array<i64: 64, 326>}, {pipeline_mode = #tpu.pipeline_mode<synchronous>, transform_indices = @transform_3, window_bounds = array<i64: 9, 4, 8>}, {pipeline_mode = #tpu.pipeline_mode<synchronous>, transform_indices = @transform_4, window_bounds = array<i64: 4, 1>}, {pipeline_mode = #tpu.pipeline_mode<synchronous>, transform_indices = @transform_5, window_bounds = array<i64: 9, 4, 4>}, {pipeline_mode = #tpu.pipeline_mode<synchronous>, transform_indices = @transform_6, window_bounds = array<i64: 4, 1>}, {pipeline_mode = #tpu.pipeline_mode<synchronous>, transform_indices = @transform_7, window_bounds = array<i64: 1, 288>}, {transform_indices = @transform_8, window_bounds = array<i64: 1, 4, 288>}]} {
    %c0 = arith.constant 0 : index
    %c0_0 = arith.constant 0 : index
    %c0_1 = arith.constant 0 : index
    %0 = vector.load %arg2[%c0, %c0_0, %c0_1] : memref<1x4x326xf32, #tpu.memory_space<vmem>>, vector<1x4x326xf32>
    %1 = vector.shape_cast %0 : vector<1x4x326xf32> to vector<4x326xf32>
    %c0_2 = arith.constant 0 : index
    %c0_3 = arith.constant 0 : index
    %2 = vector.load %arg10[%c0_2, %c0_3] : memref<8x326xf32, #tpu.memory_space<vmem>>, vector<4x326xf32>
    tpu.vector_store %arg10[%c0_2, %c0_3], %1 {strides = array<i32>} : memref<8x326xf32, #tpu.memory_space<vmem>>, vector<4x326xf32>,
    %c0_4 = arith.constant 0 : index
    %c0_5 = arith.constant 0 : index
    %c0_6 = arith.constant 0 : index
    %3 = vector.load %arg1[%c0_4, %c0_5, %c0_6] : memref<1x4x64xf32, #tpu.memory_space<vmem>>, vector<1x4x64xf32>
    %4 = vector.shape_cast %3 : vector<1x4x64xf32> to vector<4x64xf32>
    %c0_7 = arith.constant 0 : index
    %c0_8 = arith.constant 0 : index
    %5 = vector.load %arg3[%c0_7, %c0_8] : memref<64x326xf32, #tpu.memory_space<vmem>>, vector<64x326xf32>
    %cst = arith.constant dense<0.000000e+00> : vector<4x326xf32>
    %6 = tpu.matmul %4, %5, %cst {dimension_numbers = #tpu.dot_dimension_numbers<[1], [0], [0], [1], [0, 0, 1, 1], [], []>} : vector<4x64xf32>, vector<64x326xf32>, vector<4x326xf32> -> vector<4x326xf32>
    %c4 = arith.constant 4 : index
    %c0_9 = arith.constant 0 : index
    %7 = vector.load %arg10[%c4, %c0_9] : memref<8x326xf32, #tpu.memory_space<vmem>>, vector<4x326xf32>
    tpu.vector_store %arg10[%c4, %c0_9], %6 {strides = array<i32>} : memref<8x326xf32, #tpu.memory_space<vmem>>, vector<4x326xf32>,
    %cst_10 = arith.constant 0.000000e+00 : f32
    %8 = vector.broadcast %cst_10 : f32 to vector<4x288xf32>
    %c0_11 = arith.constant 0 : index
    %c0_12 = arith.constant 0 : index
    %c0_13 = arith.constant 0 : index
    %9 = vector.load %arg4[%c0_11, %c0_12, %c0_13] : memref<9x4x8xf32, #tpu.memory_space<vmem>>, vector<1x4x8xf32>
    %10 = vector.shape_cast %9 : vector<1x4x8xf32> to vector<4x8xf32>
    %c0_14 = arith.constant 0 : index
    %c0_15 = arith.constant 0 : index
    %11 = vector.load %arg10[%c0_14, %c0_15] : memref<8x326xf32, #tpu.memory_space<vmem>>, vector<8x288xf32>
    %cst_16 = arith.constant dense<0.000000e+00> : vector<4x288xf32>
    %12 = tpu.matmul %10, %11, %cst_16 {dimension_numbers = #tpu.dot_dimension_numbers<[1], [0], [0], [1], [0, 0, 1, 1], [], []>} : vector<4x8xf32>, vector<8x288xf32>, vector<4x288xf32> -> vector<4x288xf32>
    %13 = arith.addf %8, %12 : vector<4x288xf32>
    %c1 = arith.constant 1 : index
    %c0_17 = arith.constant 0 : index
    %c0_18 = arith.constant 0 : index
    %14 = vector.load %arg4[%c1, %c0_17, %c0_18] : memref<9x4x8xf32, #tpu.memory_space<vmem>>, vector<1x4x8xf32>
    %15 = vector.shape_cast %14 : vector<1x4x8xf32> to vector<4x8xf32>
    %c0_19 = arith.constant 0 : index
    %c1_20 = arith.constant 1 : index
    %16 = vector.load %arg10[%c0_19, %c1_20] : memref<8x326xf32, #tpu.memory_space<vmem>>, vector<8x288xf32>
    %cst_21 = arith.constant dense<0.000000e+00> : vector<4x288xf32>
    %17 = tpu.matmul %15, %16, %cst_21 {dimension_numbers = #tpu.dot_dimension_numbers<[1], [0], [0], [1], [0, 0, 1, 1], [], []>} : vector<4x8xf32>, vector<8x288xf32>, vector<4x288xf32> -> vector<4x288xf32>
    %18 = arith.addf %13, %17 : vector<4x288xf32>
    %c2 = arith.constant 2 : index
    %c0_22 = arith.constant 0 : index
    %c0_23 = arith.constant 0 : index
    %19 = vector.load %arg4[%c2, %c0_22, %c0_23] : memref<9x4x8xf32, #tpu.memory_space<vmem>>, vector<1x4x8xf32>
    %20 = vector.shape_cast %19 : vector<1x4x8xf32> to vector<4x8xf32>
    %c0_24 = arith.constant 0 : index
    %c2_25 = arith.constant 2 : index
    %21 = vector.load %arg10[%c0_24, %c2_25] : memref<8x326xf32, #tpu.memory_space<vmem>>, vector<8x288xf32>
    %cst_26 = arith.constant dense<0.000000e+00> : vector<4x288xf32>
    %22 = tpu.matmul %20, %21, %cst_26 {dimension_numbers = #tpu.dot_dimension_numbers<[1], [0], [0], [1], [0, 0, 1, 1], [], []>} : vector<4x8xf32>, vector<8x288xf32>, vector<4x288xf32> -> vector<4x288xf32>
    %23 = arith.addf %18, %22 : vector<4x288xf32>
    %c3 = arith.constant 3 : index
    %c0_27 = arith.constant 0 : index
    %c0_28 = arith.constant 0 : index
    %24 = vector.load %arg4[%c3, %c0_27, %c0_28] : memref<9x4x8xf32, #tpu.memory_space<vmem>>, vector<1x4x8xf32>
    %25 = vector.shape_cast %24 : vector<1x4x8xf32> to vector<4x8xf32>
    %c0_29 = arith.constant 0 : index
    %c18 = arith.constant 18 : index
    %26 = vector.load %arg10[%c0_29, %c18] : memref<8x326xf32, #tpu.memory_space<vmem>>, vector<8x288xf32>
    %cst_30 = arith.constant dense<0.000000e+00> : vector<4x288xf32>
    %27 = tpu.matmul %25, %26, %cst_30 {dimension_numbers = #tpu.dot_dimension_numbers<[1], [0], [0], [1], [0, 0, 1, 1], [], []>} : vector<4x8xf32>, vector<8x288xf32>, vector<4x288xf32> -> vector<4x288xf32>
    %28 = arith.addf %23, %27 : vector<4x288xf32>
    %c4_31 = arith.constant 4 : index
    %c0_32 = arith.constant 0 : index
    %c0_33 = arith.constant 0 : index
    %29 = vector.load %arg4[%c4_31, %c0_32, %c0_33] : memref<9x4x8xf32, #tpu.memory_space<vmem>>, vector<1x4x8xf32>
    %30 = vector.shape_cast %29 : vector<1x4x8xf32> to vector<4x8xf32>
    %c0_34 = arith.constant 0 : index
    %c19 = arith.constant 19 : index
    %31 = vector.load %arg10[%c0_34, %c19] : memref<8x326xf32, #tpu.memory_space<vmem>>, vector<8x288xf32>
    %cst_35 = arith.constant dense<0.000000e+00> : vector<4x288xf32>
    %32 = tpu.matmul %30, %31, %cst_35 {dimension_numbers = #tpu.dot_dimension_numbers<[1], [0], [0], [1], [0, 0, 1, 1], [], []>} : vector<4x8xf32>, vector<8x288xf32>, vector<4x288xf32> -> vector<4x288xf32>
    %33 = arith.addf %28, %32 : vector<4x288xf32>
    %c5 = arith.constant 5 : index
    %c0_36 = arith.constant 0 : index
    %c0_37 = arith.constant 0 : index
    %34 = vector.load %arg4[%c5, %c0_36, %c0_37] : memref<9x4x8xf32, #tpu.memory_space<vmem>>, vector<1x4x8xf32>
    %35 = vector.shape_cast %34 : vector<1x4x8xf32> to vector<4x8xf32>
    %c0_38 = arith.constant 0 : index
    %c20 = arith.constant 20 : index
    %36 = vector.load %arg10[%c0_38, %c20] : memref<8x326xf32, #tpu.memory_space<vmem>>, vector<8x288xf32>
    %cst_39 = arith.constant dense<0.000000e+00> : vector<4x288xf32>
    %37 = tpu.matmul %35, %36, %cst_39 {dimension_numbers = #tpu.dot_dimension_numbers<[1], [0], [0], [1], [0, 0, 1, 1], [], []>} : vector<4x8xf32>, vector<8x288xf32>, vector<4x288xf32> -> vector<4x288xf32>
    %38 = arith.addf %33, %37 : vector<4x288xf32>
    %c6 = arith.constant 6 : index
    %c0_40 = arith.constant 0 : index
    %c0_41 = arith.constant 0 : index
    %39 = vector.load %arg4[%c6, %c0_40, %c0_41] : memref<9x4x8xf32, #tpu.memory_space<vmem>>, vector<1x4x8xf32>
    %40 = vector.shape_cast %39 : vector<1x4x8xf32> to vector<4x8xf32>
    %c0_42 = arith.constant 0 : index
    %c36 = arith.constant 36 : index
    %41 = vector.load %arg10[%c0_42, %c36] : memref<8x326xf32, #tpu.memory_space<vmem>>, vector<8x288xf32>
    %cst_43 = arith.constant dense<0.000000e+00> : vector<4x288xf32>
    %42 = tpu.matmul %40, %41, %cst_43 {dimension_numbers = #tpu.dot_dimension_numbers<[1], [0], [0], [1], [0, 0, 1, 1], [], []>} : vector<4x8xf32>, vector<8x288xf32>, vector<4x288xf32> -> vector<4x288xf32>
    %43 = arith.addf %38, %42 : vector<4x288xf32>
    %c7 = arith.constant 7 : index
    %c0_44 = arith.constant 0 : index
    %c0_45 = arith.constant 0 : index
    %44 = vector.load %arg4[%c7, %c0_44, %c0_45] : memref<9x4x8xf32, #tpu.memory_space<vmem>>, vector<1x4x8xf32>
    %45 = vector.shape_cast %44 : vector<1x4x8xf32> to vector<4x8xf32>
    %c0_46 = arith.constant 0 : index
    %c37 = arith.constant 37 : index
    %46 = vector.load %arg10[%c0_46, %c37] : memref<8x326xf32, #tpu.memory_space<vmem>>, vector<8x288xf32>
    %cst_47 = arith.constant dense<0.000000e+00> : vector<4x288xf32>
    %47 = tpu.matmul %45, %46, %cst_47 {dimension_numbers = #tpu.dot_dimension_numbers<[1], [0], [0], [1], [0, 0, 1, 1], [], []>} : vector<4x8xf32>, vector<8x288xf32>, vector<4x288xf32> -> vector<4x288xf32>
    %48 = arith.addf %43, %47 : vector<4x288xf32>
    %c8 = arith.constant 8 : index
    %c0_48 = arith.constant 0 : index
    %c0_49 = arith.constant 0 : index
    %49 = vector.load %arg4[%c8, %c0_48, %c0_49] : memref<9x4x8xf32, #tpu.memory_space<vmem>>, vector<1x4x8xf32>
    %50 = vector.shape_cast %49 : vector<1x4x8xf32> to vector<4x8xf32>
    %c0_50 = arith.constant 0 : index
    %c38 = arith.constant 38 : index
    %51 = vector.load %arg10[%c0_50, %c38] : memref<8x326xf32, #tpu.memory_space<vmem>>, vector<8x288xf32>
    %cst_51 = arith.constant dense<0.000000e+00> : vector<4x288xf32>
    %52 = tpu.matmul %50, %51, %cst_51 {dimension_numbers = #tpu.dot_dimension_numbers<[1], [0], [0], [1], [0, 0, 1, 1], [], []>} : vector<4x8xf32>, vector<8x288xf32>, vector<4x288xf32> -> vector<4x288xf32>
    %53 = arith.addf %48, %52 : vector<4x288xf32>
    %c0_52 = arith.constant 0 : index
    %c0_53 = arith.constant 0 : index
    %54 = vector.load %arg5[%c0_52, %c0_53] : memref<4x1xf32, #tpu.memory_space<vmem>>, vector<4x1xf32>
    %55 = vector.broadcast %54 : vector<4x1xf32> to vector<4x288xf32>
    %56 = arith.addf %53, %55 : vector<4x288xf32>
    %cst_54 = arith.constant 0.000000e+00 : f32
    %57 = vector.broadcast %cst_54 : f32 to vector<4x288xf32>
    %58 = arith.maximumf %56, %57 : vector<4x288xf32>
    %c0_55 = arith.constant 0 : index
    %c0_56 = arith.constant 0 : index
    %59 = vector.load %arg8[%c0_55, %c0_56] : memref<1x288xf32, #tpu.memory_space<vmem>>, vector<1x288xf32>
    %60 = vector.broadcast %59 : vector<1x288xf32> to vector<4x288xf32>
    %61 = arith.mulf %58, %60 : vector<4x288xf32>
    %cst_57 = arith.constant 0.000000e+00 : f32
    %62 = vector.broadcast %cst_57 : f32 to vector<4x326xf32>
    %c0_58 = arith.constant 0 : index
    %c0_59 = arith.constant 0 : index
    %63 = vector.load %arg11[%c0_58, %c0_59] : memref<4x326xf32, #tpu.memory_space<vmem>>, vector<4x326xf32>
    tpu.vector_store %arg11[%c0_58, %c0_59], %62 {strides = array<i32>} : memref<4x326xf32, #tpu.memory_space<vmem>>, vector<4x326xf32>,
    %c0_60 = arith.constant 0 : index
    %c19_61 = arith.constant 19 : index
    %64 = vector.load %arg11[%c0_60, %c19_61] : memref<4x326xf32, #tpu.memory_space<vmem>>, vector<4x288xf32>
    tpu.vector_store %arg11[%c0_60, %c19_61], %61 {strides = array<i32>} : memref<4x326xf32, #tpu.memory_space<vmem>>, vector<4x288xf32>,
    %cst_62 = arith.constant 0.000000e+00 : f32
    %65 = vector.broadcast %cst_62 : f32 to vector<4x288xf32>
    %c0_63 = arith.constant 0 : index
    %c0_64 = arith.constant 0 : index
    %c0_65 = arith.constant 0 : index
    %66 = vector.load %arg6[%c0_63, %c0_64, %c0_65] : memref<9x4x4xf32, #tpu.memory_space<vmem>>, vector<1x4x4xf32>
    %67 = vector.shape_cast %66 : vector<1x4x4xf32> to vector<4x4xf32>
    %c0_66 = arith.constant 0 : index
    %c0_67 = arith.constant 0 : index
    %68 = vector.load %arg11[%c0_66, %c0_67] : memref<4x326xf32, #tpu.memory_space<vmem>>, vector<4x288xf32>
    %cst_68 = arith.constant dense<0.000000e+00> : vector<4x288xf32>
    %69 = tpu.matmul %67, %68, %cst_68 {dimension_numbers = #tpu.dot_dimension_numbers<[1], [0], [0], [1], [0, 0, 1, 1], [], []>} : vector<4x4xf32>, vector<4x288xf32>, vector<4x288xf32> -> vector<4x288xf32>
    %70 = arith.addf %65, %69 : vector<4x288xf32>
    %c1_69 = arith.constant 1 : index
    %c0_70 = arith.constant 0 : index
    %c0_71 = arith.constant 0 : index
    %71 = vector.load %arg6[%c1_69, %c0_70, %c0_71] : memref<9x4x4xf32, #tpu.memory_space<vmem>>, vector<1x4x4xf32>
    %72 = vector.shape_cast %71 : vector<1x4x4xf32> to vector<4x4xf32>
    %c0_72 = arith.constant 0 : index
    %c1_73 = arith.constant 1 : index
    %73 = vector.load %arg11[%c0_72, %c1_73] : memref<4x326xf32, #tpu.memory_space<vmem>>, vector<4x288xf32>
    %cst_74 = arith.constant dense<0.000000e+00> : vector<4x288xf32>
    %74 = tpu.matmul %72, %73, %cst_74 {dimension_numbers = #tpu.dot_dimension_numbers<[1], [0], [0], [1], [0, 0, 1, 1], [], []>} : vector<4x4xf32>, vector<4x288xf32>, vector<4x288xf32> -> vector<4x288xf32>
    %75 = arith.addf %70, %74 : vector<4x288xf32>
    %c2_75 = arith.constant 2 : index
    %c0_76 = arith.constant 0 : index
    %c0_77 = arith.constant 0 : index
    %76 = vector.load %arg6[%c2_75, %c0_76, %c0_77] : memref<9x4x4xf32, #tpu.memory_space<vmem>>, vector<1x4x4xf32>
    %77 = vector.shape_cast %76 : vector<1x4x4xf32> to vector<4x4xf32>
    %c0_78 = arith.constant 0 : index
    %c2_79 = arith.constant 2 : index
    %78 = vector.load %arg11[%c0_78, %c2_79] : memref<4x326xf32, #tpu.memory_space<vmem>>, vector<4x288xf32>
    %cst_80 = arith.constant dense<0.000000e+00> : vector<4x288xf32>
    %79 = tpu.matmul %77, %78, %cst_80 {dimension_numbers = #tpu.dot_dimension_numbers<[1], [0], [0], [1], [0, 0, 1, 1], [], []>} : vector<4x4xf32>, vector<4x288xf32>, vector<4x288xf32> -> vector<4x288xf32>
    %80 = arith.addf %75, %79 : vector<4x288xf32>
    %c3_81 = arith.constant 3 : index
    %c0_82 = arith.constant 0 : index
    %c0_83 = arith.constant 0 : index
    %81 = vector.load %arg6[%c3_81, %c0_82, %c0_83] : memref<9x4x4xf32, #tpu.memory_space<vmem>>, vector<1x4x4xf32>
    %82 = vector.shape_cast %81 : vector<1x4x4xf32> to vector<4x4xf32>
    %c0_84 = arith.constant 0 : index
    %c18_85 = arith.constant 18 : index
    %83 = vector.load %arg11[%c0_84, %c18_85] : memref<4x326xf32, #tpu.memory_space<vmem>>, vector<4x288xf32>
    %cst_86 = arith.constant dense<0.000000e+00> : vector<4x288xf32>
    %84 = tpu.matmul %82, %83, %cst_86 {dimension_numbers = #tpu.dot_dimension_numbers<[1], [0], [0], [1], [0, 0, 1, 1], [], []>} : vector<4x4xf32>, vector<4x288xf32>, vector<4x288xf32> -> vector<4x288xf32>
    %85 = arith.addf %80, %84 : vector<4x288xf32>
    %c4_87 = arith.constant 4 : index
    %c0_88 = arith.constant 0 : index
    %c0_89 = arith.constant 0 : index
    %86 = vector.load %arg6[%c4_87, %c0_88, %c0_89] : memref<9x4x4xf32, #tpu.memory_space<vmem>>, vector<1x4x4xf32>
    %87 = vector.shape_cast %86 : vector<1x4x4xf32> to vector<4x4xf32>
    %c0_90 = arith.constant 0 : index
    %c19_91 = arith.constant 19 : index
    %88 = vector.load %arg11[%c0_90, %c19_91] : memref<4x326xf32, #tpu.memory_space<vmem>>, vector<4x288xf32>
    %cst_92 = arith.constant dense<0.000000e+00> : vector<4x288xf32>
    %89 = tpu.matmul %87, %88, %cst_92 {dimension_numbers = #tpu.dot_dimension_numbers<[1], [0], [0], [1], [0, 0, 1, 1], [], []>} : vector<4x4xf32>, vector<4x288xf32>, vector<4x288xf32> -> vector<4x288xf32>
    %90 = arith.addf %85, %89 : vector<4x288xf32>
    %c5_93 = arith.constant 5 : index
    %c0_94 = arith.constant 0 : index
    %c0_95 = arith.constant 0 : index
    %91 = vector.load %arg6[%c5_93, %c0_94, %c0_95] : memref<9x4x4xf32, #tpu.memory_space<vmem>>, vector<1x4x4xf32>
    %92 = vector.shape_cast %91 : vector<1x4x4xf32> to vector<4x4xf32>
    %c0_96 = arith.constant 0 : index
    %c20_97 = arith.constant 20 : index
    %93 = vector.load %arg11[%c0_96, %c20_97] : memref<4x326xf32, #tpu.memory_space<vmem>>, vector<4x288xf32>
    %cst_98 = arith.constant dense<0.000000e+00> : vector<4x288xf32>
    %94 = tpu.matmul %92, %93, %cst_98 {dimension_numbers = #tpu.dot_dimension_numbers<[1], [0], [0], [1], [0, 0, 1, 1], [], []>} : vector<4x4xf32>, vector<4x288xf32>, vector<4x288xf32> -> vector<4x288xf32>
    %95 = arith.addf %90, %94 : vector<4x288xf32>
    %c6_99 = arith.constant 6 : index
    %c0_100 = arith.constant 0 : index
    %c0_101 = arith.constant 0 : index
    %96 = vector.load %arg6[%c6_99, %c0_100, %c0_101] : memref<9x4x4xf32, #tpu.memory_space<vmem>>, vector<1x4x4xf32>
    %97 = vector.shape_cast %96 : vector<1x4x4xf32> to vector<4x4xf32>
    %c0_102 = arith.constant 0 : index
    %c36_103 = arith.constant 36 : index
    %98 = vector.load %arg11[%c0_102, %c36_103] : memref<4x326xf32, #tpu.memory_space<vmem>>, vector<4x288xf32>
    %cst_104 = arith.constant dense<0.000000e+00> : vector<4x288xf32>
    %99 = tpu.matmul %97, %98, %cst_104 {dimension_numbers = #tpu.dot_dimension_numbers<[1], [0], [0], [1], [0, 0, 1, 1], [], []>} : vector<4x4xf32>, vector<4x288xf32>, vector<4x288xf32> -> vector<4x288xf32>
    %100 = arith.addf %95, %99 : vector<4x288xf32>
    %c7_105 = arith.constant 7 : index
    %c0_106 = arith.constant 0 : index
    %c0_107 = arith.constant 0 : index
    %101 = vector.load %arg6[%c7_105, %c0_106, %c0_107] : memref<9x4x4xf32, #tpu.memory_space<vmem>>, vector<1x4x4xf32>
    %102 = vector.shape_cast %101 : vector<1x4x4xf32> to vector<4x4xf32>
    %c0_108 = arith.constant 0 : index
    %c37_109 = arith.constant 37 : index
    %103 = vector.load %arg11[%c0_108, %c37_109] : memref<4x326xf32, #tpu.memory_space<vmem>>, vector<4x288xf32>
    %cst_110 = arith.constant dense<0.000000e+00> : vector<4x288xf32>
    %104 = tpu.matmul %102, %103, %cst_110 {dimension_numbers = #tpu.dot_dimension_numbers<[1], [0], [0], [1], [0, 0, 1, 1], [], []>} : vector<4x4xf32>, vector<4x288xf32>, vector<4x288xf32> -> vector<4x288xf32>
    %105 = arith.addf %100, %104 : vector<4x288xf32>
    %c8_111 = arith.constant 8 : index
    %c0_112 = arith.constant 0 : index
    %c0_113 = arith.constant 0 : index
    %106 = vector.load %arg6[%c8_111, %c0_112, %c0_113] : memref<9x4x4xf32, #tpu.memory_space<vmem>>, vector<1x4x4xf32>
    %107 = vector.shape_cast %106 : vector<1x4x4xf32> to vector<4x4xf32>
    %c0_114 = arith.constant 0 : index
    %c38_115 = arith.constant 38 : index
    %108 = vector.load %arg11[%c0_114, %c38_115] : memref<4x326xf32, #tpu.memory_space<vmem>>, vector<4x288xf32>
    %cst_116 = arith.constant dense<0.000000e+00> : vector<4x288xf32>
    %109 = tpu.matmul %107, %108, %cst_116 {dimension_numbers = #tpu.dot_dimension_numbers<[1], [0], [0], [1], [0, 0, 1, 1], [], []>} : vector<4x4xf32>, vector<4x288xf32>, vector<4x288xf32> -> vector<4x288xf32>
    %110 = arith.addf %105, %109 : vector<4x288xf32>
    %c0_117 = arith.constant 0 : index
    %c0_118 = arith.constant 0 : index
    %111 = vector.load %arg7[%c0_117, %c0_118] : memref<4x1xf32, #tpu.memory_space<vmem>>, vector<4x1xf32>
    %112 = vector.broadcast %111 : vector<4x1xf32> to vector<4x288xf32>
    %113 = arith.addf %110, %112 : vector<4x288xf32>
    %cst_119 = arith.constant 0.000000e+00 : f32
    %114 = vector.broadcast %cst_119 : f32 to vector<4x288xf32>
    %115 = arith.maximumf %113, %114 : vector<4x288xf32>
    %c0_120 = arith.constant 0 : index
    %c0_121 = arith.constant 0 : index
    %c0_122 = arith.constant 0 : index
    %116 = vector.load %arg9[%c0_120, %c0_121, %c0_122] : memref<1x4x288xf32, #tpu.memory_space<vmem>>, vector<1x4x288xf32>
    %117 = vector.shape_cast %116 : vector<1x4x288xf32> to vector<4x288xf32>
    %118 = vector.shape_cast %115 : vector<4x288xf32> to vector<1x4x288xf32>
    tpu.vector_store %arg9[%c0_120, %c0_121, %c0_122], %118 {strides = array<i32>} : memref<1x4x288xf32, #tpu.memory_space<vmem>>, vector<1x4x288xf32>,
    return
  }
  func.func @transform_0(%arg0: i32) -> (i32, i32, i32) {
    %c0_i32 = arith.constant 0 : i32
    %c0_i32_0 = arith.constant 0 : i32
    %c0_i32_1 = arith.constant 0 : i32
    return %arg0, %c0_i32, %c0_i32_0 : i32, i32, i32
  }
  func.func @transform_1(%arg0: i32) -> (i32, i32, i32) {
    %c0_i32 = arith.constant 0 : i32
    %c0_i32_0 = arith.constant 0 : i32
    %c0_i32_1 = arith.constant 0 : i32
    return %arg0, %c0_i32, %c0_i32_0 : i32, i32, i32
  }
  func.func @transform_2(%arg0: i32) -> (i32, i32) {
    %c0_i32 = arith.constant 0 : i32
    %c0_i32_0 = arith.constant 0 : i32
    %c0_i32_1 = arith.constant 0 : i32
    return %c0_i32, %c0_i32_0 : i32, i32
  }
  func.func @transform_3(%arg0: i32) -> (i32, i32, i32) {
    %c0_i32 = arith.constant 0 : i32
    %c0_i32_0 = arith.constant 0 : i32
    %c0_i32_1 = arith.constant 0 : i32
    %c0_i32_2 = arith.constant 0 : i32
    return %c0_i32, %c0_i32_0, %c0_i32_1 : i32, i32, i32
  }
  func.func @transform_4(%arg0: i32) -> (i32, i32) {
    %c0_i32 = arith.constant 0 : i32
    %c0_i32_0 = arith.constant 0 : i32
    %c0_i32_1 = arith.constant 0 : i32
    return %c0_i32, %c0_i32_0 : i32, i32
  }
  func.func @transform_5(%arg0: i32) -> (i32, i32, i32) {
    %c0_i32 = arith.constant 0 : i32
    %c0_i32_0 = arith.constant 0 : i32
    %c0_i32_1 = arith.constant 0 : i32
    %c0_i32_2 = arith.constant 0 : i32
    return %c0_i32, %c0_i32_0, %c0_i32_1 : i32, i32, i32
  }
  func.func @transform_6(%arg0: i32) -> (i32, i32) {
    %c0_i32 = arith.constant 0 : i32
    %c0_i32_0 = arith.constant 0 : i32
    %c0_i32_1 = arith.constant 0 : i32
    return %c0_i32, %c0_i32_0 : i32, i32
  }
  func.func @transform_7(%arg0: i32) -> (i32, i32) {
    %c0_i32 = arith.constant 0 : i32
    %c0_i32_0 = arith.constant 0 : i32
    %c0_i32_1 = arith.constant 0 : i32
    return %c0_i32, %c0_i32_0 : i32, i32
  }
  func.func @transform_8(%arg0: i32) -> (i32, i32, i32) {
    %c0_i32 = arith.constant 0 : i32
    %c0_i32_0 = arith.constant 0 : i32
    %c0_i32_1 = arith.constant 0 : i32
    return %arg0, %c0_i32, %c0_i32_0 : i32, i32, i32
  }
}

</mosaic_0001>

<llo_original>
// kernel: up4_forward.1
$region0: #{up4_forward.1}
  #allocation0 [shape = 'u32[]', space=smem, size = 0x4, offset = 0x4, fixed_abs, tag = 'smem constant byte address 0x4 - core index']
  #allocation1 [shape = 'u32[144,128]{1,0:T(1,128)}', space=vmem, size = 0x12000, scoped, tag = 'internal scratch']
  #allocation2 [shape = 'f32[8,326]{1,0:T(8,128)}', space=vmem, size = 0x3000, scoped, tag = 'scratch operand']
  #allocation3 [shape = 'f32[4,326]{1,0:T(4,128)}', space=vmem, size = 0x1800, scoped, tag = 'scratch operand']
  %s0 = inlined_call_operand.vmem [shape: f32[2,4,64], index: 0, kind: input, shape index: {}]
  %s1 = inlined_call_operand.vmem [shape: f32[2,4,326], index: 1, kind: input, shape index: {}]
  %s2 = inlined_call_operand.vmem [shape: f32[64,326], index: 2, kind: input, shape index: {}]
  %s3 = inlined_call_operand.vmem [shape: f32[9,4,8], index: 3, kind: input, shape index: {}]
  %s4 = inlined_call_operand.vmem [shape: f32[4,1], index: 4, kind: input, shape index: {}]
  %s5 = inlined_call_operand.vmem [shape: f32[9,4,4], index: 5, kind: input, shape index: {}]
  %s6 = inlined_call_operand.vmem [shape: f32[4,1], index: 6, kind: input, shape index: {}]
  %s7 = inlined_call_operand.vmem [shape: f32[1,288], index: 7, kind: input, shape index: {}]
  %s8 = inlined_call_operand.vmem [shape: f32[2,4,288], index: 8, kind: output, shape index: {}]
  %s9 = sld [smem:[#allocation0]]
  $region65: #{up4_forward.1} parent=0
    _
  %s11 = ssub.s32 1, %s9
  %s12 = scalar_select 0, %s11, %s9
  loop: start=0, step=1, limit=4
  $region2: #{up4_forward.1} parent=0 // loop_pre_header
    _
  $region3: #{up4_forward.1} parent=0 // loop_header
    %s14 = sphi 0, %s18
    %p15 = scmp.ge.s32.totalorder %s14, 4
    %s24 = sphi 0, %s26
    %s27 = sphi 0, %s24
    %s28 = sphi 0, %s27
    %s44 = sphi 0, %s28
    %s50 = sphi 0, %s52
    %s53 = sphi 0, %s50
    %s54 = sphi 0, %s53
    %s70 = sphi 0, %s54
    %s74 = sphi 0, %s74
    %s76 = sphi 0, %s74
    %s77 = sphi 0, %s76
    %s91 = sphi 0, %s77
    %s95 = sphi 0, %s95
    %s97 = sphi 0, %s95
    %s98 = sphi 0, %s97
    %s112 = sphi 0, %s98
    %s116 = sphi 0, %s116
    %s118 = sphi 0, %s116
    %s119 = sphi 0, %s118
    %s133 = sphi 0, %s119
    %s137 = sphi 0, %s137
    %s139 = sphi 0, %s137
    %s140 = sphi 0, %s139
    %s154 = sphi 0, %s140
    %s158 = sphi 0, %s158
    %s160 = sphi 0, %s158
    %s161 = sphi 0, %s160
    %s175 = sphi 0, %s161
    %s179 = sphi 0, %s179
    %s181 = sphi 0, %s179
    %s182 = sphi 0, %s181
    %s196 = sphi 0, %s182
    %s202 = sphi 0, %s204
    %s205 = sphi 0, %s202
    %s206 = sphi 0, %s205
    %s222 = sphi 0, %s206
  $region4: #{up4_forward.1} parent=0 // loop_header_branch
    %17 = sbr.rel (%p15) target = $region8
  $region5: #{up4_forward.1} parent=0 // loop_body
    %s19 = ssub.s32 %s14, 1
    %s20 = ssub.s32 %s14, 2
    %s21 = sadd.s32 %s14, 1
    %s22 = ssub.s32 %s14, %s21
    %p23 = scmp.eq.s32.totalorder %s22, 0
    %s25 = sadd.s32 %s24, 1
    %s26 = scalar_select %p23, %s24, %s25
    %p29 = pneg %p23
    %p30 = scmp.eq.s32.totalorder %s14, 1
    %p31 = por %p29, %p30
    %p32 = scmp.ne.s32.totalorder %s24, %s27
    %p33 = scmp.eq.s32.totalorder %s14, 0
    %p34 = por %p32, %p33
    %p35 = scmp.ne.s32.totalorder %s24, %s27
    %p36 = scmp.eq.s32.totalorder %s19, 1
    %p37 = por %p35, %p36
    %p38 = scmp.ne.s32.totalorder %s27, %s28
    %p39 = scmp.eq.s32.totalorder %s19, 0
    %p40 = por %p38, %p39
    %p41 = scmp.ne.s32.totalorder %s27, %s28
    %p42 = scmp.eq.s32.totalorder %s20, 1
    %p43 = por %p41, %p42
    %p45 = scmp.ne.s32.totalorder %s28, %s44
    %p46 = scmp.eq.s32.totalorder %s20, 0
    %p47 = por %p45, %p46
    %s48 = ssub.s32 %s14, %s21
    %p49 = scmp.eq.s32.totalorder %s48, 0
    %s51 = sadd.s32 %s50, 1
    %s52 = scalar_select %p49, %s50, %s51
    %p55 = pneg %p49
    %p56 = scmp.eq.s32.totalorder %s14, 1
    %p57 = por %p55, %p56
    %p58 = scmp.ne.s32.totalorder %s50, %s53
    %p59 = scmp.eq.s32.totalorder %s14, 0
    %p60 = por %p58, %p59
    %p61 = scmp.ne.s32.totalorder %s50, %s53
    %p62 = scmp.eq.s32.totalorder %s19, 1
    %p63 = por %p61, %p62
    %p64 = scmp.ne.s32.totalorder %s53, %s54
    %p65 = scmp.eq.s32.totalorder %s19, 0
    %p66 = por %p64, %p65
    %p67 = scmp.ne.s32.totalorder %s53, %s54
    %p68 = scmp.eq.s32.totalorder %s20, 1
    %p69 = por %p67, %p68
    %p71 = scmp.ne.s32.totalorder %s54, %s70
    %p72 = scmp.eq.s32.totalorder %s20, 0
    %p73 = por %p71, %p72
    %s75 = sadd.s32 %s74, 1
    %p78 = scmp.eq.s32.totalorder %s14, 1
    %p79 = scmp.ne.s32.totalorder %s74, %s76
    %p80 = scmp.eq.s32.totalorder %s14, 0
    %p81 = por %p79, %p80
    %p82 = scmp.ne.s32.totalorder %s74, %s76
    %p83 = scmp.eq.s32.totalorder %s19, 1
    %p84 = por %p82, %p83
    %p85 = scmp.ne.s32.totalorder %s76, %s77
    %p86 = scmp.eq.s32.totalorder %s19, 0
    %p87 = por %p85, %p86
    %p88 = scmp.ne.s32.totalorder %s76, %s77
    %p89 = scmp.eq.s32.totalorder %s20, 1
    %p90 = por %p88, %p89
    %p92 = scmp.ne.s32.totalorder %s77, %s91
    %p93 = scmp.eq.s32.totalorder %s20, 0
    %p94 = por %p92, %p93
    %s96 = sadd.s32 %s95, 1
    %p99 = scmp.eq.s32.totalorder %s14, 1
    %p100 = scmp.ne.s32.totalorder %s95, %s97
    %p101 = scmp.eq.s32.totalorder %s14, 0
    %p102 = por %p100, %p101
    %p103 = scmp.ne.s32.totalorder %s95, %s97
    %p104 = scmp.eq.s32.totalorder %s19, 1
    %p105 = por %p103, %p104
    %p106 = scmp.ne.s32.totalorder %s97, %s98
    %p107 = scmp.eq.s32.totalorder %s19, 0
    %p108 = por %p106, %p107
    %p109 = scmp.ne.s32.totalorder %s97, %s98
    %p110 = scmp.eq.s32.totalorder %s20, 1
    %p111 = por %p109, %p110
    %p113 = scmp.ne.s32.totalorder %s98, %s112
    %p114 = scmp.eq.s32.totalorder %s20, 0
    %p115 = por %p113, %p114
    %s117 = sadd.s32 %s116, 1
    %p120 = scmp.eq.s32.totalorder %s14, 1
    %p121 = scmp.ne.s32.totalorder %s116, %s118
    %p122 = scmp.eq.s32.totalorder %s14, 0
    %p123 = por %p121, %p122
    %p124 = scmp.ne.s32.totalorder %s116, %s118
    %p125 = scmp.eq.s32.totalorder %s19, 1
    %p126 = por %p124, %p125
    %p127 = scmp.ne.s32.totalorder %s118, %s119
    %p128 = scmp.eq.s32.totalorder %s19, 0
    %p129 = por %p127, %p128
    %p130 = scmp.ne.s32.totalorder %s118, %s119
    %p131 = scmp.eq.s32.totalorder %s20, 1
    %p132 = por %p130, %p131
    %p134 = scmp.ne.s32.totalorder %s119, %s133
    %p135 = scmp.eq.s32.totalorder %s20, 0
    %p136 = por %p134, %p135
    %s138 = sadd.s32 %s137, 1
    %p141 = scmp.eq.s32.totalorder %s14, 1
    %p142 = scmp.ne.s32.totalorder %s137, %s139
    %p143 = scmp.eq.s32.totalorder %s14, 0
    %p144 = por %p142, %p143
    %p145 = scmp.ne.s32.totalorder %s137, %s139
    %p146 = scmp.eq.s32.totalorder %s19, 1
    %p147 = por %p145, %p146
    %p148 = scmp.ne.s32.totalorder %s139, %s140
    %p149 = scmp.eq.s32.totalorder %s19, 0
    %p150 = por %p148, %p149
    %p151 = scmp.ne.s32.totalorder %s139, %s140
    %p152 = scmp.eq.s32.totalorder %s20, 1
    %p153 = por %p151, %p152
    %p155 = scmp.ne.s32.totalorder %s140, %s154
    %p156 = scmp.eq.s32.totalorder %s20, 0
    %p157 = por %p155, %p156
    %s159 = sadd.s32 %s158, 1
    %p162 = scmp.eq.s32.totalorder %s14, 1
    %p163 = scmp.ne.s32.totalorder %s158, %s160
    %p164 = scmp.eq.s32.totalorder %s14, 0
    %p165 = por %p163, %p164
    %p166 = scmp.ne.s32.totalorder %s158, %s160
    %p167 = scmp.eq.s32.totalorder %s19, 1
    %p168 = por %p166, %p167
    %p169 = scmp.ne.s32.totalorder %s160, %s161
    %p170 = scmp.eq.s32.totalorder %s19, 0
    %p171 = por %p169, %p170
    %p172 = scmp.ne.s32.totalorder %s160, %s161
    %p173 = scmp.eq.s32.totalorder %s20, 1
    %p174 = por %p172, %p173
    %p176 = scmp.ne.s32.totalorder %s161, %s175
    %p177 = scmp.eq.s32.totalorder %s20, 0
    %p178 = por %p176, %p177
    %s180 = sadd.s32 %s179, 1
    %p183 = scmp.eq.s32.totalorder %s14, 1
    %p184 = scmp.ne.s32.totalorder %s179, %s181
    %p185 = scmp.eq.s32.totalorder %s14, 0
    %p186 = por %p184, %p185
    %p187 = scmp.ne.s32.totalorder %s179, %s181
    %p188 = scmp.eq.s32.totalorder %s19, 1
    %p189 = por %p187, %p188
    %p190 = scmp.ne.s32.totalorder %s181, %s182
    %p191 = scmp.eq.s32.totalorder %s19, 0
    %p192 = por %p190, %p191
    %p193 = scmp.ne.s32.totalorder %s181, %s182
    %p194 = scmp.eq.s32.totalorder %s20, 1
    %p195 = por %p193, %p194
    %p197 = scmp.ne.s32.totalorder %s182, %s196
    %p198 = scmp.eq.s32.totalorder %s20, 0
    %p199 = por %p197, %p198
    %s200 = ssub.s32 %s14, %s21
    %p201 = scmp.eq.s32.totalorder %s200, 0
    %s203 = sadd.s32 %s202, 1
    %s204 = scalar_select %p201, %s202, %s203
    %p207 = pneg %p201
    %p208 = scmp.eq.s32.totalorder %s14, 1
    %p209 = por %p207, %p208
    %p210 = scmp.ne.s32.totalorder %s202, %s205
    %p211 = scmp.eq.s32.totalorder %s14, 0
    %p212 = por %p210, %p211
    %p213 = scmp.ne.s32.totalorder %s202, %s205
    %p214 = scmp.eq.s32.totalorder %s19, 1
    %p215 = por %p213, %p214
    %p216 = scmp.ne.s32.totalorder %s205, %s206
    %p217 = scmp.eq.s32.totalorder %s19, 0
    %p218 = por %p216, %p217
    %p219 = scmp.ne.s32.totalorder %s205, %s206
    %p220 = scmp.eq.s32.totalorder %s20, 1
    %p221 = por %p219, %p220
    %p223 = scmp.ne.s32.totalorder %s206, %s222
    %p224 = scmp.eq.s32.totalorder %s20, 0
    %p225 = por %p223, %p224
    %p226 = scmp.le.s32.totalorder 1, %s14
    %p227 = scmp.lt.s32.totalorder %s14, 3
    %p228 = pnand %p226, %p227
    %p229 = pneg %p228
    // Predicated region
    $region9: #{up4_forward.1} parent=5 // pred_check
      _
    $region10: #{up4_forward.1} parent=5 // pred_check_branch
      %231 = sbr.rel (%p228) target = $region12
    $region11: #{up4_forward.1} parent=5 // pred_region
      %s232 = ssub.s32 %s14, 1
      // Predicated region
      $region13: #{up4_forward.1} parent=11 // pred_check
        %p233 = pneg %p87
      $region14: #{up4_forward.1} parent=11 // pred_check_branch
        %235 = sbr.rel (%p233) target = $region16
      $region15: #{up4_forward.1} parent=11 // pred_region
        _
      $region16: #{up4_forward.1} parent=11 // pred_fallthru
        _
      // Predicated region
      $region17: #{up4_forward.1} parent=11 // pred_check
        %p236 = pneg %p108
      $region18: #{up4_forward.1} parent=11 // pred_check_branch
        %238 = sbr.rel (%p236) target = $region20
      $region19: #{up4_forward.1} parent=11 // pred_region
        _
      $region20: #{up4_forward.1} parent=11 // pred_fallthru
        _
      // Predicated region
      $region21: #{up4_forward.1} parent=11 // pred_check
        %p239 = pneg %p129
      $region22: #{up4_forward.1} parent=11 // pred_check_branch
        %241 = sbr.rel (%p239) target = $region24
      $region23: #{up4_forward.1} parent=11 // pred_region
        _
      $region24: #{up4_forward.1} parent=11 // pred_fallthru
        _
      // Predicated region
      $region25: #{up4_forward.1} parent=11 // pred_check
        %p242 = pneg %p150
      $region26: #{up4_forward.1} parent=11 // pred_check_branch
        %244 = sbr.rel (%p242) target = $region28
      $region27: #{up4_forward.1} parent=11 // pred_region
        _
      $region28: #{up4_forward.1} parent=11 // pred_fallthru
        _
      // Predicated region
      $region29: #{up4_forward.1} parent=11 // pred_check
        %p245 = pneg %p171
      $region30: #{up4_forward.1} parent=11 // pred_check_branch
        %247 = sbr.rel (%p245) target = $region32
      $region31: #{up4_forward.1} parent=11 // pred_region
        _
      $region32: #{up4_forward.1} parent=11 // pred_fallthru
        _
      // Predicated region
      $region33: #{up4_forward.1} parent=11 // pred_check
        %p248 = pneg %p192
      $region34: #{up4_forward.1} parent=11 // pred_check_branch
        %250 = sbr.rel (%p248) target = $region36
      $region35: #{up4_forward.1} parent=11 // pred_region
        _
      $region36: #{up4_forward.1} parent=11 // pred_fallthru
        _
    $region12: #{up4_forward.1} parent=5 // pred_fallthru
      _
    %p251 = scmp.lt.s32.totalorder %s14, 2
    // Predicated region
    $region37: #{up4_forward.1} parent=5 // pred_check
      %p252 = pneg %p251
    $region38: #{up4_forward.1} parent=5 // pred_check_branch
      %254 = sbr.rel (%p252) target = $region40
    $region39: #{up4_forward.1} parent=5 // pred_region
      // Predicated region
      $region41: #{up4_forward.1} parent=39 // pred_check
        %p255 = pneg %p34
      $region42: #{up4_forward.1} parent=39 // pred_check_branch
        %257 = sbr.rel (%p255) target = $region44
      $region43: #{up4_forward.1} parent=39 // pred_region
        %p258 = scmp.lt.s32.totalorder %s14, 1
        %s259 = scalar_select %p258, %s14, 1
        %s260 = smul.addr %s259, 4
        %s261 = scalar_lea.vmem %s0, %s260
      $region44: #{up4_forward.1} parent=39 // pred_fallthru
        _
      // Predicated region
      $region45: #{up4_forward.1} parent=39 // pred_check
        %p262 = pneg %p60
      $region46: #{up4_forward.1} parent=39 // pred_check_branch
        %264 = sbr.rel (%p262) target = $region48
      $region47: #{up4_forward.1} parent=39 // pred_region
        %p265 = scmp.lt.s32.totalorder %s14, 1
        %s266 = scalar_select %p265, %s14, 1
        %s267 = smul.addr %s266, 3
        %s268 = smul.addr %s267, 4
        %s269 = scalar_lea.vmem %s1, %s268
      $region48: #{up4_forward.1} parent=39 // pred_fallthru
        _
    $region40: #{up4_forward.1} parent=5 // pred_fallthru
      _
    %p270 = scmp.le.s32.totalorder 1, %s14
    %p271 = scmp.lt.s32.totalorder %s14, 3
    %p272 = pnand %p270, %p271
    %p273 = pneg %p272
    // Predicated region
    $region49: #{up4_forward.1} parent=5 // pred_check
      _
    $region50: #{up4_forward.1} parent=5 // pred_check_branch
      %275 = sbr.rel (%p272) target = $region52
    $region51: #{up4_forward.1} parent=5 // pred_region
      %s276 = ssub.s32 %s14, 1
      %p277 = scmp.lt.s32.totalorder %s19, 1
      %s278 = scalar_select %p277, %s19, 1
      %s279 = smul.addr %s278, 4
      %s280 = scalar_lea.vmem %s0, %s279
      %p281 = pneg %p40
      %p282 = pneg %p37
      %p283 = scmp.lt.s32.totalorder %s19, 1
      %s284 = scalar_select %p283, %s19, 1
      %s285 = smul.addr %s284, 3
      %s286 = smul.addr %s285, 4
      %s287 = scalar_lea.vmem %s1, %s286
      %p288 = pneg %p66
      %p289 = pneg %p63
      %p290 = pneg %p87
      %p291 = pneg %p84
      %p292 = pneg %p108
      %p293 = pneg %p105
      %p294 = pneg %p129
      %p295 = pneg %p126
      %p296 = pneg %p150
      %p297 = pneg %p147
      %p298 = pneg %p171
      %p299 = pneg %p168
      %p300 = pneg %p192
      %p301 = pneg %p189
      %p302 = pneg %p218
      %p303 = pneg %p215
      %p304 = scmp.lt.s32.totalorder %s19, 1
      %s305 = scalar_select %p304, %s19, 1
      %s306 = smul.addr %s305, 3
      %s307 = smul.addr %s306, 4
      %s308 = scalar_lea.vmem %s8, %s307
      %p309 = scmp.lt.s32.totalorder %s19, 1
      %s310 = scalar_select %p309, %s19, 1
      %s311 = smul.addr %s310, 4
      %s312 = scalar_lea.vmem %s0, %s311
      %p313 = scmp.lt.s32.totalorder %s19, 1
      %s314 = scalar_select %p313, %s19, 1
      %s315 = smul.addr %s314, 3
      %s316 = smul.addr %s315, 4
      %s317 = scalar_lea.vmem %s1, %s316
      %p318 = scmp.lt.s32.totalorder %s19, 1
      %s319 = scalar_select %p318, %s19, 1
      %s320 = smul.addr %s319, 3
      %s321 = smul.addr %s320, 4
      %s322 = scalar_lea.vmem %s8, %s321
      %v323 = vld [vmem:[%s317] sm:$0xff]
      %v324 = vld [vmem:[%s317 + $0x8] sm:$0xf]
      %v326 = vcombine.high %v323, %v323
      %328 = vst [vmem:[#allocation2] sm:$0xf] %v323
      %329 = vst [vmem:[#allocation2 + $0x8] sm:$0xf] %v326
      %vm330 = vcmask 568320
      %331 = vst.msk [vmem:[#allocation2 + $0x10] sm:$0xf] %vm330, %v324
      %v332 = vld [vmem:[%s312] sm:$0xf]
      %v333 = vld [vmem:[%s2] sm:$0xff]
      %v334 = vld [vmem:[%s2 + $0x8] sm:$0xff]
      %v335 = vld [vmem:[%s2 + $0x10] sm:$0xff]
      %v336 = vld [vmem:[%s2 + $0x18] sm:$0xff]
      %v337 = vld [vmem:[%s2 + $0x20] sm:$0xff]
      %v338 = vld [vmem:[%s2 + $0x28] sm:$0xff]
      %v339 = vld [vmem:[%s2 + $0x30] sm:$0xff]
      %v340 = vld [vmem:[%s2 + $0x38] sm:$0xff]
      %v341 = vld [vmem:[%s2 + $0x40] sm:$0xff]
      %v342 = vld [vmem:[%s2 + $0x48] sm:$0xff]
      %v343 = vld [vmem:[%s2 + $0x50] sm:$0xff]
      %v344 = vld [vmem:[%s2 + $0x58] sm:$0xff]
      %v345 = vld [vmem:[%s2 + $0x60] sm:$0xff]
      %v346 = vld [vmem:[%s2 + $0x68] sm:$0xff]
      %v347 = vld [vmem:[%s2 + $0x70] sm:$0xff]
      %v348 = vld [vmem:[%s2 + $0x78] sm:$0xff]
      %v349 = vld [vmem:[%s2 + $0x80] sm:$0xff]
      %v350 = vld [vmem:[%s2 + $0x88] sm:$0xff]
      %v351 = vld [vmem:[%s2 + $0x90] sm:$0xff]
      %v352 = vld [vmem:[%s2 + $0x98] sm:$0xff]
      %v353 = vld [vmem:[%s2 + $0xa0] sm:$0xff]
      %v354 = vld [vmem:[%s2 + $0xa8] sm:$0xff]
      %v355 = vld [vmem:[%s2 + $0xb0] sm:$0xff]
      %v356 = vld [vmem:[%s2 + $0xb8] sm:$0xff]
      %vm357 = vcmask 523264
      %v359 = vsel %vm357, %v332, 0
      %361 = vmatprep.subr.mxu0 %v334
      %362 = vmatpush1.msra.mxu0 %v333
      %363 = vmatprep.subr.mxu0 %v337
      %364 = vmatpush1.msra.mxu0 %v336
      %365 = vmatprep.subr.mxu0 %v340
      %366 = vmatpush1.msra.mxu0 %v339
      %367 = vmatprep.subr.mxu0 %v343
      %368 = vmatpush1.msra.mxu0 %v342
      %369 = vmatprep.subr.mxu0 %v346
      %370 = vmatpush1.msra.mxu0 %v345
      %371 = vmatprep.subr.mxu0 %v349
      %372 = vmatpush1.msra.mxu0 %v348
      %373 = vmatprep.subr.mxu0 %v352
      %374 = vmatpush1.msra.mxu0 %v351
      %375 = vmatprep.subr.mxu0 %v355
      %376 = vmatpush1.msra.mxu0 %v354
      %377 = vmatprep.subr.mxu0 0.0
      %378 = vmatpush1.msra.mxu0 0.0
      %379 = vmatprep.subr.mxu0 0.0
      %380 = vmatpush1.msra.mxu0 0.0
      %381 = vmatprep.subr.mxu0 0.0
      %382 = vmatpush1.msra.mxu0 0.0
      %383 = vmatprep.subr.mxu0 0.0
      %384 = vmatpush1.msra.mxu0 0.0
      %385 = vmatprep.subr.mxu0 0.0
      %386 = vmatpush1.msra.mxu0 0.0
      %387 = vmatprep.subr.mxu0 0.0
      %388 = vmatpush1.msra.mxu0 0.0
      %389 = vmatprep.subr.mxu0 0.0
      %390 = vmatpush1.msra.mxu0 0.0
      %391 = vmatprep.subr.mxu0 0.0
      %392 = vmatpush1.msra.mxu0 0.0
      %393 = vmatprep.subr.mxu0 0.0
      %394 = vmatpush1.msra.mxu0 0.0
      %395 = vmatprep.subr.mxu0 0.0
      %396 = vmatpush1.msra.mxu0 0.0
      %397 = vmatprep.subr.mxu0 0.0
      %398 = vmatpush1.msra.mxu0 0.0
      %399 = vmatprep.subr.mxu0 0.0
      %400 = vmatpush1.msra.mxu0 0.0
      %401 = vmatprep.subr.mxu0 0.0
      %402 = vmatpush1.msra.mxu0 0.0
      %403 = vmatprep.subr.mxu0 0.0
      %404 = vmatpush1.msra.mxu0 0.0
      %405 = vmatprep.subr.mxu0 0.0
      %406 = vmatpush1.msra.mxu0 0.0
      %407 = vmatprep.subr.mxu0 0.0
      %408 = vmatpush1.msra.mxu0 0.0
      %409 = vmatprep.subr.mxu0 0.0
      %410 = vmatpush1.msra.mxu0 0.0
      %411 = vmatprep.subr.mxu0 0.0
      %412 = vmatpush1.msra.mxu0 0.0
      %413 = vmatprep.subr.mxu0 0.0
      %414 = vmatpush1.msra.mxu0 0.0
      %415 = vmatprep.subr.mxu0 0.0
      %416 = vmatpush1.msra.mxu0 0.0
      %417 = vmatprep.subr.mxu0 0.0
      %418 = vmatpush1.msra.mxu0 0.0
      %419 = vmatprep.subr.mxu0 0.0
      %420 = vmatpush1.msra.mxu0 0.0
      %421 = vmatprep.subr.mxu0 0.0
      %422 = vmatpush1.msra.mxu0 0.0
      %423 = vmatprep.subr.mxu0 0.0
      %424 = vmatpush1.msra.mxu0 0.0
      %425 = vmatprep.mubr.f32.mxu0 0.0
      %426 = vmatmul.mubr.f32.gmra.mrb[0].mxu0 %v359
      %v427 = vpop.f32.mrb[0].mxu0
      %v428 = vadd.f32 0.0, %v427
      %v429 = vpop.f32.mrb[0].mxu0
      %v430 = vadd.f32 0.0, %v429
      %431 = vdwg.mxu0
      %432 = vmatprep.subr.mxu0 0.0
      %433 = vmatpush1.msra.mxu0 %v335
      %434 = vmatprep.subr.mxu0 0.0
      %435 = vmatpush1.msra.mxu0 %v338
      %436 = vmatprep.subr.mxu0 0.0
      %437 = vmatpush1.msra.mxu0 %v341
      %438 = vmatprep.subr.mxu0 0.0
      %439 = vmatpush1.msra.mxu0 %v344
      %440 = vmatprep.subr.mxu0 0.0
      %441 = vmatpush1.msra.mxu0 %v347
      %442 = vmatprep.subr.mxu0 0.0
      %443 = vmatpush1.msra.mxu0 %v350
      %444 = vmatprep.subr.mxu0 0.0
      %445 = vmatpush1.msra.mxu0 %v353
      %446 = vmatprep.subr.mxu0 0.0
      %447 = vmatpush1.msra.mxu0 %v356
      %448 = vmatprep.subr.mxu0 0.0
      %449 = vmatpush1.msra.mxu0 0.0
      %450 = vmatprep.subr.mxu0 0.0
      %451 = vmatpush1.msra.mxu0 0.0
      %452 = vmatprep.subr.mxu0 0.0
      %453 = vmatpush1.msra.mxu0 0.0
      %454 = vmatprep.subr.mxu0 0.0
      %455 = vmatpush1.msra.mxu0 0.0
      %456 = vmatprep.subr.mxu0 0.0
      %457 = vmatpush1.msra.mxu0 0.0
      %458 = vmatprep.subr.mxu0 0.0
      %459 = vmatpush1.msra.mxu0 0.0
      %460 = vmatprep.subr.mxu0 0.0
      %461 = vmatpush1.msra.mxu0 0.0
      %462 = vmatprep.subr.mxu0 0.0
      %463 = vmatpush1.msra.mxu0 0.0
      %464 = vmatprep.subr.mxu0 0.0
      %465 = vmatpush1.msra.mxu0 0.0
      %466 = vmatprep.subr.mxu0 0.0
      %467 = vmatpush1.msra.mxu0 0.0
      %468 = vmatprep.subr.mxu0 0.0
      %469 = vmatpush1.msra.mxu0 0.0
      %470 = vmatprep.subr.mxu0 0.0
      %471 = vmatpush1.msra.mxu0 0.0
      %472 = vmatprep.subr.mxu0 0.0
      %473 = vmatpush1.msra.mxu0 0.0
      %474 = vmatprep.subr.mxu0 0.0
      %475 = vmatpush1.msra.mxu0 0.0
      %476 = vmatprep.subr.mxu0 0.0
      %477 = vmatpush1.msra.mxu0 0.0
      %478 = vmatprep.subr.mxu0 0.0
      %479 = vmatpush1.msra.mxu0 0.0
      %480 = vmatprep.subr.mxu0 0.0
      %481 = vmatpush1.msra.mxu0 0.0
      %482 = vmatprep.subr.mxu0 0.0
      %483 = vmatpush1.msra.mxu0 0.0
      %484 = vmatprep.subr.mxu0 0.0
      %485 = vmatpush1.msra.mxu0 0.0
      %486 = vmatprep.subr.mxu0 0.0
      %487 = vmatpush1.msra.mxu0 0.0
      %488 = vmatprep.subr.mxu0 0.0
      %489 = vmatpush1.msra.mxu0 0.0
      %490 = vmatprep.subr.mxu0 0.0
      %491 = vmatpush1.msra.mxu0 0.0
      %492 = vmatprep.subr.mxu0 0.0
      %493 = vmatpush1.msra.mxu0 0.0
      %494 = vmatprep.subr.mxu0 0.0
      %495 = vmatpush1.msra.mxu0 0.0
      %496 = vmatprep.mubr.f32.mxu0 0.0
      %497 = vmatmul.mubr.f32.gmra.mrb[0].mxu0 %v359
      %v498 = vpop.f32.mrb[0].mxu0
      %v499 = vadd.f32 0.0, %v498
      %v500 = vpop.f32.mrb[0].mxu0
      %501 = vdwg.mxu0
      %v505 = vrot.slane %v428, 4
      %v506 = vrot.slane %v430, 4
      %v507 = vrot.slane %v499, 4
      %511 = vst [vmem:[#allocation2] sm:$0xf0] %v505
      %512 = vst [vmem:[#allocation2 + $0x8] sm:$0xf0] %v506
      %vm513 = vcmask 572420
      %514 = vst.msk [vmem:[#allocation2 + $0x10] sm:$0xf0] %vm513, %v507
      %v515 = vld [vmem:[%s3] sm:$0xf]
      %v516 = vld [vmem:[#allocation2] sm:$0xff]
      %v517 = vld [vmem:[#allocation2 + $0x8] sm:$0xff]
      %v518 = vld [vmem:[#allocation2 + $0x10] sm:$0xff]
      %s519 = scalar_lea.vmem %s3, 4
      %v520 = vld [vmem:[%s519] sm:$0xf]
      %524 = vrot.lane.b32.xlu0 %v516, 127
      %v525 = vpop.permute.xlu0 %524
      %526 = vrot.lane.b32.xlu0 %v517, 127
      %v527 = vpop.permute.xlu0 %526
      %528 = vrot.lane.b32.xlu0 %v518, 127
      %v529 = vpop.permute.xlu0 %528
      %vm530 = vcmask 1039360
      %v531 = vsel %vm530, %v525, %v527
      %v532 = vsel %vm530, %v527, %v529
      %vm536 = vcmask 64512
      %v538 = vsel %vm536, %v520, 0
      %540 = vmatprep.subr.mxu0 %v532
      %541 = vmatpush1.msra.mxu0 %v531
      %542 = vmatprep.subr.mxu0 0.0
      %543 = vmatpush1.msra.mxu0 0.0
      %544 = vmatprep.subr.mxu0 0.0
      %545 = vmatpush1.msra.mxu0 0.0
      %546 = vmatprep.subr.mxu0 0.0
      %547 = vmatpush1.msra.mxu0 0.0
      %548 = vmatprep.subr.mxu0 0.0
      %549 = vmatpush1.msra.mxu0 0.0
      %550 = vmatprep.subr.mxu0 0.0
      %551 = vmatpush1.msra.mxu0 0.0
      %552 = vmatprep.subr.mxu0 0.0
      %553 = vmatpush1.msra.mxu0 0.0
      %554 = vmatprep.subr.mxu0 0.0
      %555 = vmatpush1.msra.mxu0 0.0
      %556 = vmatprep.subr.mxu0 0.0
      %557 = vmatpush1.msra.mxu0 0.0
      %558 = vmatprep.subr.mxu0 0.0
      %559 = vmatpush1.msra.mxu0 0.0
      %560 = vmatprep.subr.mxu0 0.0
      %561 = vmatpush1.msra.mxu0 0.0
      %562 = vmatprep.subr.mxu0 0.0
      %563 = vmatpush1.msra.mxu0 0.0
      %564 = vmatprep.subr.mxu0 0.0
      %565 = vmatpush1.msra.mxu0 0.0
      %566 = vmatprep.subr.mxu0 0.0
      %567 = vmatpush1.msra.mxu0 0.0
      %568 = vmatprep.subr.mxu0 0.0
      %569 = vmatpush1.msra.mxu0 0.0
      %570 = vmatprep.subr.mxu0 0.0
      %571 = vmatpush1.msra.mxu0 0.0
      %572 = vmatprep.subr.mxu0 0.0
      %573 = vmatpush1.msra.mxu0 0.0
      %574 = vmatprep.subr.mxu0 0.0
      %575 = vmatpush1.msra.mxu0 0.0
      %576 = vmatprep.subr.mxu0 0.0
      %577 = vmatpush1.msra.mxu0 0.0
      %578 = vmatprep.subr.mxu0 0.0
      %579 = vmatpush1.msra.mxu0 0.0
      %580 = vmatprep.subr.mxu0 0.0
      %581 = vmatpush1.msra.mxu0 0.0
      %582 = vmatprep.subr.mxu0 0.0
      %583 = vmatpush1.msra.mxu0 0.0
      %584 = vmatprep.subr.mxu0 0.0
      %585 = vmatpush1.msra.mxu0 0.0
      %586 = vmatprep.subr.mxu0 0.0
      %587 = vmatpush1.msra.mxu0 0.0
      %588 = vmatprep.subr.mxu0 0.0
      %589 = vmatpush1.msra.mxu0 0.0
      %590 = vmatprep.subr.mxu0 0.0
      %591 = vmatpush1.msra.mxu0 0.0
      %592 = vmatprep.subr.mxu0 0.0
      %593 = vmatpush1.msra.mxu0 0.0
      %594 = vmatprep.subr.mxu0 0.0
      %595 = vmatpush1.msra.mxu0 0.0
      %596 = vmatprep.subr.mxu0 0.0
      %597 = vmatpush1.msra.mxu0 0.0
      %598 = vmatprep.subr.mxu0 0.0
      %599 = vmatpush1.msra.mxu0 0.0
      %600 = vmatprep.subr.mxu0 0.0
      %601 = vmatpush1.msra.mxu0 0.0
      %602 = vmatprep.subr.mxu0 0.0
      %603 = vmatpush1.msra.mxu0 0.0
      %604 = vmatprep.mubr.f32.mxu0 0.0
      %605 = vmatmul.mubr.f32.gmra.mrb[0].mxu0 %v538
      %v606 = vpop.f32.mrb[0].mxu0
      %v607 = vadd.f32 0.0, %v606
      %v608 = vpop.f32.mrb[0].mxu0
      %v609 = vadd.f32 0.0, %v608
      %610 = vdwg.mxu0
      %611 = vmatprep.subr.mxu0 0.0
      %612 = vmatpush1.msra.mxu0 %v529
      %613 = vmatprep.subr.mxu0 0.0
      %614 = vmatpush1.msra.mxu0 0.0
      %615 = vmatprep.subr.mxu0 0.0
      %616 = vmatpush1.msra.mxu0 0.0
      %617 = vmatprep.subr.mxu0 0.0
      %618 = vmatpush1.msra.mxu0 0.0
      %619 = vmatprep.subr.mxu0 0.0
      %620 = vmatpush1.msra.mxu0 0.0
      %621 = vmatprep.subr.mxu0 0.0
      %622 = vmatpush1.msra.mxu0 0.0
      %623 = vmatprep.subr.mxu0 0.0
      %624 = vmatpush1.msra.mxu0 0.0
      %625 = vmatprep.subr.mxu0 0.0
      %626 = vmatpush1.msra.mxu0 0.0
      %627 = vmatprep.subr.mxu0 0.0
      %628 = vmatpush1.msra.mxu0 0.0
      %629 = vmatprep.subr.mxu0 0.0
      %630 = vmatpush1.msra.mxu0 0.0
      %631 = vmatprep.subr.mxu0 0.0
      %632 = vmatpush1.msra.mxu0 0.0
      %633 = vmatprep.subr.mxu0 0.0
      %634 = vmatpush1.msra.mxu0 0.0
      %635 = vmatprep.subr.mxu0 0.0
      %636 = vmatpush1.msra.mxu0 0.0
      %637 = vmatprep.subr.mxu0 0.0
      %638 = vmatpush1.msra.mxu0 0.0
      %639 = vmatprep.subr.mxu0 0.0
      %640 = vmatpush1.msra.mxu0 0.0
      %641 = vmatprep.subr.mxu0 0.0
      %642 = vmatpush1.msra.mxu0 0.0
      %643 = vmatprep.subr.mxu0 0.0
      %644 = vmatpush1.msra.mxu0 0.0
      %645 = vmatprep.subr.mxu0 0.0
      %646 = vmatpush1.msra.mxu0 0.0
      %647 = vmatprep.subr.mxu0 0.0
      %648 = vmatpush1.msra.mxu0 0.0
      %649 = vmatprep.subr.mxu0 0.0
      %650 = vmatpush1.msra.mxu0 0.0
      %651 = vmatprep.subr.mxu0 0.0
      %652 = vmatpush1.msra.mxu0 0.0
      %653 = vmatprep.subr.mxu0 0.0
      %654 = vmatpush1.msra.mxu0 0.0
      %655 = vmatprep.subr.mxu0 0.0
      %656 = vmatpush1.msra.mxu0 0.0
      %657 = vmatprep.subr.mxu0 0.0
      %658 = vmatpush1.msra.mxu0 0.0
      %659 = vmatprep.subr.mxu0 0.0
      %660 = vmatpush1.msra.mxu0 0.0
      %661 = vmatprep.subr.mxu0 0.0
      %662 = vmatpush1.msra.mxu0 0.0
      %663 = vmatprep.subr.mxu0 0.0
      %664 = vmatpush1.msra.mxu0 0.0
      %665 = vmatprep.subr.mxu0 0.0
      %666 = vmatpush1.msra.mxu0 0.0
      %667 = vmatprep.subr.mxu0 0.0
      %668 = vmatpush1.msra.mxu0 0.0
      %669 = vmatprep.subr.mxu0 0.0
      %670 = vmatpush1.msra.mxu0 0.0
      %671 = vmatprep.subr.mxu0 0.0
      %672 = vmatpush1.msra.mxu0 0.0
      %673 = vmatprep.subr.mxu0 0.0
      %674 = vmatpush1.msra.mxu0 0.0
      %675 = vmatprep.mubr.f32.mxu0 0.0
      %676 = vmatmul.mubr.f32.gmra.mrb[0].mxu0 %v538
      %v677 = vpop.f32.mrb[0].mxu0
      %v678 = vadd.f32 0.0, %v677
      %v679 = vpop.f32.mrb[0].mxu0
      %680 = vdwg.mxu0
      %v682 = vsel %vm536, %v515, 0
      %684 = vmatprep.subr.mxu0 %v517
      %685 = vmatpush1.msra.mxu0 %v516
      %686 = vmatprep.subr.mxu0 0.0
      %687 = vmatpush1.msra.mxu0 0.0
      %688 = vmatprep.subr.mxu0 0.0
      %689 = vmatpush1.msra.mxu0 0.0
      %690 = vmatprep.subr.mxu0 0.0
      %691 = vmatpush1.msra.mxu0 0.0
      %692 = vmatprep.subr.mxu0 0.0
      %693 = vmatpush1.msra.mxu0 0.0
      %694 = vmatprep.subr.mxu0 0.0
      %695 = vmatpush1.msra.mxu0 0.0
      %696 = vmatprep.subr.mxu0 0.0
      %697 = vmatpush1.msra.mxu0 0.0
      %698 = vmatprep.subr.mxu0 0.0
      %699 = vmatpush1.msra.mxu0 0.0
      %700 = vmatprep.subr.mxu0 0.0
      %701 = vmatpush1.msra.mxu0 0.0
      %702 = vmatprep.subr.mxu0 0.0
      %703 = vmatpush1.msra.mxu0 0.0
      %704 = vmatprep.subr.mxu0 0.0
      %705 = vmatpush1.msra.mxu0 0.0
      %706 = vmatprep.subr.mxu0 0.0
      %707 = vmatpush1.msra.mxu0 0.0
      %708 = vmatprep.subr.mxu0 0.0
      %709 = vmatpush1.msra.mxu0 0.0
      %710 = vmatprep.subr.mxu0 0.0
      %711 = vmatpush1.msra.mxu0 0.0
      %712 = vmatprep.subr.mxu0 0.0
      %713 = vmatpush1.msra.mxu0 0.0
      %714 = vmatprep.subr.mxu0 0.0
      %715 = vmatpush1.msra.mxu0 0.0
      %716 = vmatprep.subr.mxu0 0.0
      %717 = vmatpush1.msra.mxu0 0.0
      %718 = vmatprep.subr.mxu0 0.0
      %719 = vmatpush1.msra.mxu0 0.0
      %720 = vmatprep.subr.mxu0 0.0
      %721 = vmatpush1.msra.mxu0 0.0
      %722 = vmatprep.subr.mxu0 0.0
      %723 = vmatpush1.msra.mxu0 0.0
      %724 = vmatprep.subr.mxu0 0.0
      %725 = vmatpush1.msra.mxu0 0.0
      %726 = vmatprep.subr.mxu0 0.0
      %727 = vmatpush1.msra.mxu0 0.0
      %728 = vmatprep.subr.mxu0 0.0
      %729 = vmatpush1.msra.mxu0 0.0
      %730 = vmatprep.subr.mxu0 0.0
      %731 = vmatpush1.msra.mxu0 0.0
      %732 = vmatprep.subr.mxu0 0.0
      %733 = vmatpush1.msra.mxu0 0.0
      %734 = vmatprep.subr.mxu0 0.0
      %735 = vmatpush1.msra.mxu0 0.0
      %736 = vmatprep.subr.mxu0 0.0
      %737 = vmatpush1.msra.mxu0 0.0
      %738 = vmatprep.subr.mxu0 0.0
      %739 = vmatpush1.msra.mxu0 0.0
      %740 = vmatprep.subr.mxu0 0.0
      %741 = vmatpush1.msra.mxu0 0.0
      %742 = vmatprep.subr.mxu0 0.0
      %743 = vmatpush1.msra.mxu0 0.0
      %744 = vmatprep.subr.mxu0 0.0
      %745 = vmatpush1.msra.mxu0 0.0
      %746 = vmatprep.subr.mxu0 0.0
      %747 = vmatpush1.msra.mxu0 0.0
      %748 = vmatprep.mubr.f32.mxu0 0.0
      %749 = vmatmul.mubr.f32.gmra.mrb[0].mxu0 %v682
      %v750 = vpop.f32.mrb[0].mxu0
      %v751 = vadd.f32 %v607, %v750
      %v752 = vpop.f32.mrb[0].mxu0
      %v753 = vadd.f32 %v609, %v752
      %754 = vdwg.mxu0
      %755 = vmatprep.subr.mxu0 0.0
      %756 = vmatpush1.msra.mxu0 %v518
      %757 = vmatprep.subr.mxu0 0.0
      %758 = vmatpush1.msra.mxu0 0.0
      %759 = vmatprep.subr.mxu0 0.0
      %760 = vmatpush1.msra.mxu0 0.0
      %761 = vmatprep.subr.mxu0 0.0
      %762 = vmatpush1.msra.mxu0 0.0
      %763 = vmatprep.subr.mxu0 0.0
      %764 = vmatpush1.msra.mxu0 0.0
      %765 = vmatprep.subr.mxu0 0.0
      %766 = vmatpush1.msra.mxu0 0.0
      %767 = vmatprep.subr.mxu0 0.0
      %768 = vmatpush1.msra.mxu0 0.0
      %769 = vmatprep.subr.mxu0 0.0
      %770 = vmatpush1.msra.mxu0 0.0
      %771 = vmatprep.subr.mxu0 0.0
      %772 = vmatpush1.msra.mxu0 0.0
      %773 = vmatprep.subr.mxu0 0.0
      %774 = vmatpush1.msra.mxu0 0.0
      %775 = vmatprep.subr.mxu0 0.0
      %776 = vmatpush1.msra.mxu0 0.0
      %777 = vmatprep.subr.mxu0 0.0
      %778 = vmatpush1.msra.mxu0 0.0
      %779 = vmatprep.subr.mxu0 0.0
      %780 = vmatpush1.msra.mxu0 0.0
      %781 = vmatprep.subr.mxu0 0.0
      %782 = vmatpush1.msra.mxu0 0.0
      %783 = vmatprep.subr.mxu0 0.0
      %784 = vmatpush1.msra.mxu0 0.0
      %785 = vmatprep.subr.mxu0 0.0
      %786 = vmatpush1.msra.mxu0 0.0
      %787 = vmatprep.subr.mxu0 0.0
      %788 = vmatpush1.msra.mxu0 0.0
      %789 = vmatprep.subr.mxu0 0.0
      %790 = vmatpush1.msra.mxu0 0.0
      %791 = vmatprep.subr.mxu0 0.0
      %792 = vmatpush1.msra.mxu0 0.0
      %793 = vmatprep.subr.mxu0 0.0
      %794 = vmatpush1.msra.mxu0 0.0
      %795 = vmatprep.subr.mxu0 0.0
      %796 = vmatpush1.msra.mxu0 0.0
      %797 = vmatprep.subr.mxu0 0.0
      %798 = vmatpush1.msra.mxu0 0.0
      %799 = vmatprep.subr.mxu0 0.0
      %800 = vmatpush1.msra.mxu0 0.0
      %801 = vmatprep.subr.mxu0 0.0
      %802 = vmatpush1.msra.mxu0 0.0
      %803 = vmatprep.subr.mxu0 0.0
      %804 = vmatpush1.msra.mxu0 0.0
      %805 = vmatprep.subr.mxu0 0.0
      %806 = vmatpush1.msra.mxu0 0.0
      %807 = vmatprep.subr.mxu0 0.0
      %808 = vmatpush1.msra.mxu0 0.0
      %809 = vmatprep.subr.mxu0 0.0
      %810 = vmatpush1.msra.mxu0 0.0
      %811 = vmatprep.subr.mxu0 0.0
      %812 = vmatpush1.msra.mxu0 0.0
      %813 = vmatprep.subr.mxu0 0.0
      %814 = vmatpush1.msra.mxu0 0.0
      %815 = vmatprep.subr.mxu0 0.0
      %816 = vmatpush1.msra.mxu0 0.0
      %817 = vmatprep.subr.mxu0 0.0
      %818 = vmatpush1.msra.mxu0 0.0
      %819 = vmatprep.mubr.f32.mxu0 0.0
      %820 = vmatmul.mubr.f32.gmra.mrb[0].mxu0 %v682
      %v821 = vpop.f32.mrb[0].mxu0
      %v822 = vadd.f32 %v678, %v821
      %v823 = vpop.f32.mrb[0].mxu0
      %824 = vdwg.mxu0
      %s825 = scalar_lea.vmem %s3, 8
      %v826 = vld [vmem:[%s825] sm:$0xf]
      %827 = vrot.lane.b32.xlu0 %v516, 126
      %v828 = vpop.permute.xlu0 %827
      %829 = vrot.lane.b32.xlu0 %v517, 126
      %v830 = vpop.permute.xlu0 %829
      %831 = vrot.lane.b32.xlu0 %v518, 126
      %v832 = vpop.permute.xlu0 %831
      %vm833 = vcmask 1031168
      %v834 = vsel %vm833, %v828, %v830
      %v835 = vsel %vm833, %v830, %v832
      %v840 = vsel %vm536, %v826, 0
      %842 = vmatprep.subr.mxu0 %v835
      %843 = vmatpush1.msra.mxu0 %v834
      %844 = vmatprep.subr.mxu0 0.0
      %845 = vmatpush1.msra.mxu0 0.0
      %846 = vmatprep.subr.mxu0 0.0
      %847 = vmatpush1.msra.mxu0 0.0
      %848 = vmatprep.subr.mxu0 0.0
      %849 = vmatpush1.msra.mxu0 0.0
      %850 = vmatprep.subr.mxu0 0.0
      %851 = vmatpush1.msra.mxu0 0.0
      %852 = vmatprep.subr.mxu0 0.0
      %853 = vmatpush1.msra.mxu0 0.0
      %854 = vmatprep.subr.mxu0 0.0
      %855 = vmatpush1.msra.mxu0 0.0
      %856 = vmatprep.subr.mxu0 0.0
      %857 = vmatpush1.msra.mxu0 0.0
      %858 = vmatprep.subr.mxu0 0.0
      %859 = vmatpush1.msra.mxu0 0.0
      %860 = vmatprep.subr.mxu0 0.0
      %861 = vmatpush1.msra.mxu0 0.0
      %862 = vmatprep.subr.mxu0 0.0
      %863 = vmatpush1.msra.mxu0 0.0
      %864 = vmatprep.subr.mxu0 0.0
      %865 = vmatpush1.msra.mxu0 0.0
      %866 = vmatprep.subr.mxu0 0.0
      %867 = vmatpush1.msra.mxu0 0.0
      %868 = vmatprep.subr.mxu0 0.0
      %869 = vmatpush1.msra.mxu0 0.0
      %870 = vmatprep.subr.mxu0 0.0
      %871 = vmatpush1.msra.mxu0 0.0
      %872 = vmatprep.subr.mxu0 0.0
      %873 = vmatpush1.msra.mxu0 0.0
      %874 = vmatprep.subr.mxu0 0.0
      %875 = vmatpush1.msra.mxu0 0.0
      %876 = vmatprep.subr.mxu0 0.0
      %877 = vmatpush1.msra.mxu0 0.0
      %878 = vmatprep.subr.mxu0 0.0
      %879 = vmatpush1.msra.mxu0 0.0
      %880 = vmatprep.subr.mxu0 0.0
      %881 = vmatpush1.msra.mxu0 0.0
      %882 = vmatprep.subr.mxu0 0.0
      %883 = vmatpush1.msra.mxu0 0.0
      %884 = vmatprep.subr.mxu0 0.0
      %885 = vmatpush1.msra.mxu0 0.0
      %886 = vmatprep.subr.mxu0 0.0
      %887 = vmatpush1.msra.mxu0 0.0
      %888 = vmatprep.subr.mxu0 0.0
      %889 = vmatpush1.msra.mxu0 0.0
      %890 = vmatprep.subr.mxu0 0.0
      %891 = vmatpush1.msra.mxu0 0.0
      %892 = vmatprep.subr.mxu0 0.0
      %893 = vmatpush1.msra.mxu0 0.0
      %894 = vmatprep.subr.mxu0 0.0
      %895 = vmatpush1.msra.mxu0 0.0
      %896 = vmatprep.subr.mxu0 0.0
      %897 = vmatpush1.msra.mxu0 0.0
      %898 = vmatprep.subr.mxu0 0.0
      %899 = vmatpush1.msra.mxu0 0.0
      %900 = vmatprep.subr.mxu0 0.0
      %901 = vmatpush1.msra.mxu0 0.0
      %902 = vmatprep.subr.mxu0 0.0
      %903 = vmatpush1.msra.mxu0 0.0
      %904 = vmatprep.subr.mxu0 0.0
      %905 = vmatpush1.msra.mxu0 0.0
      %906 = vmatprep.mubr.f32.mxu0 0.0
      %907 = vmatmul.mubr.f32.gmra.mrb[0].mxu0 %v840
      %v908 = vpop.f32.mrb[0].mxu0
      %v909 = vadd.f32 0.0, %v908
      %v910 = vpop.f32.mrb[0].mxu0
      %v911 = vadd.f32 0.0, %v910
      %912 = vdwg.mxu0
      %913 = vmatprep.subr.mxu0 0.0
      %914 = vmatpush1.msra.mxu0 %v832
      %915 = vmatprep.subr.mxu0 0.0
      %916 = vmatpush1.msra.mxu0 0.0
      %917 = vmatprep.subr.mxu0 0.0
      %918 = vmatpush1.msra.mxu0 0.0
      %919 = vmatprep.subr.mxu0 0.0
      %920 = vmatpush1.msra.mxu0 0.0
      %921 = vmatprep.subr.mxu0 0.0
      %922 = vmatpush1.msra.mxu0 0.0
      %923 = vmatprep.subr.mxu0 0.0
      %924 = vmatpush1.msra.mxu0 0.0
      %925 = vmatprep.subr.mxu0 0.0
      %926 = vmatpush1.msra.mxu0 0.0
      %927 = vmatprep.subr.mxu0 0.0
      %928 = vmatpush1.msra.mxu0 0.0
      %929 = vmatprep.subr.mxu0 0.0
      %930 = vmatpush1.msra.mxu0 0.0
      %931 = vmatprep.subr.mxu0 0.0
      %932 = vmatpush1.msra.mxu0 0.0
      %933 = vmatprep.subr.mxu0 0.0
      %934 = vmatpush1.msra.mxu0 0.0
      %935 = vmatprep.subr.mxu0 0.0
      %936 = vmatpush1.msra.mxu0 0.0
      %937 = vmatprep.subr.mxu0 0.0
      %938 = vmatpush1.msra.mxu0 0.0
      %939 = vmatprep.subr.mxu0 0.0
      %940 = vmatpush1.msra.mxu0 0.0
      %941 = vmatprep.subr.mxu0 0.0
      %942 = vmatpush1.msra.mxu0 0.0
      %943 = vmatprep.subr.mxu0 0.0
      %944 = vmatpush1.msra.mxu0 0.0
      %945 = vmatprep.subr.mxu0 0.0
      %946 = vmatpush1.msra.mxu0 0.0
      %947 = vmatprep.subr.mxu0 0.0
      %948 = vmatpush1.msra.mxu0 0.0
      %949 = vmatprep.subr.mxu0 0.0
      %950 = vmatpush1.msra.mxu0 0.0
      %951 = vmatprep.subr.mxu0 0.0
      %952 = vmatpush1.msra.mxu0 0.0
      %953 = vmatprep.subr.mxu0 0.0
      %954 = vmatpush1.msra.mxu0 0.0
      %955 = vmatprep.subr.mxu0 0.0
      %956 = vmatpush1.msra.mxu0 0.0
      %957 = vmatprep.subr.mxu0 0.0
      %958 = vmatpush1.msra.mxu0 0.0
      %959 = vmatprep.subr.mxu0 0.0
      %960 = vmatpush1.msra.mxu0 0.0
      %961 = vmatprep.subr.mxu0 0.0
      %962 = vmatpush1.msra.mxu0 0.0
      %963 = vmatprep.subr.mxu0 0.0
      %964 = vmatpush1.msra.mxu0 0.0
      %965 = vmatprep.subr.mxu0 0.0
      %966 = vmatpush1.msra.mxu0 0.0
      %967 = vmatprep.subr.mxu0 0.0
      %968 = vmatpush1.msra.mxu0 0.0
      %969 = vmatprep.subr.mxu0 0.0
      %970 = vmatpush1.msra.mxu0 0.0
      %971 = vmatprep.subr.mxu0 0.0
      %972 = vmatpush1.msra.mxu0 0.0
      %973 = vmatprep.subr.mxu0 0.0
      %974 = vmatpush1.msra.mxu0 0.0
      %975 = vmatprep.subr.mxu0 0.0
      %976 = vmatpush1.msra.mxu0 0.0
      %977 = vmatprep.mubr.f32.mxu0 0.0
      %978 = vmatmul.mubr.f32.gmra.mrb[0].mxu0 %v840
      %v979 = vpop.f32.mrb[0].mxu0
      %v980 = vadd.f32 0.0, %v979
      %v981 = vpop.f32.mrb[0].mxu0
      %982 = vdwg.mxu0
      %v983 = vadd.f32 %v751, %v909
      %v984 = vadd.f32 %v753, %v911
      %v985 = vadd.f32 %v822, %v980
      %s986 = scalar_lea.vmem %s3, 12
      %v987 = vld [vmem:[%s986] sm:$0xf]
      %988 = vrot.lane.b32.xlu0 %v516, 110
      %v989 = vpop.permute.xlu0 %988
      %990 = vrot.lane.b32.xlu0 %v517, 110
      %v991 = vpop.permute.xlu0 %990
      %992 = vrot.lane.b32.xlu0 %v518, 110
      %v993 = vpop.permute.xlu0 %992
      %vm994 = vcmask 900096
      %v995 = vsel %vm994, %v989, %v991
      %v996 = vsel %vm994, %v991, %v993
      %v1001 = vsel %vm536, %v987, 0
      %1003 = vmatprep.subr.mxu0 %v996
      %1004 = vmatpush1.msra.mxu0 %v995
      %1005 = vmatprep.subr.mxu0 0.0
      %1006 = vmatpush1.msra.mxu0 0.0
      %1007 = vmatprep.subr.mxu0 0.0
      %1008 = vmatpush1.msra.mxu0 0.0
      %1009 = vmatprep.subr.mxu0 0.0
      %1010 = vmatpush1.msra.mxu0 0.0
      %1011 = vmatprep.subr.mxu0 0.0
      %1012 = vmatpush1.msra.mxu0 0.0
      %1013 = vmatprep.subr.mxu0 0.0
      %1014 = vmatpush1.msra.mxu0 0.0
      %1015 = vmatprep.subr.mxu0 0.0
      %1016 = vmatpush1.msra.mxu0 0.0
      %1017 = vmatprep.subr.mxu0 0.0
      %1018 = vmatpush1.msra.mxu0 0.0
      %1019 = vmatprep.subr.mxu0 0.0
      %1020 = vmatpush1.msra.mxu0 0.0
      %1021 = vmatprep.subr.mxu0 0.0
      %1022 = vmatpush1.msra.mxu0 0.0
      %1023 = vmatprep.subr.mxu0 0.0
      %1024 = vmatpush1.msra.mxu0 0.0
      %1025 = vmatprep.subr.mxu0 0.0
      %1026 = vmatpush1.msra.mxu0 0.0
      %1027 = vmatprep.subr.mxu0 0.0
      %1028 = vmatpush1.msra.mxu0 0.0
      %1029 = vmatprep.subr.mxu0 0.0
      %1030 = vmatpush1.msra.mxu0 0.0
      %1031 = vmatprep.subr.mxu0 0.0
      %1032 = vmatpush1.msra.mxu0 0.0
      %1033 = vmatprep.subr.mxu0 0.0
      %1034 = vmatpush1.msra.mxu0 0.0
      %1035 = vmatprep.subr.mxu0 0.0
      %1036 = vmatpush1.msra.mxu0 0.0
      %1037 = vmatprep.subr.mxu0 0.0
      %1038 = vmatpush1.msra.mxu0 0.0
      %1039 = vmatprep.subr.mxu0 0.0
      %1040 = vmatpush1.msra.mxu0 0.0
      %1041 = vmatprep.subr.mxu0 0.0
      %1042 = vmatpush1.msra.mxu0 0.0
      %1043 = vmatprep.subr.mxu0 0.0
      %1044 = vmatpush1.msra.mxu0 0.0
      %1045 = vmatprep.subr.mxu0 0.0
      %1046 = vmatpush1.msra.mxu0 0.0
      %1047 = vmatprep.subr.mxu0 0.0
      %1048 = vmatpush1.msra.mxu0 0.0
      %1049 = vmatprep.subr.mxu0 0.0
      %1050 = vmatpush1.msra.mxu0 0.0
      %1051 = vmatprep.subr.mxu0 0.0
      %1052 = vmatpush1.msra.mxu0 0.0
      %1053 = vmatprep.subr.mxu0 0.0
      %1054 = vmatpush1.msra.mxu0 0.0
      %1055 = vmatprep.subr.mxu0 0.0
      %1056 = vmatpush1.msra.mxu0 0.0
      %1057 = vmatprep.subr.mxu0 0.0
      %1058 = vmatpush1.msra.mxu0 0.0
      %1059 = vmatprep.subr.mxu0 0.0
      %1060 = vmatpush1.msra.mxu0 0.0
      %1061 = vmatprep.subr.mxu0 0.0
      %1062 = vmatpush1.msra.mxu0 0.0
      %1063 = vmatprep.subr.mxu0 0.0
      %1064 = vmatpush1.msra.mxu0 0.0
      %1065 = vmatprep.subr.mxu0 0.0
      %1066 = vmatpush1.msra.mxu0 0.0
      %1067 = vmatprep.mubr.f32.mxu0 0.0
      %1068 = vmatmul.mubr.f32.gmra.mrb[0].mxu0 %v1001
      %v1069 = vpop.f32.mrb[0].mxu0
      %v1070 = vadd.f32 0.0, %v1069
      %v1071 = vpop.f32.mrb[0].mxu0
      %v1072 = vadd.f32 0.0, %v1071
      %1073 = vdwg.mxu0
      %1074 = vmatprep.subr.mxu0 0.0
      %1075 = vmatpush1.msra.mxu0 %v993
      %1076 = vmatprep.subr.mxu0 0.0
      %1077 = vmatpush1.msra.mxu0 0.0
      %1078 = vmatprep.subr.mxu0 0.0
      %1079 = vmatpush1.msra.mxu0 0.0
      %1080 = vmatprep.subr.mxu0 0.0
      %1081 = vmatpush1.msra.mxu0 0.0
      %1082 = vmatprep.subr.mxu0 0.0
      %1083 = vmatpush1.msra.mxu0 0.0
      %1084 = vmatprep.subr.mxu0 0.0
      %1085 = vmatpush1.msra.mxu0 0.0
      %1086 = vmatprep.subr.mxu0 0.0
      %1087 = vmatpush1.msra.mxu0 0.0
      %1088 = vmatprep.subr.mxu0 0.0
      %1089 = vmatpush1.msra.mxu0 0.0
      %1090 = vmatprep.subr.mxu0 0.0
      %1091 = vmatpush1.msra.mxu0 0.0
      %1092 = vmatprep.subr.mxu0 0.0
      %1093 = vmatpush1.msra.mxu0 0.0
      %1094 = vmatprep.subr.mxu0 0.0
      %1095 = vmatpush1.msra.mxu0 0.0
      %1096 = vmatprep.subr.mxu0 0.0
      %1097 = vmatpush1.msra.mxu0 0.0
      %1098 = vmatprep.subr.mxu0 0.0
      %1099 = vmatpush1.msra.mxu0 0.0
      %1100 = vmatprep.subr.mxu0 0.0
      %1101 = vmatpush1.msra.mxu0 0.0
      %1102 = vmatprep.subr.mxu0 0.0
      %1103 = vmatpush1.msra.mxu0 0.0
      %1104 = vmatprep.subr.mxu0 0.0
      %1105 = vmatpush1.msra.mxu0 0.0
      %1106 = vmatprep.subr.mxu0 0.0
      %1107 = vmatpush1.msra.mxu0 0.0
      %1108 = vmatprep.subr.mxu0 0.0
      %1109 = vmatpush1.msra.mxu0 0.0
      %1110 = vmatprep.subr.mxu0 0.0
      %1111 = vmatpush1.msra.mxu0 0.0
      %1112 = vmatprep.subr.mxu0 0.0
      %1113 = vmatpush1.msra.mxu0 0.0
      %1114 = vmatprep.subr.mxu0 0.0
      %1115 = vmatpush1.msra.mxu0 0.0
      %1116 = vmatprep.subr.mxu0 0.0
      %1117 = vmatpush1.msra.mxu0 0.0
      %1118 = vmatprep.subr.mxu0 0.0
      %1119 = vmatpush1.msra.mxu0 0.0
      %1120 = vmatprep.subr.mxu0 0.0
      %1121 = vmatpush1.msra.mxu0 0.0
      %1122 = vmatprep.subr.mxu0 0.0
      %1123 = vmatpush1.msra.mxu0 0.0
      %1124 = vmatprep.subr.mxu0 0.0
      %1125 = vmatpush1.msra.mxu0 0.0
      %1126 = vmatprep.subr.mxu0 0.0
      %1127 = vmatpush1.msra.mxu0 0.0
      %1128 = vmatprep.subr.mxu0 0.0
      %1129 = vmatpush1.msra.mxu0 0.0
      %1130 = vmatprep.subr.mxu0 0.0
      %1131 = vmatpush1.msra.mxu0 0.0
      %1132 = vmatprep.subr.mxu0 0.0
      %1133 = vmatpush1.msra.mxu0 0.0
      %1134 = vmatprep.subr.mxu0 0.0
      %1135 = vmatpush1.msra.mxu0 0.0
      %1136 = vmatprep.subr.mxu0 0.0
      %1137 = vmatpush1.msra.mxu0 0.0
      %1138 = vmatprep.mubr.f32.mxu0 0.0
      %1139 = vmatmul.mubr.f32.gmra.mrb[0].mxu0 %v1001
      %v1140 = vpop.f32.mrb[0].mxu0
      %v1141 = vadd.f32 0.0, %v1140
      %v1142 = vpop.f32.mrb[0].mxu0
      %1143 = vdwg.mxu0
      %v1144 = vadd.f32 %v983, %v1070
      %v1145 = vadd.f32 %v984, %v1072
      %v1146 = vadd.f32 %v985, %v1141
      %s1147 = scalar_lea.vmem %s3, 16
      %v1148 = vld [vmem:[%s1147] sm:$0xf]
      %1149 = vrot.lane.b32.xlu0 %v516, 109
      %v1150 = vpop.permute.xlu0 %1149
      %1151 = vrot.lane.b32.xlu0 %v517, 109
      %v1152 = vpop.permute.xlu0 %1151
      %1153 = vrot.lane.b32.xlu0 %v518, 109
      %v1154 = vpop.permute.xlu0 %1153
      %vm1155 = vcmask 891904
      %v1156 = vsel %vm1155, %v1150, %v1152
      %v1157 = vsel %vm1155, %v1152, %v1154
      %v1162 = vsel %vm536, %v1148, 0
      %1164 = vmatprep.subr.mxu0 %v1157
      %1165 = vmatpush1.msra.mxu0 %v1156
      %1166 = vmatprep.subr.mxu0 0.0
      %1167 = vmatpush1.msra.mxu0 0.0
      %1168 = vmatprep.subr.mxu0 0.0
      %1169 = vmatpush1.msra.mxu0 0.0
      %1170 = vmatprep.subr.mxu0 0.0
      %1171 = vmatpush1.msra.mxu0 0.0
      %1172 = vmatprep.subr.mxu0 0.0
      %1173 = vmatpush1.msra.mxu0 0.0
      %1174 = vmatprep.subr.mxu0 0.0
      %1175 = vmatpush1.msra.mxu0 0.0
      %1176 = vmatprep.subr.mxu0 0.0
      %1177 = vmatpush1.msra.mxu0 0.0
      %1178 = vmatprep.subr.mxu0 0.0
      %1179 = vmatpush1.msra.mxu0 0.0
      %1180 = vmatprep.subr.mxu0 0.0
      %1181 = vmatpush1.msra.mxu0 0.0
      %1182 = vmatprep.subr.mxu0 0.0
      %1183 = vmatpush1.msra.mxu0 0.0
      %1184 = vmatprep.subr.mxu0 0.0
      %1185 = vmatpush1.msra.mxu0 0.0
      %1186 = vmatprep.subr.mxu0 0.0
      %1187 = vmatpush1.msra.mxu0 0.0
      %1188 = vmatprep.subr.mxu0 0.0
      %1189 = vmatpush1.msra.mxu0 0.0
      %1190 = vmatprep.subr.mxu0 0.0
      %1191 = vmatpush1.msra.mxu0 0.0
      %1192 = vmatprep.subr.mxu0 0.0
      %1193 = vmatpush1.msra.mxu0 0.0
      %1194 = vmatprep.subr.mxu0 0.0
      %1195 = vmatpush1.msra.mxu0 0.0
      %1196 = vmatprep.subr.mxu0 0.0
      %1197 = vmatpush1.msra.mxu0 0.0
      %1198 = vmatprep.subr.mxu0 0.0
      %1199 = vmatpush1.msra.mxu0 0.0
      %1200 = vmatprep.subr.mxu0 0.0
      %1201 = vmatpush1.msra.mxu0 0.0
      %1202 = vmatprep.subr.mxu0 0.0
      %1203 = vmatpush1.msra.mxu0 0.0
      %1204 = vmatprep.subr.mxu0 0.0
      %1205 = vmatpush1.msra.mxu0 0.0
      %1206 = vmatprep.subr.mxu0 0.0
      %1207 = vmatpush1.msra.mxu0 0.0
      %1208 = vmatprep.subr.mxu0 0.0
      %1209 = vmatpush1.msra.mxu0 0.0
      %1210 = vmatprep.subr.mxu0 0.0
      %1211 = vmatpush1.msra.mxu0 0.0
      %1212 = vmatprep.subr.mxu0 0.0
      %1213 = vmatpush1.msra.mxu0 0.0
      %1214 = vmatprep.subr.mxu0 0.0
      %1215 = vmatpush1.msra.mxu0 0.0
      %1216 = vmatprep.subr.mxu0 0.0
      %1217 = vmatpush1.msra.mxu0 0.0
      %1218 = vmatprep.subr.mxu0 0.0
      %1219 = vmatpush1.msra.mxu0 0.0
      %1220 = vmatprep.subr.mxu0 0.0
      %1221 = vmatpush1.msra.mxu0 0.0
      %1222 = vmatprep.subr.mxu0 0.0
      %1223 = vmatpush1.msra.mxu0 0.0
      %1224 = vmatprep.subr.mxu0 0.0
      %1225 = vmatpush1.msra.mxu0 0.0
      %1226 = vmatprep.subr.mxu0 0.0
      %1227 = vmatpush1.msra.mxu0 0.0
      %1228 = vmatprep.mubr.f32.mxu0 0.0
      %1229 = vmatmul.mubr.f32.gmra.mrb[0].mxu0 %v1162
      %v1230 = vpop.f32.mrb[0].mxu0
      %v1231 = vadd.f32 0.0, %v1230
      %v1232 = vpop.f32.mrb[0].mxu0
      %v1233 = vadd.f32 0.0, %v1232
      %1234 = vdwg.mxu0
      %1235 = vmatprep.subr.mxu0 0.0
      %1236 = vmatpush1.msra.mxu0 %v1154
      %1237 = vmatprep.subr.mxu0 0.0
      %1238 = vmatpush1.msra.mxu0 0.0
      %1239 = vmatprep.subr.mxu0 0.0
      %1240 = vmatpush1.msra.mxu0 0.0
      %1241 = vmatprep.subr.mxu0 0.0
      %1242 = vmatpush1.msra.mxu0 0.0
      %1243 = vmatprep.subr.mxu0 0.0
      %1244 = vmatpush1.msra.mxu0 0.0
      %1245 = vmatprep.subr.mxu0 0.0
      %1246 = vmatpush1.msra.mxu0 0.0
      %1247 = vmatprep.subr.mxu0 0.0
      %1248 = vmatpush1.msra.mxu0 0.0
      %1249 = vmatprep.subr.mxu0 0.0
      %1250 = vmatpush1.msra.mxu0 0.0
      %1251 = vmatprep.subr.mxu0 0.0
      %1252 = vmatpush1.msra.mxu0 0.0
      %1253 = vmatprep.subr.mxu0 0.0
      %1254 = vmatpush1.msra.mxu0 0.0
      %1255 = vmatprep.subr.mxu0 0.0
      %1256 = vmatpush1.msra.mxu0 0.0
      %1257 = vmatprep.subr.mxu0 0.0
      %1258 = vmatpush1.msra.mxu0 0.0
      %1259 = vmatprep.subr.mxu0 0.0
      %1260 = vmatpush1.msra.mxu0 0.0
      %1261 = vmatprep.subr.mxu0 0.0
      %1262 = vmatpush1.msra.mxu0 0.0
      %1263 = vmatprep.subr.mxu0 0.0
      %1264 = vmatpush1.msra.mxu0 0.0
      %1265 = vmatprep.subr.mxu0 0.0
      %1266 = vmatpush1.msra.mxu0 0.0
      %1267 = vmatprep.subr.mxu0 0.0
      %1268 = vmatpush1.msra.mxu0 0.0
      %1269 = vmatprep.subr.mxu0 0.0
      %1270 = vmatpush1.msra.mxu0 0.0
      %1271 = vmatprep.subr.mxu0 0.0
      %1272 = vmatpush1.msra.mxu0 0.0
      %1273 = vmatprep.subr.mxu0 0.0
      %1274 = vmatpush1.msra.mxu0 0.0
      %1275 = vmatprep.subr.mxu0 0.0
      %1276 = vmatpush1.msra.mxu0 0.0
      %1277 = vmatprep.subr.mxu0 0.0
      %1278 = vmatpush1.msra.mxu0 0.0
      %1279 = vmatprep.subr.mxu0 0.0
      %1280 = vmatpush1.msra.mxu0 0.0
      %1281 = vmatprep.subr.mxu0 0.0
      %1282 = vmatpush1.msra.mxu0 0.0
      %1283 = vmatprep.subr.mxu0 0.0
      %1284 = vmatpush1.msra.mxu0 0.0
      %1285 = vmatprep.subr.mxu0 0.0
      %1286 = vmatpush1.msra.mxu0 0.0
      %1287 = vmatprep.subr.mxu0 0.0
      %1288 = vmatpush1.msra.mxu0 0.0
      %1289 = vmatprep.subr.mxu0 0.0
      %1290 = vmatpush1.msra.mxu0 0.0
      %1291 = vmatprep.subr.mxu0 0.0
      %1292 = vmatpush1.msra.mxu0 0.0
      %1293 = vmatprep.subr.mxu0 0.0
      %1294 = vmatpush1.msra.mxu0 0.0
      %1295 = vmatprep.subr.mxu0 0.0
      %1296 = vmatpush1.msra.mxu0 0.0
      %1297 = vmatprep.subr.mxu0 0.0
      %1298 = vmatpush1.msra.mxu0 0.0
      %1299 = vmatprep.mubr.f32.mxu0 0.0
      %1300 = vmatmul.mubr.f32.gmra.mrb[0].mxu0 %v1162
      %v1301 = vpop.f32.mrb[0].mxu0
      %v1302 = vadd.f32 0.0, %v1301
      %v1303 = vpop.f32.mrb[0].mxu0
      %1304 = vdwg.mxu0
      %v1305 = vadd.f32 %v1144, %v1231
      %v1306 = vadd.f32 %v1145, %v1233
      %v1307 = vadd.f32 %v1146, %v1302
      %s1308 = scalar_lea.vmem %s3, 20
      %v1309 = vld [vmem:[%s1308] sm:$0xf]
      %1310 = vrot.lane.b32.xlu0 %v516, 108
      %v1311 = vpop.permute.xlu0 %1310
      %1312 = vrot.lane.b32.xlu0 %v517, 108
      %v1313 = vpop.permute.xlu0 %1312
      %1314 = vrot.lane.b32.xlu0 %v518, 108
      %v1315 = vpop.permute.xlu0 %1314
      %vm1316 = vcmask 883712
      %v1317 = vsel %vm1316, %v1311, %v1313
      %v1318 = vsel %vm1316, %v1313, %v1315
      %v1323 = vsel %vm536, %v1309, 0
      %1325 = vmatprep.subr.mxu0 %v1318
      %1326 = vmatpush1.msra.mxu0 %v1317
      %1327 = vmatprep.subr.mxu0 0.0
      %1328 = vmatpush1.msra.mxu0 0.0
      %1329 = vmatprep.subr.mxu0 0.0
      %1330 = vmatpush1.msra.mxu0 0.0
      %1331 = vmatprep.subr.mxu0 0.0
      %1332 = vmatpush1.msra.mxu0 0.0
      %1333 = vmatprep.subr.mxu0 0.0
      %1334 = vmatpush1.msra.mxu0 0.0
      %1335 = vmatprep.subr.mxu0 0.0
      %1336 = vmatpush1.msra.mxu0 0.0
      %1337 = vmatprep.subr.mxu0 0.0
      %1338 = vmatpush1.msra.mxu0 0.0
      %1339 = vmatprep.subr.mxu0 0.0
      %1340 = vmatpush1.msra.mxu0 0.0
      %1341 = vmatprep.subr.mxu0 0.0
      %1342 = vmatpush1.msra.mxu0 0.0
      %1343 = vmatprep.subr.mxu0 0.0
      %1344 = vmatpush1.msra.mxu0 0.0
      %1345 = vmatprep.subr.mxu0 0.0
      %1346 = vmatpush1.msra.mxu0 0.0
      %1347 = vmatprep.subr.mxu0 0.0
      %1348 = vmatpush1.msra.mxu0 0.0
      %1349 = vmatprep.subr.mxu0 0.0
      %1350 = vmatpush1.msra.mxu0 0.0
      %1351 = vmatprep.subr.mxu0 0.0
      %1352 = vmatpush1.msra.mxu0 0.0
      %1353 = vmatprep.subr.mxu0 0.0
      %1354 = vmatpush1.msra.mxu0 0.0
      %1355 = vmatprep.subr.mxu0 0.0
      %1356 = vmatpush1.msra.mxu0 0.0
      %1357 = vmatprep.subr.mxu0 0.0
      %1358 = vmatpush1.msra.mxu0 0.0
      %1359 = vmatprep.subr.mxu0 0.0
      %1360 = vmatpush1.msra.mxu0 0.0
      %1361 = vmatprep.subr.mxu0 0.0
      %1362 = vmatpush1.msra.mxu0 0.0
      %1363 = vmatprep.subr.mxu0 0.0
      %1364 = vmatpush1.msra.mxu0 0.0
      %1365 = vmatprep.subr.mxu0 0.0
      %1366 = vmatpush1.msra.mxu0 0.0
      %1367 = vmatprep.subr.mxu0 0.0
      %1368 = vmatpush1.msra.mxu0 0.0
      %1369 = vmatprep.subr.mxu0 0.0
      %1370 = vmatpush1.msra.mxu0 0.0
      %1371 = vmatprep.subr.mxu0 0.0
      %1372 = vmatpush1.msra.mxu0 0.0
      %1373 = vmatprep.subr.mxu0 0.0
      %1374 = vmatpush1.msra.mxu0 0.0
      %1375 = vmatprep.subr.mxu0 0.0
      %1376 = vmatpush1.msra.mxu0 0.0
      %1377 = vmatprep.subr.mxu0 0.0
      %1378 = vmatpush1.msra.mxu0 0.0
      %1379 = vmatprep.subr.mxu0 0.0
      %1380 = vmatpush1.msra.mxu0 0.0
      %1381 = vmatprep.subr.mxu0 0.0
      %1382 = vmatpush1.msra.mxu0 0.0
      %1383 = vmatprep.subr.mxu0 0.0
      %1384 = vmatpush1.msra.mxu0 0.0
      %1385 = vmatprep.subr.mxu0 0.0
      %1386 = vmatpush1.msra.mxu0 0.0
      %1387 = vmatprep.subr.mxu0 0.0
      %1388 = vmatpush1.msra.mxu0 0.0
      %1389 = vmatprep.mubr.f32.mxu0 0.0
      %1390 = vmatmul.mubr.f32.gmra.mrb[0].mxu0 %v1323
      %v1391 = vpop.f32.mrb[0].mxu0
      %v1392 = vadd.f32 0.0, %v1391
      %v1393 = vpop.f32.mrb[0].mxu0
      %v1394 = vadd.f32 0.0, %v1393
      %1395 = vdwg.mxu0
      %1396 = vmatprep.subr.mxu0 0.0
      %1397 = vmatpush1.msra.mxu0 %v1315
      %1398 = vmatprep.subr.mxu0 0.0
      %1399 = vmatpush1.msra.mxu0 0.0
      %1400 = vmatprep.subr.mxu0 0.0
      %1401 = vmatpush1.msra.mxu0 0.0
      %1402 = vmatprep.subr.mxu0 0.0
      %1403 = vmatpush1.msra.mxu0 0.0
      %1404 = vmatprep.subr.mxu0 0.0
      %1405 = vmatpush1.msra.mxu0 0.0
      %1406 = vmatprep.subr.mxu0 0.0
      %1407 = vmatpush1.msra.mxu0 0.0
      %1408 = vmatprep.subr.mxu0 0.0
      %1409 = vmatpush1.msra.mxu0 0.0
      %1410 = vmatprep.subr.mxu0 0.0
      %1411 = vmatpush1.msra.mxu0 0.0
      %1412 = vmatprep.subr.mxu0 0.0
      %1413 = vmatpush1.msra.mxu0 0.0
      %1414 = vmatprep.subr.mxu0 0.0
      %1415 = vmatpush1.msra.mxu0 0.0
      %1416 = vmatprep.subr.mxu0 0.0
      %1417 = vmatpush1.msra.mxu0 0.0
      %1418 = vmatprep.subr.mxu0 0.0
      %1419 = vmatpush1.msra.mxu0 0.0
      %1420 = vmatprep.subr.mxu0 0.0
      %1421 = vmatpush1.msra.mxu0 0.0
      %1422 = vmatprep.subr.mxu0 0.0
      %1423 = vmatpush1.msra.mxu0 0.0
      %1424 = vmatprep.subr.mxu0 0.0
      %1425 = vmatpush1.msra.mxu0 0.0
      %1426 = vmatprep.subr.mxu0 0.0
      %1427 = vmatpush1.msra.mxu0 0.0
      %1428 = vmatprep.subr.mxu0 0.0
      %1429 = vmatpush1.msra.mxu0 0.0
      %1430 = vmatprep.subr.mxu0 0.0
      %1431 = vmatpush1.msra.mxu0 0.0
      %1432 = vmatprep.subr.mxu0 0.0
      %1433 = vmatpush1.msra.mxu0 0.0
      %1434 = vmatprep.subr.mxu0 0.0
      %1435 = vmatpush1.msra.mxu0 0.0
      %1436 = vmatprep.subr.mxu0 0.0
      %1437 = vmatpush1.msra.mxu0 0.0
      %1438 = vmatprep.subr.mxu0 0.0
      %1439 = vmatpush1.msra.mxu0 0.0
      %1440 = vmatprep.subr.mxu0 0.0
      %1441 = vmatpush1.msra.mxu0 0.0
      %1442 = vmatprep.subr.mxu0 0.0
      %1443 = vmatpush1.msra.mxu0 0.0
      %1444 = vmatprep.subr.mxu0 0.0
      %1445 = vmatpush1.msra.mxu0 0.0
      %1446 = vmatprep.subr.mxu0 0.0
      %1447 = vmatpush1.msra.mxu0 0.0
      %1448 = vmatprep.subr.mxu0 0.0
      %1449 = vmatpush1.msra.mxu0 0.0
      %1450 = vmatprep.subr.mxu0 0.0
      %1451 = vmatpush1.msra.mxu0 0.0
      %1452 = vmatprep.subr.mxu0 0.0
      %1453 = vmatpush1.msra.mxu0 0.0
      %1454 = vmatprep.subr.mxu0 0.0
      %1455 = vmatpush1.msra.mxu0 0.0
      %1456 = vmatprep.subr.mxu0 0.0
      %1457 = vmatpush1.msra.mxu0 0.0
      %1458 = vmatprep.subr.mxu0 0.0
      %1459 = vmatpush1.msra.mxu0 0.0
      %1460 = vmatprep.mubr.f32.mxu0 0.0
      %1461 = vmatmul.mubr.f32.gmra.mrb[0].mxu0 %v1323
      %v1462 = vpop.f32.mrb[0].mxu0
      %v1463 = vadd.f32 0.0, %v1462
      %v1464 = vpop.f32.mrb[0].mxu0
      %1465 = vdwg.mxu0
      %v1466 = vadd.f32 %v1305, %v1392
      %v1467 = vadd.f32 %v1306, %v1394
      %v1468 = vadd.f32 %v1307, %v1463
      %s1469 = scalar_lea.vmem %s3, 24
      %v1470 = vld [vmem:[%s1469] sm:$0xf]
      %1471 = vrot.lane.b32.xlu0 %v516, 92
      %v1472 = vpop.permute.xlu0 %1471
      %1473 = vrot.lane.b32.xlu0 %v517, 92
      %v1474 = vpop.permute.xlu0 %1473
      %1475 = vrot.lane.b32.xlu0 %v518, 92
      %v1476 = vpop.permute.xlu0 %1475
      %vm1477 = vcmask 752640
      %v1478 = vsel %vm1477, %v1472, %v1474
      %v1479 = vsel %vm1477, %v1474, %v1476
      %v1484 = vsel %vm536, %v1470, 0
      %1486 = vmatprep.subr.mxu0 %v1479
      %1487 = vmatpush1.msra.mxu0 %v1478
      %1488 = vmatprep.subr.mxu0 0.0
      %1489 = vmatpush1.msra.mxu0 0.0
      %1490 = vmatprep.subr.mxu0 0.0
      %1491 = vmatpush1.msra.mxu0 0.0
      %1492 = vmatprep.subr.mxu0 0.0
      %1493 = vmatpush1.msra.mxu0 0.0
      %1494 = vmatprep.subr.mxu0 0.0
      %1495 = vmatpush1.msra.mxu0 0.0
      %1496 = vmatprep.subr.mxu0 0.0
      %1497 = vmatpush1.msra.mxu0 0.0
      %1498 = vmatprep.subr.mxu0 0.0
      %1499 = vmatpush1.msra.mxu0 0.0
      %1500 = vmatprep.subr.mxu0 0.0
      %1501 = vmatpush1.msra.mxu0 0.0
      %1502 = vmatprep.subr.mxu0 0.0
      %1503 = vmatpush1.msra.mxu0 0.0
      %1504 = vmatprep.subr.mxu0 0.0
      %1505 = vmatpush1.msra.mxu0 0.0
      %1506 = vmatprep.subr.mxu0 0.0
      %1507 = vmatpush1.msra.mxu0 0.0
      %1508 = vmatprep.subr.mxu0 0.0
      %1509 = vmatpush1.msra.mxu0 0.0
      %1510 = vmatprep.subr.mxu0 0.0
      %1511 = vmatpush1.msra.mxu0 0.0
      %1512 = vmatprep.subr.mxu0 0.0
      %1513 = vmatpush1.msra.mxu0 0.0
      %1514 = vmatprep.subr.mxu0 0.0
      %1515 = vmatpush1.msra.mxu0 0.0
      %1516 = vmatprep.subr.mxu0 0.0
      %1517 = vmatpush1.msra.mxu0 0.0
      %1518 = vmatprep.subr.mxu0 0.0
      %1519 = vmatpush1.msra.mxu0 0.0
      %1520 = vmatprep.subr.mxu0 0.0
      %1521 = vmatpush1.msra.mxu0 0.0
      %1522 = vmatprep.subr.mxu0 0.0
      %1523 = vmatpush1.msra.mxu0 0.0
      %1524 = vmatprep.subr.mxu0 0.0
      %1525 = vmatpush1.msra.mxu0 0.0
      %1526 = vmatprep.subr.mxu0 0.0
      %1527 = vmatpush1.msra.mxu0 0.0
      %1528 = vmatprep.subr.mxu0 0.0
      %1529 = vmatpush1.msra.mxu0 0.0
      %1530 = vmatprep.subr.mxu0 0.0
      %1531 = vmatpush1.msra.mxu0 0.0
      %1532 = vmatprep.subr.mxu0 0.0
      %1533 = vmatpush1.msra.mxu0 0.0
      %1534 = vmatprep.subr.mxu0 0.0
      %1535 = vmatpush1.msra.mxu0 0.0
      %1536 = vmatprep.subr.mxu0 0.0
      %1537 = vmatpush1.msra.mxu0 0.0
      %1538 = vmatprep.subr.mxu0 0.0
      %1539 = vmatpush1.msra.mxu0 0.0
      %1540 = vmatprep.subr.mxu0 0.0
      %1541 = vmatpush1.msra.mxu0 0.0
      %1542 = vmatprep.subr.mxu0 0.0
      %1543 = vmatpush1.msra.mxu0 0.0
      %1544 = vmatprep.subr.mxu0 0.0
      %1545 = vmatpush1.msra.mxu0 0.0
      %1546 = vmatprep.subr.mxu0 0.0
      %1547 = vmatpush1.msra.mxu0 0.0
      %1548 = vmatprep.subr.mxu0 0.0
      %1549 = vmatpush1.msra.mxu0 0.0
      %1550 = vmatprep.mubr.f32.mxu0 0.0
      %1551 = vmatmul.mubr.f32.gmra.mrb[0].mxu0 %v1484
      %v1552 = vpop.f32.mrb[0].mxu0
      %v1553 = vadd.f32 0.0, %v1552
      %v1554 = vpop.f32.mrb[0].mxu0
      %v1555 = vadd.f32 0.0, %v1554
      %1556 = vdwg.mxu0
      %1557 = vmatprep.subr.mxu0 0.0
      %1558 = vmatpush1.msra.mxu0 %v1476
      %1559 = vmatprep.subr.mxu0 0.0
      %1560 = vmatpush1.msra.mxu0 0.0
      %1561 = vmatprep.subr.mxu0 0.0
      %1562 = vmatpush1.msra.mxu0 0.0
      %1563 = vmatprep.subr.mxu0 0.0
      %1564 = vmatpush1.msra.mxu0 0.0
      %1565 = vmatprep.subr.mxu0 0.0
      %1566 = vmatpush1.msra.mxu0 0.0
      %1567 = vmatprep.subr.mxu0 0.0
      %1568 = vmatpush1.msra.mxu0 0.0
      %1569 = vmatprep.subr.mxu0 0.0
      %1570 = vmatpush1.msra.mxu0 0.0
      %1571 = vmatprep.subr.mxu0 0.0
      %1572 = vmatpush1.msra.mxu0 0.0
      %1573 = vmatprep.subr.mxu0 0.0
      %1574 = vmatpush1.msra.mxu0 0.0
      %1575 = vmatprep.subr.mxu0 0.0
      %1576 = vmatpush1.msra.mxu0 0.0
      %1577 = vmatprep.subr.mxu0 0.0
      %1578 = vmatpush1.msra.mxu0 0.0
      %1579 = vmatprep.subr.mxu0 0.0
      %1580 = vmatpush1.msra.mxu0 0.0
      %1581 = vmatprep.subr.mxu0 0.0
      %1582 = vmatpush1.msra.mxu0 0.0
      %1583 = vmatprep.subr.mxu0 0.0
      %1584 = vmatpush1.msra.mxu0 0.0
      %1585 = vmatprep.subr.mxu0 0.0
      %1586 = vmatpush1.msra.mxu0 0.0
      %1587 = vmatprep.subr.mxu0 0.0
      %1588 = vmatpush1.msra.mxu0 0.0
      %1589 = vmatprep.subr.mxu0 0.0
      %1590 = vmatpush1.msra.mxu0 0.0
      %1591 = vmatprep.subr.mxu0 0.0
      %1592 = vmatpush1.msra.mxu0 0.0
      %1593 = vmatprep.subr.mxu0 0.0
      %1594 = vmatpush1.msra.mxu0 0.0
      %1595 = vmatprep.subr.mxu0 0.0
      %1596 = vmatpush1.msra.mxu0 0.0
      %1597 = vmatprep.subr.mxu0 0.0
      %1598 = vmatpush1.msra.mxu0 0.0
      %1599 = vmatprep.subr.mxu0 0.0
      %1600 = vmatpush1.msra.mxu0 0.0
      %1601 = vmatprep.subr.mxu0 0.0
      %1602 = vmatpush1.msra.mxu0 0.0
      %1603 = vmatprep.subr.mxu0 0.0
      %1604 = vmatpush1.msra.mxu0 0.0
      %1605 = vmatprep.subr.mxu0 0.0
      %1606 = vmatpush1.msra.mxu0 0.0
      %1607 = vmatprep.subr.mxu0 0.0
      %1608 = vmatpush1.msra.mxu0 0.0
      %1609 = vmatprep.subr.mxu0 0.0
      %1610 = vmatpush1.msra.mxu0 0.0
      %1611 = vmatprep.subr.mxu0 0.0
      %1612 = vmatpush1.msra.mxu0 0.0
      %1613 = vmatprep.subr.mxu0 0.0
      %1614 = vmatpush1.msra.mxu0 0.0
      %1615 = vmatprep.subr.mxu0 0.0
      %1616 = vmatpush1.msra.mxu0 0.0
      %1617 = vmatprep.subr.mxu0 0.0
      %1618 = vmatpush1.msra.mxu0 0.0
      %1619 = vmatprep.subr.mxu0 0.0
      %1620 = vmatpush1.msra.mxu0 0.0
      %1621 = vmatprep.mubr.f32.mxu0 0.0
      %1622 = vmatmul.mubr.f32.gmra.mrb[0].mxu0 %v1484
      %v1623 = vpop.f32.mrb[0].mxu0
      %v1624 = vadd.f32 0.0, %v1623
      %v1625 = vpop.f32.mrb[0].mxu0
      %1626 = vdwg.mxu0
      %v1627 = vadd.f32 %v1466, %v1553
      %v1628 = vadd.f32 %v1467, %v1555
      %v1629 = vadd.f32 %v1468, %v1624
      %s1630 = scalar_lea.vmem %s3, 28
      %v1631 = vld [vmem:[%s1630] sm:$0xf]
      %1632 = vrot.lane.b32.xlu0 %v516, 91
      %v1633 = vpop.permute.xlu0 %1632
      %1634 = vrot.lane.b32.xlu0 %v517, 91
      %v1635 = vpop.permute.xlu0 %1634
      %1636 = vrot.lane.b32.xlu0 %v518, 91
      %v1637 = vpop.permute.xlu0 %1636
      %vm1638 = vcmask 744448
      %v1639 = vsel %vm1638, %v1633, %v1635
      %v1640 = vsel %vm1638, %v1635, %v1637
      %v1645 = vsel %vm536, %v1631, 0
      %1647 = vmatprep.subr.mxu0 %v1640
      %1648 = vmatpush1.msra.mxu0 %v1639
      %1649 = vmatprep.subr.mxu0 0.0
      %1650 = vmatpush1.msra.mxu0 0.0
      %1651 = vmatprep.subr.mxu0 0.0
      %1652 = vmatpush1.msra.mxu0 0.0
      %1653 = vmatprep.subr.mxu0 0.0
      %1654 = vmatpush1.msra.mxu0 0.0
      %1655 = vmatprep.subr.mxu0 0.0
      %1656 = vmatpush1.msra.mxu0 0.0
      %1657 = vmatprep.subr.mxu0 0.0
      %1658 = vmatpush1.msra.mxu0 0.0
      %1659 = vmatprep.subr.mxu0 0.0
      %1660 = vmatpush1.msra.mxu0 0.0
      %1661 = vmatprep.subr.mxu0 0.0
      %1662 = vmatpush1.msra.mxu0 0.0
      %1663 = vmatprep.subr.mxu0 0.0
      %1664 = vmatpush1.msra.mxu0 0.0
      %1665 = vmatprep.subr.mxu0 0.0
      %1666 = vmatpush1.msra.mxu0 0.0
      %1667 = vmatprep.subr.mxu0 0.0
      %1668 = vmatpush1.msra.mxu0 0.0
      %1669 = vmatprep.subr.mxu0 0.0
      %1670 = vmatpush1.msra.mxu0 0.0
      %1671 = vmatprep.subr.mxu0 0.0
      %1672 = vmatpush1.msra.mxu0 0.0
      %1673 = vmatprep.subr.mxu0 0.0
      %1674 = vmatpush1.msra.mxu0 0.0
      %1675 = vmatprep.subr.mxu0 0.0
      %1676 = vmatpush1.msra.mxu0 0.0
      %1677 = vmatprep.subr.mxu0 0.0
      %1678 = vmatpush1.msra.mxu0 0.0
      %1679 = vmatprep.subr.mxu0 0.0
      %1680 = vmatpush1.msra.mxu0 0.0
      %1681 = vmatprep.subr.mxu0 0.0
      %1682 = vmatpush1.msra.mxu0 0.0
      %1683 = vmatprep.subr.mxu0 0.0
      %1684 = vmatpush1.msra.mxu0 0.0
      %1685 = vmatprep.subr.mxu0 0.0
      %1686 = vmatpush1.msra.mxu0 0.0
      %1687 = vmatprep.subr.mxu0 0.0
      %1688 = vmatpush1.msra.mxu0 0.0
      %1689 = vmatprep.subr.mxu0 0.0
      %1690 = vmatpush1.msra.mxu0 0.0
      %1691 = vmatprep.subr.mxu0 0.0
      %1692 = vmatpush1.msra.mxu0 0.0
      %1693 = vmatprep.subr.mxu0 0.0
      %1694 = vmatpush1.msra.mxu0 0.0
      %1695 = vmatprep.subr.mxu0 0.0
      %1696 = vmatpush1.msra.mxu0 0.0
      %1697 = vmatprep.subr.mxu0 0.0
      %1698 = vmatpush1.msra.mxu0 0.0
      %1699 = vmatprep.subr.mxu0 0.0
      %1700 = vmatpush1.msra.mxu0 0.0
      %1701 = vmatprep.subr.mxu0 0.0
      %1702 = vmatpush1.msra.mxu0 0.0
      %1703 = vmatprep.subr.mxu0 0.0
      %1704 = vmatpush1.msra.mxu0 0.0
      %1705 = vmatprep.subr.mxu0 0.0
      %1706 = vmatpush1.msra.mxu0 0.0
      %1707 = vmatprep.subr.mxu0 0.0
      %1708 = vmatpush1.msra.mxu0 0.0
      %1709 = vmatprep.subr.mxu0 0.0
      %1710 = vmatpush1.msra.mxu0 0.0
      %1711 = vmatprep.mubr.f32.mxu0 0.0
      %1712 = vmatmul.mubr.f32.gmra.mrb[0].mxu0 %v1645
      %v1713 = vpop.f32.mrb[0].mxu0
      %v1714 = vadd.f32 0.0, %v1713
      %v1715 = vpop.f32.mrb[0].mxu0
      %v1716 = vadd.f32 0.0, %v1715
      %1717 = vdwg.mxu0
      %1718 = vmatprep.subr.mxu0 0.0
      %1719 = vmatpush1.msra.mxu0 %v1637
      %1720 = vmatprep.subr.mxu0 0.0
      %1721 = vmatpush1.msra.mxu0 0.0
      %1722 = vmatprep.subr.mxu0 0.0
      %1723 = vmatpush1.msra.mxu0 0.0
      %1724 = vmatprep.subr.mxu0 0.0
      %1725 = vmatpush1.msra.mxu0 0.0
      %1726 = vmatprep.subr.mxu0 0.0
      %1727 = vmatpush1.msra.mxu0 0.0
      %1728 = vmatprep.subr.mxu0 0.0
      %1729 = vmatpush1.msra.mxu0 0.0
      %1730 = vmatprep.subr.mxu0 0.0
      %1731 = vmatpush1.msra.mxu0 0.0
      %1732 = vmatprep.subr.mxu0 0.0
      %1733 = vmatpush1.msra.mxu0 0.0
      %1734 = vmatprep.subr.mxu0 0.0
      %1735 = vmatpush1.msra.mxu0 0.0
      %1736 = vmatprep.subr.mxu0 0.0
      %1737 = vmatpush1.msra.mxu0 0.0
      %1738 = vmatprep.subr.mxu0 0.0
      %1739 = vmatpush1.msra.mxu0 0.0
      %1740 = vmatprep.subr.mxu0 0.0
      %1741 = vmatpush1.msra.mxu0 0.0
      %1742 = vmatprep.subr.mxu0 0.0
      %1743 = vmatpush1.msra.mxu0 0.0
      %1744 = vmatprep.subr.mxu0 0.0
      %1745 = vmatpush1.msra.mxu0 0.0
      %1746 = vmatprep.subr.mxu0 0.0
      %1747 = vmatpush1.msra.mxu0 0.0
      %1748 = vmatprep.subr.mxu0 0.0
      %1749 = vmatpush1.msra.mxu0 0.0
      %1750 = vmatprep.subr.mxu0 0.0
      %1751 = vmatpush1.msra.mxu0 0.0
      %1752 = vmatprep.subr.mxu0 0.0
      %1753 = vmatpush1.msra.mxu0 0.0
      %1754 = vmatprep.subr.mxu0 0.0
      %1755 = vmatpush1.msra.mxu0 0.0
      %1756 = vmatprep.subr.mxu0 0.0
      %1757 = vmatpush1.msra.mxu0 0.0
      %1758 = vmatprep.subr.mxu0 0.0
      %1759 = vmatpush1.msra.mxu0 0.0
      %1760 = vmatprep.subr.mxu0 0.0
      %1761 = vmatpush1.msra.mxu0 0.0
      %1762 = vmatprep.subr.mxu0 0.0
      %1763 = vmatpush1.msra.mxu0 0.0
      %1764 = vmatprep.subr.mxu0 0.0
      %1765 = vmatpush1.msra.mxu0 0.0
      %1766 = vmatprep.subr.mxu0 0.0
      %1767 = vmatpush1.msra.mxu0 0.0
      %1768 = vmatprep.subr.mxu0 0.0
      %1769 = vmatpush1.msra.mxu0 0.0
      %1770 = vmatprep.subr.mxu0 0.0
      %1771 = vmatpush1.msra.mxu0 0.0
      %1772 = vmatprep.subr.mxu0 0.0
      %1773 = vmatpush1.msra.mxu0 0.0
      %1774 = vmatprep.subr.mxu0 0.0
      %1775 = vmatpush1.msra.mxu0 0.0
      %1776 = vmatprep.subr.mxu0 0.0
      %1777 = vmatpush1.msra.mxu0 0.0
      %1778 = vmatprep.subr.mxu0 0.0
      %1779 = vmatpush1.msra.mxu0 0.0
      %1780 = vmatprep.subr.mxu0 0.0
      %1781 = vmatpush1.msra.mxu0 0.0
      %1782 = vmatprep.mubr.f32.mxu0 0.0
      %1783 = vmatmul.mubr.f32.gmra.mrb[0].mxu0 %v1645
      %v1784 = vpop.f32.mrb[0].mxu0
      %v1785 = vadd.f32 0.0, %v1784
      %v1786 = vpop.f32.mrb[0].mxu0
      %1787 = vdwg.mxu0
      %v1788 = vadd.f32 %v1627, %v1714
      %v1789 = vadd.f32 %v1628, %v1716
      %v1790 = vadd.f32 %v1629, %v1785
      %s1791 = scalar_lea.vmem %s3, 32
      %v1792 = vld [vmem:[%s1791] sm:$0xf]
      %1793 = vrot.lane.b32.xlu0 %v516, 90
      %v1794 = vpop.permute.xlu0 %1793
      %1795 = vrot.lane.b32.xlu0 %v517, 90
      %v1796 = vpop.permute.xlu0 %1795
      %1797 = vrot.lane.b32.xlu0 %v518, 90
      %v1798 = vpop.permute.xlu0 %1797
      %vm1799 = vcmask 736256
      %v1800 = vsel %vm1799, %v1794, %v1796
      %v1801 = vsel %vm1799, %v1796, %v1798
      %v1806 = vsel %vm536, %v1792, 0
      %1808 = vmatprep.subr.mxu0 %v1801
      %1809 = vmatpush1.msra.mxu0 %v1800
      %1810 = vmatprep.subr.mxu0 0.0
      %1811 = vmatpush1.msra.mxu0 0.0
      %1812 = vmatprep.subr.mxu0 0.0
      %1813 = vmatpush1.msra.mxu0 0.0
      %1814 = vmatprep.subr.mxu0 0.0
      %1815 = vmatpush1.msra.mxu0 0.0
      %1816 = vmatprep.subr.mxu0 0.0
      %1817 = vmatpush1.msra.mxu0 0.0
      %1818 = vmatprep.subr.mxu0 0.0
      %1819 = vmatpush1.msra.mxu0 0.0
      %1820 = vmatprep.subr.mxu0 0.0
      %1821 = vmatpush1.msra.mxu0 0.0
      %1822 = vmatprep.subr.mxu0 0.0
      %1823 = vmatpush1.msra.mxu0 0.0
      %1824 = vmatprep.subr.mxu0 0.0
      %1825 = vmatpush1.msra.mxu0 0.0
      %1826 = vmatprep.subr.mxu0 0.0
      %1827 = vmatpush1.msra.mxu0 0.0
      %1828 = vmatprep.subr.mxu0 0.0
      %1829 = vmatpush1.msra.mxu0 0.0
      %1830 = vmatprep.subr.mxu0 0.0
      %1831 = vmatpush1.msra.mxu0 0.0
      %1832 = vmatprep.subr.mxu0 0.0
      %1833 = vmatpush1.msra.mxu0 0.0
      %1834 = vmatprep.subr.mxu0 0.0
      %1835 = vmatpush1.msra.mxu0 0.0
      %1836 = vmatprep.subr.mxu0 0.0
      %1837 = vmatpush1.msra.mxu0 0.0
      %1838 = vmatprep.subr.mxu0 0.0
      %1839 = vmatpush1.msra.mxu0 0.0
      %1840 = vmatprep.subr.mxu0 0.0
      %1841 = vmatpush1.msra.mxu0 0.0
      %1842 = vmatprep.subr.mxu0 0.0
      %1843 = vmatpush1.msra.mxu0 0.0
      %1844 = vmatprep.subr.mxu0 0.0
      %1845 = vmatpush1.msra.mxu0 0.0
      %1846 = vmatprep.subr.mxu0 0.0
      %1847 = vmatpush1.msra.mxu0 0.0
      %1848 = vmatprep.subr.mxu0 0.0
      %1849 = vmatpush1.msra.mxu0 0.0
      %1850 = vmatprep.subr.mxu0 0.0
      %1851 = vmatpush1.msra.mxu0 0.0
      %1852 = vmatprep.subr.mxu0 0.0
      %1853 = vmatpush1.msra.mxu0 0.0
      %1854 = vmatprep.subr.mxu0 0.0
      %1855 = vmatpush1.msra.mxu0 0.0
      %1856 = vmatprep.subr.mxu0 0.0
      %1857 = vmatpush1.msra.mxu0 0.0
      %1858 = vmatprep.subr.mxu0 0.0
      %1859 = vmatpush1.msra.mxu0 0.0
      %1860 = vmatprep.subr.mxu0 0.0
      %1861 = vmatpush1.msra.mxu0 0.0
      %1862 = vmatprep.subr.mxu0 0.0
      %1863 = vmatpush1.msra.mxu0 0.0
      %1864 = vmatprep.subr.mxu0 0.0
      %1865 = vmatpush1.msra.mxu0 0.0
      %1866 = vmatprep.subr.mxu0 0.0
      %1867 = vmatpush1.msra.mxu0 0.0
      %1868 = vmatprep.subr.mxu0 0.0
      %1869 = vmatpush1.msra.mxu0 0.0
      %1870 = vmatprep.subr.mxu0 0.0
      %1871 = vmatpush1.msra.mxu0 0.0
      %1872 = vmatprep.mubr.f32.mxu0 0.0
      %1873 = vmatmul.mubr.f32.gmra.mrb[0].mxu0 %v1806
      %v1874 = vpop.f32.mrb[0].mxu0
      %v1875 = vadd.f32 0.0, %v1874
      %v1876 = vpop.f32.mrb[0].mxu0
      %v1877 = vadd.f32 0.0, %v1876
      %1878 = vdwg.mxu0
      %1879 = vmatprep.subr.mxu0 0.0
      %1880 = vmatpush1.msra.mxu0 %v1798
      %1881 = vmatprep.subr.mxu0 0.0
      %1882 = vmatpush1.msra.mxu0 0.0
      %1883 = vmatprep.subr.mxu0 0.0
      %1884 = vmatpush1.msra.mxu0 0.0
      %1885 = vmatprep.subr.mxu0 0.0
      %1886 = vmatpush1.msra.mxu0 0.0
      %1887 = vmatprep.subr.mxu0 0.0
      %1888 = vmatpush1.msra.mxu0 0.0
      %1889 = vmatprep.subr.mxu0 0.0
      %1890 = vmatpush1.msra.mxu0 0.0
      %1891 = vmatprep.subr.mxu0 0.0
      %1892 = vmatpush1.msra.mxu0 0.0
      %1893 = vmatprep.subr.mxu0 0.0
      %1894 = vmatpush1.msra.mxu0 0.0
      %1895 = vmatprep.subr.mxu0 0.0
      %1896 = vmatpush1.msra.mxu0 0.0
      %1897 = vmatprep.subr.mxu0 0.0
      %1898 = vmatpush1.msra.mxu0 0.0
      %1899 = vmatprep.subr.mxu0 0.0
      %1900 = vmatpush1.msra.mxu0 0.0
      %1901 = vmatprep.subr.mxu0 0.0
      %1902 = vmatpush1.msra.mxu0 0.0
      %1903 = vmatprep.subr.mxu0 0.0
      %1904 = vmatpush1.msra.mxu0 0.0
      %1905 = vmatprep.subr.mxu0 0.0
      %1906 = vmatpush1.msra.mxu0 0.0
      %1907 = vmatprep.subr.mxu0 0.0
      %1908 = vmatpush1.msra.mxu0 0.0
      %1909 = vmatprep.subr.mxu0 0.0
      %1910 = vmatpush1.msra.mxu0 0.0
      %1911 = vmatprep.subr.mxu0 0.0
      %1912 = vmatpush1.msra.mxu0 0.0
      %1913 = vmatprep.subr.mxu0 0.0
      %1914 = vmatpush1.msra.mxu0 0.0
      %1915 = vmatprep.subr.mxu0 0.0
      %1916 = vmatpush1.msra.mxu0 0.0
      %1917 = vmatprep.subr.mxu0 0.0
      %1918 = vmatpush1.msra.mxu0 0.0
      %1919 = vmatprep.subr.mxu0 0.0
      %1920 = vmatpush1.msra.mxu0 0.0
      %1921 = vmatprep.subr.mxu0 0.0
      %1922 = vmatpush1.msra.mxu0 0.0
      %1923 = vmatprep.subr.mxu0 0.0
      %1924 = vmatpush1.msra.mxu0 0.0
      %1925 = vmatprep.subr.mxu0 0.0
      %1926 = vmatpush1.msra.mxu0 0.0
      %1927 = vmatprep.subr.mxu0 0.0
      %1928 = vmatpush1.msra.mxu0 0.0
      %1929 = vmatprep.subr.mxu0 0.0
      %1930 = vmatpush1.msra.mxu0 0.0
      %1931 = vmatprep.subr.mxu0 0.0
      %1932 = vmatpush1.msra.mxu0 0.0
      %1933 = vmatprep.subr.mxu0 0.0
      %1934 = vmatpush1.msra.mxu0 0.0
      %1935 = vmatprep.subr.mxu0 0.0
      %1936 = vmatpush1.msra.mxu0 0.0
      %1937 = vmatprep.subr.mxu0 0.0
      %1938 = vmatpush1.msra.mxu0 0.0
      %1939 = vmatprep.subr.mxu0 0.0
      %1940 = vmatpush1.msra.mxu0 0.0
      %1941 = vmatprep.subr.mxu0 0.0
      %1942 = vmatpush1.msra.mxu0 0.0
      %1943 = vmatprep.mubr.f32.mxu0 0.0
      %1944 = vmatmul.mubr.f32.gmra.mrb[0].mxu0 %v1806
      %v1945 = vpop.f32.mrb[0].mxu0
      %v1946 = vadd.f32 0.0, %v1945
      %v1947 = vpop.f32.mrb[0].mxu0
      %1948 = vdwg.mxu0
      %v1949 = vadd.f32 %v1788, %v1875
      %v1950 = vadd.f32 %v1789, %v1877
      %v1951 = vadd.f32 %v1790, %v1946
      %v1952 = vld [vmem:[%s4] sm:$0xf]
      %1954 = vset.pattern.permute.xlu0 0
      %1955 = vperm.xlu0 %1954, %v1952
      %v1956 = vpop.permute.xlu0 %1955
      %v1958 = vadd.f32 %v1949, %v1956
      %v1959 = vadd.f32 %v1950, %v1956
      %v1960 = vadd.f32 %v1951, %v1956
      %v1961 = vmax.f32 %v1958, 0.0
      %v1962 = vmax.f32 %v1959, 0.0
      %v1963 = vmax.f32 %v1960, 0.0
      %v1964 = vld [vmem:[%s7] sm:$0x7]
      %v1966 = vlaneseq
      %v1967 = vshrl.u32 %v1966, 7
      %v1968 = vsub.s32 0, %v1967
      %v1969 = vrot.slane %v1964, %v1968
      %v1970 = vlaneseq
      %v1971 = vshrl.u32 %v1970, 7
      %v1972 = vsub.s32 1, %v1971
      %v1973 = vrot.slane %v1964, %v1972
      %v1974 = vlaneseq
      %v1975 = vshrl.u32 %v1974, 7
      %v1976 = vsub.s32 2, %v1975
      %v1977 = vrot.slane %v1964, %v1976
      %v1981 = vmul.f32 %v1961, %v1969
      %v1982 = vmul.f32 %v1962, %v1973
      %v1983 = vmul.f32 %v1963, %v1977
      %1984 = vst [vmem:[#allocation3] sm:$0xff] 0.0
      %1985 = vst.msk [vmem:[#allocation3 + $0x8] sm:$0xf] %vm330, 0.0
      %v1989 = vcombine.low %v1981, %v1982
      %1990 = vrot.lane.b32.xlu0 %v1989, 19
      %v1991 = vpop.permute.xlu0 %1990
      %1992 = vrot.lane.b32.xlu0 %v1983, 19
      %v1993 = vpop.permute.xlu0 %1992
      %v1994 = vrot.slane %v1991, 4
      %vm1995 = vcmask 154624
      %v1996 = vsel %vm1995, %v1994, %v1991
      %v1997 = vsel %vm1995, %v1994, %v1993
      %vm2000 = vcmask 1043608
      %vm2001 = vcmask 1047556
      %vm2002 = vmor %vm2001, %vm2000
      %2003 = vst.msk [vmem:[#allocation3] sm:$0xff] %vm2002, %v1996
      %vm2004 = vcmask 412672
      %2005 = vst.msk [vmem:[#allocation3 + $0x8] sm:$0xf] %vm2004, %v1997
      %v2006 = vld [vmem:[%s5] sm:$0xf]
      %v2007 = vld [vmem:[#allocation3] sm:$0xff]
      %v2008 = vld [vmem:[#allocation3 + $0x8] sm:$0xf]
      %s2009 = scalar_lea.vmem %s5, 4
      %v2010 = vld [vmem:[%s2009] sm:$0xf]
      %v2013 = vcombine.high %v2007, %v2007
      %2014 = vrot.lane.b32.xlu0 %v2007, 127
      %v2015 = vpop.permute.xlu0 %2014
      %2016 = vrot.lane.b32.xlu0 %v2013, 127
      %v2017 = vpop.permute.xlu0 %2016
      %2018 = vrot.lane.b32.xlu0 %v2008, 127
      %v2019 = vpop.permute.xlu0 %2018
      %v2020 = vsel %vm530, %v2015, %v2017
      %v2021 = vsel %vm530, %v2017, %v2019
      %vm2022 = vcmask 31744
      %v2024 = vsel %vm2022, %v2010, 0
      %vm2026 = vcmask 1043456
      %v2027 = vsel %vm2026, %v2020, 0
      %v2029 = vsel %vm2026, %v2021, 0
      %v2031 = vsel %vm2026, %v2019, 0
      %2033 = vmatprep.subr.mxu0 %v2029
      %2034 = vmatpush1.msra.mxu0 %v2027
      %2035 = vmatprep.subr.mxu0 0.0
      %2036 = vmatpush1.msra.mxu0 0.0
      %2037 = vmatprep.subr.mxu0 0.0
      %2038 = vmatpush1.msra.mxu0 0.0
      %2039 = vmatprep.subr.mxu0 0.0
      %2040 = vmatpush1.msra.mxu0 0.0
      %2041 = vmatprep.subr.mxu0 0.0
      %2042 = vmatpush1.msra.mxu0 0.0
      %2043 = vmatprep.subr.mxu0 0.0
      %2044 = vmatpush1.msra.mxu0 0.0
      %2045 = vmatprep.subr.mxu0 0.0
      %2046 = vmatpush1.msra.mxu0 0.0
      %2047 = vmatprep.subr.mxu0 0.0
      %2048 = vmatpush1.msra.mxu0 0.0
      %2049 = vmatprep.subr.mxu0 0.0
      %2050 = vmatpush1.msra.mxu0 0.0
      %2051 = vmatprep.subr.mxu0 0.0
      %2052 = vmatpush1.msra.mxu0 0.0
      %2053 = vmatprep.subr.mxu0 0.0
      %2054 = vmatpush1.msra.mxu0 0.0
      %2055 = vmatprep.subr.mxu0 0.0
      %2056 = vmatpush1.msra.mxu0 0.0
      %2057 = vmatprep.subr.mxu0 0.0
      %2058 = vmatpush1.msra.mxu0 0.0
      %2059 = vmatprep.subr.mxu0 0.0
      %2060 = vmatpush1.msra.mxu0 0.0
      %2061 = vmatprep.subr.mxu0 0.0
      %2062 = vmatpush1.msra.mxu0 0.0
      %2063 = vmatprep.subr.mxu0 0.0
      %2064 = vmatpush1.msra.mxu0 0.0
      %2065 = vmatprep.subr.mxu0 0.0
      %2066 = vmatpush1.msra.mxu0 0.0
      %2067 = vmatprep.subr.mxu0 0.0
      %2068 = vmatpush1.msra.mxu0 0.0
      %2069 = vmatprep.subr.mxu0 0.0
      %2070 = vmatpush1.msra.mxu0 0.0
      %2071 = vmatprep.subr.mxu0 0.0
      %2072 = vmatpush1.msra.mxu0 0.0
      %2073 = vmatprep.subr.mxu0 0.0
      %2074 = vmatpush1.msra.mxu0 0.0
      %2075 = vmatprep.subr.mxu0 0.0
      %2076 = vmatpush1.msra.mxu0 0.0
      %2077 = vmatprep.subr.mxu0 0.0
      %2078 = vmatpush1.msra.mxu0 0.0
      %2079 = vmatprep.subr.mxu0 0.0
      %2080 = vmatpush1.msra.mxu0 0.0
      %2081 = vmatprep.subr.mxu0 0.0
      %2082 = vmatpush1.msra.mxu0 0.0
      %2083 = vmatprep.subr.mxu0 0.0
      %2084 = vmatpush1.msra.mxu0 0.0
      %2085 = vmatprep.subr.mxu0 0.0
      %2086 = vmatpush1.msra.mxu0 0.0
      %2087 = vmatprep.subr.mxu0 0.0
      %2088 = vmatpush1.msra.mxu0 0.0
      %2089 = vmatprep.subr.mxu0 0.0
      %2090 = vmatpush1.msra.mxu0 0.0
      %2091 = vmatprep.subr.mxu0 0.0
      %2092 = vmatpush1.msra.mxu0 0.0
      %2093 = vmatprep.subr.mxu0 0.0
      %2094 = vmatpush1.msra.mxu0 0.0
      %2095 = vmatprep.subr.mxu0 0.0
      %2096 = vmatpush1.msra.mxu0 0.0
      %2097 = vmatprep.mubr.f32.mxu0 0.0
      %2098 = vmatmul.mubr.f32.gmra.mrb[0].mxu0 %v2024
      %v2099 = vpop.f32.mrb[0].mxu0
      %v2100 = vadd.f32 0.0, %v2099
      %v2101 = vpop.f32.mrb[0].mxu0
      %v2102 = vadd.f32 0.0, %v2101
      %2103 = vdwg.mxu0
      %2104 = vmatprep.subr.mxu0 0.0
      %2105 = vmatpush1.msra.mxu0 %v2031
      %2106 = vmatprep.subr.mxu0 0.0
      %2107 = vmatpush1.msra.mxu0 0.0
      %2108 = vmatprep.subr.mxu0 0.0
      %2109 = vmatpush1.msra.mxu0 0.0
      %2110 = vmatprep.subr.mxu0 0.0
      %2111 = vmatpush1.msra.mxu0 0.0
      %2112 = vmatprep.subr.mxu0 0.0
      %2113 = vmatpush1.msra.mxu0 0.0
      %2114 = vmatprep.subr.mxu0 0.0
      %2115 = vmatpush1.msra.mxu0 0.0
      %2116 = vmatprep.subr.mxu0 0.0
      %2117 = vmatpush1.msra.mxu0 0.0
      %2118 = vmatprep.subr.mxu0 0.0
      %2119 = vmatpush1.msra.mxu0 0.0
      %2120 = vmatprep.subr.mxu0 0.0
      %2121 = vmatpush1.msra.mxu0 0.0
      %2122 = vmatprep.subr.mxu0 0.0
      %2123 = vmatpush1.msra.mxu0 0.0
      %2124 = vmatprep.subr.mxu0 0.0
      %2125 = vmatpush1.msra.mxu0 0.0
      %2126 = vmatprep.subr.mxu0 0.0
      %2127 = vmatpush1.msra.mxu0 0.0
      %2128 = vmatprep.subr.mxu0 0.0
      %2129 = vmatpush1.msra.mxu0 0.0
      %2130 = vmatprep.subr.mxu0 0.0
      %2131 = vmatpush1.msra.mxu0 0.0
      %2132 = vmatprep.subr.mxu0 0.0
      %2133 = vmatpush1.msra.mxu0 0.0
      %2134 = vmatprep.subr.mxu0 0.0
      %2135 = vmatpush1.msra.mxu0 0.0
      %2136 = vmatprep.subr.mxu0 0.0
      %2137 = vmatpush1.msra.mxu0 0.0
      %2138 = vmatprep.subr.mxu0 0.0
      %2139 = vmatpush1.msra.mxu0 0.0
      %2140 = vmatprep.subr.mxu0 0.0
      %2141 = vmatpush1.msra.mxu0 0.0
      %2142 = vmatprep.subr.mxu0 0.0
      %2143 = vmatpush1.msra.mxu0 0.0
      %2144 = vmatprep.subr.mxu0 0.0
      %2145 = vmatpush1.msra.mxu0 0.0
      %2146 = vmatprep.subr.mxu0 0.0
      %2147 = vmatpush1.msra.mxu0 0.0
      %2148 = vmatprep.subr.mxu0 0.0
      %2149 = vmatpush1.msra.mxu0 0.0
      %2150 = vmatprep.subr.mxu0 0.0
      %2151 = vmatpush1.msra.mxu0 0.0
      %2152 = vmatprep.subr.mxu0 0.0
      %2153 = vmatpush1.msra.mxu0 0.0
      %2154 = vmatprep.subr.mxu0 0.0
      %2155 = vmatpush1.msra.mxu0 0.0
      %2156 = vmatprep.subr.mxu0 0.0
      %2157 = vmatpush1.msra.mxu0 0.0
      %2158 = vmatprep.subr.mxu0 0.0
      %2159 = vmatpush1.msra.mxu0 0.0
      %2160 = vmatprep.subr.mxu0 0.0
      %2161 = vmatpush1.msra.mxu0 0.0
      %2162 = vmatprep.subr.mxu0 0.0
      %2163 = vmatpush1.msra.mxu0 0.0
      %2164 = vmatprep.subr.mxu0 0.0
      %2165 = vmatpush1.msra.mxu0 0.0
      %2166 = vmatprep.subr.mxu0 0.0
      %2167 = vmatpush1.msra.mxu0 0.0
      %2168 = vmatprep.mubr.f32.mxu0 0.0
      %2169 = vmatmul.mubr.f32.gmra.mrb[0].mxu0 %v2024
      %v2170 = vpop.f32.mrb[0].mxu0
      %v2171 = vadd.f32 0.0, %v2170
      %v2172 = vpop.f32.mrb[0].mxu0
      %2173 = vdwg.mxu0
      %v2175 = vsel %vm2022, %v2006, 0
      %v2177 = vsel %vm2026, %v2007, 0
      %v2179 = vsel %vm2026, %v2013, 0
      %v2181 = vsel %vm2026, %v2008, 0
      %2183 = vmatprep.subr.mxu0 %v2179
      %2184 = vmatpush1.msra.mxu0 %v2177
      %2185 = vmatprep.subr.mxu0 0.0
      %2186 = vmatpush1.msra.mxu0 0.0
      %2187 = vmatprep.subr.mxu0 0.0
      %2188 = vmatpush1.msra.mxu0 0.0
      %2189 = vmatprep.subr.mxu0 0.0
      %2190 = vmatpush1.msra.mxu0 0.0
      %2191 = vmatprep.subr.mxu0 0.0
      %2192 = vmatpush1.msra.mxu0 0.0
      %2193 = vmatprep.subr.mxu0 0.0
      %2194 = vmatpush1.msra.mxu0 0.0
      %2195 = vmatprep.subr.mxu0 0.0
      %2196 = vmatpush1.msra.mxu0 0.0
      %2197 = vmatprep.subr.mxu0 0.0
      %2198 = vmatpush1.msra.mxu0 0.0
      %2199 = vmatprep.subr.mxu0 0.0
      %2200 = vmatpush1.msra.mxu0 0.0
      %2201 = vmatprep.subr.mxu0 0.0
      %2202 = vmatpush1.msra.mxu0 0.0
      %2203 = vmatprep.subr.mxu0 0.0
      %2204 = vmatpush1.msra.mxu0 0.0
      %2205 = vmatprep.subr.mxu0 0.0
      %2206 = vmatpush1.msra.mxu0 0.0
      %2207 = vmatprep.subr.mxu0 0.0
      %2208 = vmatpush1.msra.mxu0 0.0
      %2209 = vmatprep.subr.mxu0 0.0
      %2210 = vmatpush1.msra.mxu0 0.0
      %2211 = vmatprep.subr.mxu0 0.0
      %2212 = vmatpush1.msra.mxu0 0.0
      %2213 = vmatprep.subr.mxu0 0.0
      %2214 = vmatpush1.msra.mxu0 0.0
      %2215 = vmatprep.subr.mxu0 0.0
      %2216 = vmatpush1.msra.mxu0 0.0
      %2217 = vmatprep.subr.mxu0 0.0
      %2218 = vmatpush1.msra.mxu0 0.0
      %2219 = vmatprep.subr.mxu0 0.0
      %2220 = vmatpush1.msra.mxu0 0.0
      %2221 = vmatprep.subr.mxu0 0.0
      %2222 = vmatpush1.msra.mxu0 0.0
      %2223 = vmatprep.subr.mxu0 0.0
      %2224 = vmatpush1.msra.mxu0 0.0
      %2225 = vmatprep.subr.mxu0 0.0
      %2226 = vmatpush1.msra.mxu0 0.0
      %2227 = vmatprep.subr.mxu0 0.0
      %2228 = vmatpush1.msra.mxu0 0.0
      %2229 = vmatprep.subr.mxu0 0.0
      %2230 = vmatpush1.msra.mxu0 0.0
      %2231 = vmatprep.subr.mxu0 0.0
      %2232 = vmatpush1.msra.mxu0 0.0
      %2233 = vmatprep.subr.mxu0 0.0
      %2234 = vmatpush1.msra.mxu0 0.0
      %2235 = vmatprep.subr.mxu0 0.0
      %2236 = vmatpush1.msra.mxu0 0.0
      %2237 = vmatprep.subr.mxu0 0.0
      %2238 = vmatpush1.msra.mxu0 0.0
      %2239 = vmatprep.subr.mxu0 0.0
      %2240 = vmatpush1.msra.mxu0 0.0
      %2241 = vmatprep.subr.mxu0 0.0
      %2242 = vmatpush1.msra.mxu0 0.0
      %2243 = vmatprep.subr.mxu0 0.0
      %2244 = vmatpush1.msra.mxu0 0.0
      %2245 = vmatprep.subr.mxu0 0.0
      %2246 = vmatpush1.msra.mxu0 0.0
      %2247 = vmatprep.mubr.f32.mxu0 0.0
      %2248 = vmatmul.mubr.f32.gmra.mrb[0].mxu0 %v2175
      %v2249 = vpop.f32.mrb[0].mxu0
      %v2250 = vadd.f32 %v2100, %v2249
      %v2251 = vpop.f32.mrb[0].mxu0
      %v2252 = vadd.f32 %v2102, %v2251
      %2253 = vdwg.mxu0
      %2254 = vmatprep.subr.mxu0 0.0
      %2255 = vmatpush1.msra.mxu0 %v2181
      %2256 = vmatprep.subr.mxu0 0.0
      %2257 = vmatpush1.msra.mxu0 0.0
      %2258 = vmatprep.subr.mxu0 0.0
      %2259 = vmatpush1.msra.mxu0 0.0
      %2260 = vmatprep.subr.mxu0 0.0
      %2261 = vmatpush1.msra.mxu0 0.0
      %2262 = vmatprep.subr.mxu0 0.0
      %2263 = vmatpush1.msra.mxu0 0.0
      %2264 = vmatprep.subr.mxu0 0.0
      %2265 = vmatpush1.msra.mxu0 0.0
      %2266 = vmatprep.subr.mxu0 0.0
      %2267 = vmatpush1.msra.mxu0 0.0
      %2268 = vmatprep.subr.mxu0 0.0
      %2269 = vmatpush1.msra.mxu0 0.0
      %2270 = vmatprep.subr.mxu0 0.0
      %2271 = vmatpush1.msra.mxu0 0.0
      %2272 = vmatprep.subr.mxu0 0.0
      %2273 = vmatpush1.msra.mxu0 0.0
      %2274 = vmatprep.subr.mxu0 0.0
      %2275 = vmatpush1.msra.mxu0 0.0
      %2276 = vmatprep.subr.mxu0 0.0
      %2277 = vmatpush1.msra.mxu0 0.0
      %2278 = vmatprep.subr.mxu0 0.0
      %2279 = vmatpush1.msra.mxu0 0.0
      %2280 = vmatprep.subr.mxu0 0.0
      %2281 = vmatpush1.msra.mxu0 0.0
      %2282 = vmatprep.subr.mxu0 0.0
      %2283 = vmatpush1.msra.mxu0 0.0
      %2284 = vmatprep.subr.mxu0 0.0
      %2285 = vmatpush1.msra.mxu0 0.0
      %2286 = vmatprep.subr.mxu0 0.0
      %2287 = vmatpush1.msra.mxu0 0.0
      %2288 = vmatprep.subr.mxu0 0.0
      %2289 = vmatpush1.msra.mxu0 0.0
      %2290 = vmatprep.subr.mxu0 0.0
      %2291 = vmatpush1.msra.mxu0 0.0
      %2292 = vmatprep.subr.mxu0 0.0
      %2293 = vmatpush1.msra.mxu0 0.0
      %2294 = vmatprep.subr.mxu0 0.0
      %2295 = vmatpush1.msra.mxu0 0.0
      %2296 = vmatprep.subr.mxu0 0.0
      %2297 = vmatpush1.msra.mxu0 0.0
      %2298 = vmatprep.subr.mxu0 0.0
      %2299 = vmatpush1.msra.mxu0 0.0
      %2300 = vmatprep.subr.mxu0 0.0
      %2301 = vmatpush1.msra.mxu0 0.0
      %2302 = vmatprep.subr.mxu0 0.0
      %2303 = vmatpush1.msra.mxu0 0.0
      %2304 = vmatprep.subr.mxu0 0.0
      %2305 = vmatpush1.msra.mxu0 0.0
      %2306 = vmatprep.subr.mxu0 0.0
      %2307 = vmatpush1.msra.mxu0 0.0
      %2308 = vmatprep.subr.mxu0 0.0
      %2309 = vmatpush1.msra.mxu0 0.0
      %2310 = vmatprep.subr.mxu0 0.0
      %2311 = vmatpush1.msra.mxu0 0.0
      %2312 = vmatprep.subr.mxu0 0.0
      %2313 = vmatpush1.msra.mxu0 0.0
      %2314 = vmatprep.subr.mxu0 0.0
      %2315 = vmatpush1.msra.mxu0 0.0
      %2316 = vmatprep.subr.mxu0 0.0
      %2317 = vmatpush1.msra.mxu0 0.0
      %2318 = vmatprep.mubr.f32.mxu0 0.0
      %2319 = vmatmul.mubr.f32.gmra.mrb[0].mxu0 %v2175
      %v2320 = vpop.f32.mrb[0].mxu0
      %v2321 = vadd.f32 %v2171, %v2320
      %v2322 = vpop.f32.mrb[0].mxu0
      %2323 = vdwg.mxu0
      %s2324 = scalar_lea.vmem %s5, 8
      %v2325 = vld [vmem:[%s2324] sm:$0xf]
      %v2326 = vld [vmem:[#allocation3] sm:$0xff]
      %v2327 = vld [vmem:[#allocation3 + $0x8] sm:$0xf]
      %v2330 = vcombine.high %v2326, %v2326
      %2331 = vrot.lane.b32.xlu0 %v2326, 126
      %v2332 = vpop.permute.xlu0 %2331
      %2333 = vrot.lane.b32.xlu0 %v2330, 126
      %v2334 = vpop.permute.xlu0 %2333
      %2335 = vrot.lane.b32.xlu0 %v2327, 126
      %v2336 = vpop.permute.xlu0 %2335
      %v2337 = vsel %vm833, %v2332, %v2334
      %v2338 = vsel %vm833, %v2334, %v2336
      %v2340 = vsel %vm2022, %v2325, 0
      %v2342 = vsel %vm2026, %v2337, 0
      %v2344 = vsel %vm2026, %v2338, 0
      %v2346 = vsel %vm2026, %v2336, 0
      %2348 = vmatprep.subr.mxu0 %v2344
      %2349 = vmatpush1.msra.mxu0 %v2342
      %2350 = vmatprep.subr.mxu0 0.0
      %2351 = vmatpush1.msra.mxu0 0.0
      %2352 = vmatprep.subr.mxu0 0.0
      %2353 = vmatpush1.msra.mxu0 0.0
      %2354 = vmatprep.subr.mxu0 0.0
      %2355 = vmatpush1.msra.mxu0 0.0
      %2356 = vmatprep.subr.mxu0 0.0
      %2357 = vmatpush1.msra.mxu0 0.0
      %2358 = vmatprep.subr.mxu0 0.0
      %2359 = vmatpush1.msra.mxu0 0.0
      %2360 = vmatprep.subr.mxu0 0.0
      %2361 = vmatpush1.msra.mxu0 0.0
      %2362 = vmatprep.subr.mxu0 0.0
      %2363 = vmatpush1.msra.mxu0 0.0
      %2364 = vmatprep.subr.mxu0 0.0
      %2365 = vmatpush1.msra.mxu0 0.0
      %2366 = vmatprep.subr.mxu0 0.0
      %2367 = vmatpush1.msra.mxu0 0.0
      %2368 = vmatprep.subr.mxu0 0.0
      %2369 = vmatpush1.msra.mxu0 0.0
      %2370 = vmatprep.subr.mxu0 0.0
      %2371 = vmatpush1.msra.mxu0 0.0
      %2372 = vmatprep.subr.mxu0 0.0
      %2373 = vmatpush1.msra.mxu0 0.0
      %2374 = vmatprep.subr.mxu0 0.0
      %2375 = vmatpush1.msra.mxu0 0.0
      %2376 = vmatprep.subr.mxu0 0.0
      %2377 = vmatpush1.msra.mxu0 0.0
      %2378 = vmatprep.subr.mxu0 0.0
      %2379 = vmatpush1.msra.mxu0 0.0
      %2380 = vmatprep.subr.mxu0 0.0
      %2381 = vmatpush1.msra.mxu0 0.0
      %2382 = vmatprep.subr.mxu0 0.0
      %2383 = vmatpush1.msra.mxu0 0.0
      %2384 = vmatprep.subr.mxu0 0.0
      %2385 = vmatpush1.msra.mxu0 0.0
      %2386 = vmatprep.subr.mxu0 0.0
      %2387 = vmatpush1.msra.mxu0 0.0
      %2388 = vmatprep.subr.mxu0 0.0
      %2389 = vmatpush1.msra.mxu0 0.0
      %2390 = vmatprep.subr.mxu0 0.0
      %2391 = vmatpush1.msra.mxu0 0.0
      %2392 = vmatprep.subr.mxu0 0.0
      %2393 = vmatpush1.msra.mxu0 0.0
      %2394 = vmatprep.subr.mxu0 0.0
      %2395 = vmatpush1.msra.mxu0 0.0
      %2396 = vmatprep.subr.mxu0 0.0
      %2397 = vmatpush1.msra.mxu0 0.0
      %2398 = vmatprep.subr.mxu0 0.0
      %2399 = vmatpush1.msra.mxu0 0.0
      %2400 = vmatprep.subr.mxu0 0.0
      %2401 = vmatpush1.msra.mxu0 0.0
      %2402 = vmatprep.subr.mxu0 0.0
      %2403 = vmatpush1.msra.mxu0 0.0
      %2404 = vmatprep.subr.mxu0 0.0
      %2405 = vmatpush1.msra.mxu0 0.0
      %2406 = vmatprep.subr.mxu0 0.0
      %2407 = vmatpush1.msra.mxu0 0.0
      %2408 = vmatprep.subr.mxu0 0.0
      %2409 = vmatpush1.msra.mxu0 0.0
      %2410 = vmatprep.subr.mxu0 0.0
      %2411 = vmatpush1.msra.mxu0 0.0
      %2412 = vmatprep.mubr.f32.mxu0 0.0
      %2413 = vmatmul.mubr.f32.gmra.mrb[0].mxu0 %v2340
      %v2414 = vpop.f32.mrb[0].mxu0
      %v2415 = vadd.f32 0.0, %v2414
      %v2416 = vpop.f32.mrb[0].mxu0
      %v2417 = vadd.f32 0.0, %v2416
      %2418 = vdwg.mxu0
      %2419 = vmatprep.subr.mxu0 0.0
      %2420 = vmatpush1.msra.mxu0 %v2346
      %2421 = vmatprep.subr.mxu0 0.0
      %2422 = vmatpush1.msra.mxu0 0.0
      %2423 = vmatprep.subr.mxu0 0.0
      %2424 = vmatpush1.msra.mxu0 0.0
      %2425 = vmatprep.subr.mxu0 0.0
      %2426 = vmatpush1.msra.mxu0 0.0
      %2427 = vmatprep.subr.mxu0 0.0
      %2428 = vmatpush1.msra.mxu0 0.0
      %2429 = vmatprep.subr.mxu0 0.0
      %2430 = vmatpush1.msra.mxu0 0.0
      %2431 = vmatprep.subr.mxu0 0.0
      %2432 = vmatpush1.msra.mxu0 0.0
      %2433 = vmatprep.subr.mxu0 0.0
      %2434 = vmatpush1.msra.mxu0 0.0
      %2435 = vmatprep.subr.mxu0 0.0
      %2436 = vmatpush1.msra.mxu0 0.0
      %2437 = vmatprep.subr.mxu0 0.0
      %2438 = vmatpush1.msra.mxu0 0.0
      %2439 = vmatprep.subr.mxu0 0.0
      %2440 = vmatpush1.msra.mxu0 0.0
      %2441 = vmatprep.subr.mxu0 0.0
      %2442 = vmatpush1.msra.mxu0 0.0
      %2443 = vmatprep.subr.mxu0 0.0
      %2444 = vmatpush1.msra.mxu0 0.0
      %2445 = vmatprep.subr.mxu0 0.0
      %2446 = vmatpush1.msra.mxu0 0.0
      %2447 = vmatprep.subr.mxu0 0.0
      %2448 = vmatpush1.msra.mxu0 0.0
      %2449 = vmatprep.subr.mxu0 0.0
      %2450 = vmatpush1.msra.mxu0 0.0
      %2451 = vmatprep.subr.mxu0 0.0
      %2452 = vmatpush1.msra.mxu0 0.0
      %2453 = vmatprep.subr.mxu0 0.0
      %2454 = vmatpush1.msra.mxu0 0.0
      %2455 = vmatprep.subr.mxu0 0.0
      %2456 = vmatpush1.msra.mxu0 0.0
      %2457 = vmatprep.subr.mxu0 0.0
      %2458 = vmatpush1.msra.mxu0 0.0
      %2459 = vmatprep.subr.mxu0 0.0
      %2460 = vmatpush1.msra.mxu0 0.0
      %2461 = vmatprep.subr.mxu0 0.0
      %2462 = vmatpush1.msra.mxu0 0.0
      %2463 = vmatprep.subr.mxu0 0.0
      %2464 = vmatpush1.msra.mxu0 0.0
      %2465 = vmatprep.subr.mxu0 0.0
      %2466 = vmatpush1.msra.mxu0 0.0
      %2467 = vmatprep.subr.mxu0 0.0
      %2468 = vmatpush1.msra.mxu0 0.0
      %2469 = vmatprep.subr.mxu0 0.0
      %2470 = vmatpush1.msra.mxu0 0.0
      %2471 = vmatprep.subr.mxu0 0.0
      %2472 = vmatpush1.msra.mxu0 0.0
      %2473 = vmatprep.subr.mxu0 0.0
      %2474 = vmatpush1.msra.mxu0 0.0
      %2475 = vmatprep.subr.mxu0 0.0
      %2476 = vmatpush1.msra.mxu0 0.0
      %2477 = vmatprep.subr.mxu0 0.0
      %2478 = vmatpush1.msra.mxu0 0.0
      %2479 = vmatprep.subr.mxu0 0.0
      %2480 = vmatpush1.msra.mxu0 0.0
      %2481 = vmatprep.subr.mxu0 0.0
      %2482 = vmatpush1.msra.mxu0 0.0
      %2483 = vmatprep.mubr.f32.mxu0 0.0
      %2484 = vmatmul.mubr.f32.gmra.mrb[0].mxu0 %v2340
      %v2485 = vpop.f32.mrb[0].mxu0
      %v2486 = vadd.f32 0.0, %v2485
      %v2487 = vpop.f32.mrb[0].mxu0
      %2488 = vdwg.mxu0
      %v2489 = vadd.f32 %v2250, %v2415
      %v2490 = vadd.f32 %v2252, %v2417
      %v2491 = vadd.f32 %v2321, %v2486
      %s2492 = scalar_lea.vmem %s5, 12
      %v2493 = vld [vmem:[%s2492] sm:$0xf]
      %v2494 = vld [vmem:[#allocation3] sm:$0xff]
      %v2495 = vld [vmem:[#allocation3 + $0x8] sm:$0xf]
      %v2498 = vcombine.high %v2494, %v2494
      %2499 = vrot.lane.b32.xlu0 %v2494, 110
      %v2500 = vpop.permute.xlu0 %2499
      %2501 = vrot.lane.b32.xlu0 %v2498, 110
      %v2502 = vpop.permute.xlu0 %2501
      %2503 = vrot.lane.b32.xlu0 %v2495, 110
      %v2504 = vpop.permute.xlu0 %2503
      %v2505 = vsel %vm994, %v2500, %v2502
      %v2506 = vsel %vm994, %v2502, %v2504
      %v2508 = vsel %vm2022, %v2493, 0
      %v2510 = vsel %vm2026, %v2505, 0
      %v2512 = vsel %vm2026, %v2506, 0
      %v2514 = vsel %vm2026, %v2504, 0
      %2516 = vmatprep.subr.mxu0 %v2512
      %2517 = vmatpush1.msra.mxu0 %v2510
      %2518 = vmatprep.subr.mxu0 0.0
      %2519 = vmatpush1.msra.mxu0 0.0
      %2520 = vmatprep.subr.mxu0 0.0
      %2521 = vmatpush1.msra.mxu0 0.0
      %2522 = vmatprep.subr.mxu0 0.0
      %2523 = vmatpush1.msra.mxu0 0.0
      %2524 = vmatprep.subr.mxu0 0.0
      %2525 = vmatpush1.msra.mxu0 0.0
      %2526 = vmatprep.subr.mxu0 0.0
      %2527 = vmatpush1.msra.mxu0 0.0
      %2528 = vmatprep.subr.mxu0 0.0
      %2529 = vmatpush1.msra.mxu0 0.0
      %2530 = vmatprep.subr.mxu0 0.0
      %2531 = vmatpush1.msra.mxu0 0.0
      %2532 = vmatprep.subr.mxu0 0.0
      %2533 = vmatpush1.msra.mxu0 0.0
      %2534 = vmatprep.subr.mxu0 0.0
      %2535 = vmatpush1.msra.mxu0 0.0
      %2536 = vmatprep.subr.mxu0 0.0
      %2537 = vmatpush1.msra.mxu0 0.0
      %2538 = vmatprep.subr.mxu0 0.0
      %2539 = vmatpush1.msra.mxu0 0.0
      %2540 = vmatprep.subr.mxu0 0.0
      %2541 = vmatpush1.msra.mxu0 0.0
      %2542 = vmatprep.subr.mxu0 0.0
      %2543 = vmatpush1.msra.mxu0 0.0
      %2544 = vmatprep.subr.mxu0 0.0
      %2545 = vmatpush1.msra.mxu0 0.0
      %2546 = vmatprep.subr.mxu0 0.0
      %2547 = vmatpush1.msra.mxu0 0.0
      %2548 = vmatprep.subr.mxu0 0.0
      %2549 = vmatpush1.msra.mxu0 0.0
      %2550 = vmatprep.subr.mxu0 0.0
      %2551 = vmatpush1.msra.mxu0 0.0
      %2552 = vmatprep.subr.mxu0 0.0
      %2553 = vmatpush1.msra.mxu0 0.0
      %2554 = vmatprep.subr.mxu0 0.0
      %2555 = vmatpush1.msra.mxu0 0.0
      %2556 = vmatprep.subr.mxu0 0.0
      %2557 = vmatpush1.msra.mxu0 0.0
      %2558 = vmatprep.subr.mxu0 0.0
      %2559 = vmatpush1.msra.mxu0 0.0
      %2560 = vmatprep.subr.mxu0 0.0
      %2561 = vmatpush1.msra.mxu0 0.0
      %2562 = vmatprep.subr.mxu0 0.0
      %2563 = vmatpush1.msra.mxu0 0.0
      %2564 = vmatprep.subr.mxu0 0.0
      %2565 = vmatpush1.msra.mxu0 0.0
      %2566 = vmatprep.subr.mxu0 0.0
      %2567 = vmatpush1.msra.mxu0 0.0
      %2568 = vmatprep.subr.mxu0 0.0
      %2569 = vmatpush1.msra.mxu0 0.0
      %2570 = vmatprep.subr.mxu0 0.0
      %2571 = vmatpush1.msra.mxu0 0.0
      %2572 = vmatprep.subr.mxu0 0.0
      %2573 = vmatpush1.msra.mxu0 0.0
      %2574 = vmatprep.subr.mxu0 0.0
      %2575 = vmatpush1.msra.mxu0 0.0
      %2576 = vmatprep.subr.mxu0 0.0
      %2577 = vmatpush1.msra.mxu0 0.0
      %2578 = vmatprep.subr.mxu0 0.0
      %2579 = vmatpush1.msra.mxu0 0.0
      %2580 = vmatprep.mubr.f32.mxu0 0.0
      %2581 = vmatmul.mubr.f32.gmra.mrb[0].mxu0 %v2508
      %v2582 = vpop.f32.mrb[0].mxu0
      %v2583 = vadd.f32 0.0, %v2582
      %v2584 = vpop.f32.mrb[0].mxu0
      %v2585 = vadd.f32 0.0, %v2584
      %2586 = vdwg.mxu0
      %2587 = vmatprep.subr.mxu0 0.0
      %2588 = vmatpush1.msra.mxu0 %v2514
      %2589 = vmatprep.subr.mxu0 0.0
      %2590 = vmatpush1.msra.mxu0 0.0
      %2591 = vmatprep.subr.mxu0 0.0
      %2592 = vmatpush1.msra.mxu0 0.0
      %2593 = vmatprep.subr.mxu0 0.0
      %2594 = vmatpush1.msra.mxu0 0.0
      %2595 = vmatprep.subr.mxu0 0.0
      %2596 = vmatpush1.msra.mxu0 0.0
      %2597 = vmatprep.subr.mxu0 0.0
      %2598 = vmatpush1.msra.mxu0 0.0
      %2599 = vmatprep.subr.mxu0 0.0
      %2600 = vmatpush1.msra.mxu0 0.0
      %2601 = vmatprep.subr.mxu0 0.0
      %2602 = vmatpush1.msra.mxu0 0.0
      %2603 = vmatprep.subr.mxu0 0.0
      %2604 = vmatpush1.msra.mxu0 0.0
      %2605 = vmatprep.subr.mxu0 0.0
      %2606 = vmatpush1.msra.mxu0 0.0
      %2607 = vmatprep.subr.mxu0 0.0
      %2608 = vmatpush1.msra.mxu0 0.0
      %2609 = vmatprep.subr.mxu0 0.0
      %2610 = vmatpush1.msra.mxu0 0.0
      %2611 = vmatprep.subr.mxu0 0.0
      %2612 = vmatpush1.msra.mxu0 0.0
      %2613 = vmatprep.subr.mxu0 0.0
      %2614 = vmatpush1.msra.mxu0 0.0
      %2615 = vmatprep.subr.mxu0 0.0
      %2616 = vmatpush1.msra.mxu0 0.0
      %2617 = vmatprep.subr.mxu0 0.0
      %2618 = vmatpush1.msra.mxu0 0.0
      %2619 = vmatprep.subr.mxu0 0.0
      %2620 = vmatpush1.msra.mxu0 0.0
      %2621 = vmatprep.subr.mxu0 0.0
      %2622 = vmatpush1.msra.mxu0 0.0
      %2623 = vmatprep.subr.mxu0 0.0
      %2624 = vmatpush1.msra.mxu0 0.0
      %2625 = vmatprep.subr.mxu0 0.0
      %2626 = vmatpush1.msra.mxu0 0.0
      %2627 = vmatprep.subr.mxu0 0.0
      %2628 = vmatpush1.msra.mxu0 0.0
      %2629 = vmatprep.subr.mxu0 0.0
      %2630 = vmatpush1.msra.mxu0 0.0
      %2631 = vmatprep.subr.mxu0 0.0
      %2632 = vmatpush1.msra.mxu0 0.0
      %2633 = vmatprep.subr.mxu0 0.0
      %2634 = vmatpush1.msra.mxu0 0.0
      %2635 = vmatprep.subr.mxu0 0.0
      %2636 = vmatpush1.msra.mxu0 0.0
      %2637 = vmatprep.subr.mxu0 0.0
      %2638 = vmatpush1.msra.mxu0 0.0
      %2639 = vmatprep.subr.mxu0 0.0
      %2640 = vmatpush1.msra.mxu0 0.0
      %2641 = vmatprep.subr.mxu0 0.0
      %2642 = vmatpush1.msra.mxu0 0.0
      %2643 = vmatprep.subr.mxu0 0.0
      %2644 = vmatpush1.msra.mxu0 0.0
      %2645 = vmatprep.subr.mxu0 0.0
      %2646 = vmatpush1.msra.mxu0 0.0
      %2647 = vmatprep.subr.mxu0 0.0
      %2648 = vmatpush1.msra.mxu0 0.0
      %2649 = vmatprep.subr.mxu0 0.0
      %2650 = vmatpush1.msra.mxu0 0.0
      %2651 = vmatprep.mubr.f32.mxu0 0.0
      %2652 = vmatmul.mubr.f32.gmra.mrb[0].mxu0 %v2508
      %v2653 = vpop.f32.mrb[0].mxu0
      %v2654 = vadd.f32 0.0, %v2653
      %v2655 = vpop.f32.mrb[0].mxu0
      %2656 = vdwg.mxu0
      %v2657 = vadd.f32 %v2489, %v2583
      %v2658 = vadd.f32 %v2490, %v2585
      %v2659 = vadd.f32 %v2491, %v2654
      %s2660 = scalar_lea.vmem %s5, 16
      %v2661 = vld [vmem:[%s2660] sm:$0xf]
      %v2662 = vld [vmem:[#allocation3] sm:$0xff]
      %v2663 = vld [vmem:[#allocation3 + $0x8] sm:$0xf]
      %v2666 = vcombine.high %v2662, %v2662
      %2667 = vrot.lane.b32.xlu0 %v2662, 109
      %v2668 = vpop.permute.xlu0 %2667
      %2669 = vrot.lane.b32.xlu0 %v2666, 109
      %v2670 = vpop.permute.xlu0 %2669
      %2671 = vrot.lane.b32.xlu0 %v2663, 109
      %v2672 = vpop.permute.xlu0 %2671
      %v2673 = vsel %vm1155, %v2668, %v2670
      %v2674 = vsel %vm1155, %v2670, %v2672
      %v2676 = vsel %vm2022, %v2661, 0
      %v2678 = vsel %vm2026, %v2673, 0
      %v2680 = vsel %vm2026, %v2674, 0
      %v2682 = vsel %vm2026, %v2672, 0
      %2684 = vmatprep.subr.mxu0 %v2680
      %2685 = vmatpush1.msra.mxu0 %v2678
      %2686 = vmatprep.subr.mxu0 0.0
      %2687 = vmatpush1.msra.mxu0 0.0
      %2688 = vmatprep.subr.mxu0 0.0
      %2689 = vmatpush1.msra.mxu0 0.0
      %2690 = vmatprep.subr.mxu0 0.0
      %2691 = vmatpush1.msra.mxu0 0.0
      %2692 = vmatprep.subr.mxu0 0.0
      %2693 = vmatpush1.msra.mxu0 0.0
      %2694 = vmatprep.subr.mxu0 0.0
      %2695 = vmatpush1.msra.mxu0 0.0
      %2696 = vmatprep.subr.mxu0 0.0
      %2697 = vmatpush1.msra.mxu0 0.0
      %2698 = vmatprep.subr.mxu0 0.0
      %2699 = vmatpush1.msra.mxu0 0.0
      %2700 = vmatprep.subr.mxu0 0.0
      %2701 = vmatpush1.msra.mxu0 0.0
      %2702 = vmatprep.subr.mxu0 0.0
      %2703 = vmatpush1.msra.mxu0 0.0
      %2704 = vmatprep.subr.mxu0 0.0
      %2705 = vmatpush1.msra.mxu0 0.0
      %2706 = vmatprep.subr.mxu0 0.0
      %2707 = vmatpush1.msra.mxu0 0.0
      %2708 = vmatprep.subr.mxu0 0.0
      %2709 = vmatpush1.msra.mxu0 0.0
      %2710 = vmatprep.subr.mxu0 0.0
      %2711 = vmatpush1.msra.mxu0 0.0
      %2712 = vmatprep.subr.mxu0 0.0
      %2713 = vmatpush1.msra.mxu0 0.0
      %2714 = vmatprep.subr.mxu0 0.0
      %2715 = vmatpush1.msra.mxu0 0.0
      %2716 = vmatprep.subr.mxu0 0.0
      %2717 = vmatpush1.msra.mxu0 0.0
      %2718 = vmatprep.subr.mxu0 0.0
      %2719 = vmatpush1.msra.mxu0 0.0
      %2720 = vmatprep.subr.mxu0 0.0
      %2721 = vmatpush1.msra.mxu0 0.0
      %2722 = vmatprep.subr.mxu0 0.0
      %2723 = vmatpush1.msra.mxu0 0.0
      %2724 = vmatprep.subr.mxu0 0.0
      %2725 = vmatpush1.msra.mxu0 0.0
      %2726 = vmatprep.subr.mxu0 0.0
      %2727 = vmatpush1.msra.mxu0 0.0
      %2728 = vmatprep.subr.mxu0 0.0
      %2729 = vmatpush1.msra.mxu0 0.0
      %2730 = vmatprep.subr.mxu0 0.0
      %2731 = vmatpush1.msra.mxu0 0.0
      %2732 = vmatprep.subr.mxu0 0.0
      %2733 = vmatpush1.msra.mxu0 0.0
      %2734 = vmatprep.subr.mxu0 0.0
      %2735 = vmatpush1.msra.mxu0 0.0
      %2736 = vmatprep.subr.mxu0 0.0
      %2737 = vmatpush1.msra.mxu0 0.0
      %2738 = vmatprep.subr.mxu0 0.0
      %2739 = vmatpush1.msra.mxu0 0.0
      %2740 = vmatprep.subr.mxu0 0.0
      %2741 = vmatpush1.msra.mxu0 0.0
      %2742 = vmatprep.subr.mxu0 0.0
      %2743 = vmatpush1.msra.mxu0 0.0
      %2744 = vmatprep.subr.mxu0 0.0
      %2745 = vmatpush1.msra.mxu0 0.0
      %2746 = vmatprep.subr.mxu0 0.0
      %2747 = vmatpush1.msra.mxu0 0.0
      %2748 = vmatprep.mubr.f32.mxu0 0.0
      %2749 = vmatmul.mubr.f32.gmra.mrb[0].mxu0 %v2676
      %v2750 = vpop.f32.mrb[0].mxu0
      %v2751 = vadd.f32 0.0, %v2750
      %v2752 = vpop.f32.mrb[0].mxu0
      %v2753 = vadd.f32 0.0, %v2752
      %2754 = vdwg.mxu0
      %2755 = vmatprep.subr.mxu0 0.0
      %2756 = vmatpush1.msra.mxu0 %v2682
      %2757 = vmatprep.subr.mxu0 0.0
      %2758 = vmatpush1.msra.mxu0 0.0
      %2759 = vmatprep.subr.mxu0 0.0
      %2760 = vmatpush1.msra.mxu0 0.0
      %2761 = vmatprep.subr.mxu0 0.0
      %2762 = vmatpush1.msra.mxu0 0.0
      %2763 = vmatprep.subr.mxu0 0.0
      %2764 = vmatpush1.msra.mxu0 0.0
      %2765 = vmatprep.subr.mxu0 0.0
      %2766 = vmatpush1.msra.mxu0 0.0
      %2767 = vmatprep.subr.mxu0 0.0
      %2768 = vmatpush1.msra.mxu0 0.0
      %2769 = vmatprep.subr.mxu0 0.0
      %2770 = vmatpush1.msra.mxu0 0.0
      %2771 = vmatprep.subr.mxu0 0.0
      %2772 = vmatpush1.msra.mxu0 0.0
      %2773 = vmatprep.subr.mxu0 0.0
      %2774 = vmatpush1.msra.mxu0 0.0
      %2775 = vmatprep.subr.mxu0 0.0
      %2776 = vmatpush1.msra.mxu0 0.0
      %2777 = vmatprep.subr.mxu0 0.0
      %2778 = vmatpush1.msra.mxu0 0.0
      %2779 = vmatprep.subr.mxu0 0.0
      %2780 = vmatpush1.msra.mxu0 0.0
      %2781 = vmatprep.subr.mxu0 0.0
      %2782 = vmatpush1.msra.mxu0 0.0
      %2783 = vmatprep.subr.mxu0 0.0
      %2784 = vmatpush1.msra.mxu0 0.0
      %2785 = vmatprep.subr.mxu0 0.0
      %2786 = vmatpush1.msra.mxu0 0.0
      %2787 = vmatprep.subr.mxu0 0.0
      %2788 = vmatpush1.msra.mxu0 0.0
      %2789 = vmatprep.subr.mxu0 0.0
      %2790 = vmatpush1.msra.mxu0 0.0
      %2791 = vmatprep.subr.mxu0 0.0
      %2792 = vmatpush1.msra.mxu0 0.0
      %2793 = vmatprep.subr.mxu0 0.0
      %2794 = vmatpush1.msra.mxu0 0.0
      %2795 = vmatprep.subr.mxu0 0.0
      %2796 = vmatpush1.msra.mxu0 0.0
      %2797 = vmatprep.subr.mxu0 0.0
      %2798 = vmatpush1.msra.mxu0 0.0
      %2799 = vmatprep.subr.mxu0 0.0
      %2800 = vmatpush1.msra.mxu0 0.0
      %2801 = vmatprep.subr.mxu0 0.0
      %2802 = vmatpush1.msra.mxu0 0.0
      %2803 = vmatprep.subr.mxu0 0.0
      %2804 = vmatpush1.msra.mxu0 0.0
      %2805 = vmatprep.subr.mxu0 0.0
      %2806 = vmatpush1.msra.mxu0 0.0
      %2807 = vmatprep.subr.mxu0 0.0
      %2808 = vmatpush1.msra.mxu0 0.0
      %2809 = vmatprep.subr.mxu0 0.0
      %2810 = vmatpush1.msra.mxu0 0.0
      %2811 = vmatprep.subr.mxu0 0.0
      %2812 = vmatpush1.msra.mxu0 0.0
      %2813 = vmatprep.subr.mxu0 0.0
      %2814 = vmatpush1.msra.mxu0 0.0
      %2815 = vmatprep.subr.mxu0 0.0
      %2816 = vmatpush1.msra.mxu0 0.0
      %2817 = vmatprep.subr.mxu0 0.0
      %2818 = vmatpush1.msra.mxu0 0.0
      %2819 = vmatprep.mubr.f32.mxu0 0.0
      %2820 = vmatmul.mubr.f32.gmra.mrb[0].mxu0 %v2676
      %v2821 = vpop.f32.mrb[0].mxu0
      %v2822 = vadd.f32 0.0, %v2821
      %v2823 = vpop.f32.mrb[0].mxu0
      %2824 = vdwg.mxu0
      %v2825 = vadd.f32 %v2657, %v2751
      %v2826 = vadd.f32 %v2658, %v2753
      %v2827 = vadd.f32 %v2659, %v2822
      %s2828 = scalar_lea.vmem %s5, 20
      %v2829 = vld [vmem:[%s2828] sm:$0xf]
      %v2830 = vld [vmem:[#allocation3] sm:$0xff]
      %v2831 = vld [vmem:[#allocation3 + $0x8] sm:$0xf]
      %v2834 = vcombine.high %v2830, %v2830
      %2835 = vrot.lane.b32.xlu0 %v2830, 108
      %v2836 = vpop.permute.xlu0 %2835
      %2837 = vrot.lane.b32.xlu0 %v2834, 108
      %v2838 = vpop.permute.xlu0 %2837
      %2839 = vrot.lane.b32.xlu0 %v2831, 108
      %v2840 = vpop.permute.xlu0 %2839
      %v2841 = vsel %vm1316, %v2836, %v2838
      %v2842 = vsel %vm1316, %v2838, %v2840
      %v2844 = vsel %vm2022, %v2829, 0
      %v2846 = vsel %vm2026, %v2841, 0
      %v2848 = vsel %vm2026, %v2842, 0
      %v2850 = vsel %vm2026, %v2840, 0
      %2852 = vmatprep.subr.mxu0 %v2848
      %2853 = vmatpush1.msra.mxu0 %v2846
      %2854 = vmatprep.subr.mxu0 0.0
      %2855 = vmatpush1.msra.mxu0 0.0
      %2856 = vmatprep.subr.mxu0 0.0
      %2857 = vmatpush1.msra.mxu0 0.0
      %2858 = vmatprep.subr.mxu0 0.0
      %2859 = vmatpush1.msra.mxu0 0.0
      %2860 = vmatprep.subr.mxu0 0.0
      %2861 = vmatpush1.msra.mxu0 0.0
      %2862 = vmatprep.subr.mxu0 0.0
      %2863 = vmatpush1.msra.mxu0 0.0
      %2864 = vmatprep.subr.mxu0 0.0
      %2865 = vmatpush1.msra.mxu0 0.0
      %2866 = vmatprep.subr.mxu0 0.0
      %2867 = vmatpush1.msra.mxu0 0.0
      %2868 = vmatprep.subr.mxu0 0.0
      %2869 = vmatpush1.msra.mxu0 0.0
      %2870 = vmatprep.subr.mxu0 0.0
      %2871 = vmatpush1.msra.mxu0 0.0
      %2872 = vmatprep.subr.mxu0 0.0
      %2873 = vmatpush1.msra.mxu0 0.0
      %2874 = vmatprep.subr.mxu0 0.0
      %2875 = vmatpush1.msra.mxu0 0.0
      %2876 = vmatprep.subr.mxu0 0.0
      %2877 = vmatpush1.msra.mxu0 0.0
      %2878 = vmatprep.subr.mxu0 0.0
      %2879 = vmatpush1.msra.mxu0 0.0
      %2880 = vmatprep.subr.mxu0 0.0
      %2881 = vmatpush1.msra.mxu0 0.0
      %2882 = vmatprep.subr.mxu0 0.0
      %2883 = vmatpush1.msra.mxu0 0.0
      %2884 = vmatprep.subr.mxu0 0.0
      %2885 = vmatpush1.msra.mxu0 0.0
      %2886 = vmatprep.subr.mxu0 0.0
      %2887 = vmatpush1.msra.mxu0 0.0
      %2888 = vmatprep.subr.mxu0 0.0
      %2889 = vmatpush1.msra.mxu0 0.0
      %2890 = vmatprep.subr.mxu0 0.0
      %2891 = vmatpush1.msra.mxu0 0.0
      %2892 = vmatprep.subr.mxu0 0.0
      %2893 = vmatpush1.msra.mxu0 0.0
      %2894 = vmatprep.subr.mxu0 0.0
      %2895 = vmatpush1.msra.mxu0 0.0
      %2896 = vmatprep.subr.mxu0 0.0
      %2897 = vmatpush1.msra.mxu0 0.0
      %2898 = vmatprep.subr.mxu0 0.0
      %2899 = vmatpush1.msra.mxu0 0.0
      %2900 = vmatprep.subr.mxu0 0.0
      %2901 = vmatpush1.msra.mxu0 0.0
      %2902 = vmatprep.subr.mxu0 0.0
      %2903 = vmatpush1.msra.mxu0 0.0
      %2904 = vmatprep.subr.mxu0 0.0
      %2905 = vmatpush1.msra.mxu0 0.0
      %2906 = vmatprep.subr.mxu0 0.0
      %2907 = vmatpush1.msra.mxu0 0.0
      %2908 = vmatprep.subr.mxu0 0.0
      %2909 = vmatpush1.msra.mxu0 0.0
      %2910 = vmatprep.subr.mxu0 0.0
      %2911 = vmatpush1.msra.mxu0 0.0
      %2912 = vmatprep.subr.mxu0 0.0
      %2913 = vmatpush1.msra.mxu0 0.0
      %2914 = vmatprep.subr.mxu0 0.0
      %2915 = vmatpush1.msra.mxu0 0.0
      %2916 = vmatprep.mubr.f32.mxu0 0.0
      %2917 = vmatmul.mubr.f32.gmra.mrb[0].mxu0 %v2844
      %v2918 = vpop.f32.mrb[0].mxu0
      %v2919 = vadd.f32 0.0, %v2918
      %v2920 = vpop.f32.mrb[0].mxu0
      %v2921 = vadd.f32 0.0, %v2920
      %2922 = vdwg.mxu0
      %2923 = vmatprep.subr.mxu0 0.0
      %2924 = vmatpush1.msra.mxu0 %v2850
      %2925 = vmatprep.subr.mxu0 0.0
      %2926 = vmatpush1.msra.mxu0 0.0
      %2927 = vmatprep.subr.mxu0 0.0
      %2928 = vmatpush1.msra.mxu0 0.0
      %2929 = vmatprep.subr.mxu0 0.0
      %2930 = vmatpush1.msra.mxu0 0.0
      %2931 = vmatprep.subr.mxu0 0.0
      %2932 = vmatpush1.msra.mxu0 0.0
      %2933 = vmatprep.subr.mxu0 0.0
      %2934 = vmatpush1.msra.mxu0 0.0
      %2935 = vmatprep.subr.mxu0 0.0
      %2936 = vmatpush1.msra.mxu0 0.0
      %2937 = vmatprep.subr.mxu0 0.0
      %2938 = vmatpush1.msra.mxu0 0.0
      %2939 = vmatprep.subr.mxu0 0.0
      %2940 = vmatpush1.msra.mxu0 0.0
      %2941 = vmatprep.subr.mxu0 0.0
      %2942 = vmatpush1.msra.mxu0 0.0
      %2943 = vmatprep.subr.mxu0 0.0
      %2944 = vmatpush1.msra.mxu0 0.0
      %2945 = vmatprep.subr.mxu0 0.0
      %2946 = vmatpush1.msra.mxu0 0.0
      %2947 = vmatprep.subr.mxu0 0.0
      %2948 = vmatpush1.msra.mxu0 0.0
      %2949 = vmatprep.subr.mxu0 0.0
      %2950 = vmatpush1.msra.mxu0 0.0
      %2951 = vmatprep.subr.mxu0 0.0
      %2952 = vmatpush1.msra.mxu0 0.0
      %2953 = vmatprep.subr.mxu0 0.0
      %2954 = vmatpush1.msra.mxu0 0.0
      %2955 = vmatprep.subr.mxu0 0.0
      %2956 = vmatpush1.msra.mxu0 0.0
      %2957 = vmatprep.subr.mxu0 0.0
      %2958 = vmatpush1.msra.mxu0 0.0
      %2959 = vmatprep.subr.mxu0 0.0
      %2960 = vmatpush1.msra.mxu0 0.0
      %2961 = vmatprep.subr.mxu0 0.0
      %2962 = vmatpush1.msra.mxu0 0.0
      %2963 = vmatprep.subr.mxu0 0.0
      %2964 = vmatpush1.msra.mxu0 0.0
      %2965 = vmatprep.subr.mxu0 0.0
      %2966 = vmatpush1.msra.mxu0 0.0
      %2967 = vmatprep.subr.mxu0 0.0
      %2968 = vmatpush1.msra.mxu0 0.0
      %2969 = vmatprep.subr.mxu0 0.0
      %2970 = vmatpush1.msra.mxu0 0.0
      %2971 = vmatprep.subr.mxu0 0.0
      %2972 = vmatpush1.msra.mxu0 0.0
      %2973 = vmatprep.subr.mxu0 0.0
      %2974 = vmatpush1.msra.mxu0 0.0
      %2975 = vmatprep.subr.mxu0 0.0
      %2976 = vmatpush1.msra.mxu0 0.0
      %2977 = vmatprep.subr.mxu0 0.0
      %2978 = vmatpush1.msra.mxu0 0.0
      %2979 = vmatprep.subr.mxu0 0.0
      %2980 = vmatpush1.msra.mxu0 0.0
      %2981 = vmatprep.subr.mxu0 0.0
      %2982 = vmatpush1.msra.mxu0 0.0
      %2983 = vmatprep.subr.mxu0 0.0
      %2984 = vmatpush1.msra.mxu0 0.0
      %2985 = vmatprep.subr.mxu0 0.0
      %2986 = vmatpush1.msra.mxu0 0.0
      %2987 = vmatprep.mubr.f32.mxu0 0.0
      %2988 = vmatmul.mubr.f32.gmra.mrb[0].mxu0 %v2844
      %v2989 = vpop.f32.mrb[0].mxu0
      %v2990 = vadd.f32 0.0, %v2989
      %v2991 = vpop.f32.mrb[0].mxu0
      %2992 = vdwg.mxu0
      %v2993 = vadd.f32 %v2825, %v2919
      %v2994 = vadd.f32 %v2826, %v2921
      %v2995 = vadd.f32 %v2827, %v2990
      %s2996 = scalar_lea.vmem %s5, 24
      %v2997 = vld [vmem:[%s2996] sm:$0xf]
      %v2998 = vld [vmem:[#allocation3] sm:$0xff]
      %v2999 = vld [vmem:[#allocation3 + $0x8] sm:$0xf]
      %v3002 = vcombine.high %v2998, %v2998
      %3003 = vrot.lane.b32.xlu0 %v2998, 92
      %v3004 = vpop.permute.xlu0 %3003
      %3005 = vrot.lane.b32.xlu0 %v3002, 92
      %v3006 = vpop.permute.xlu0 %3005
      %3007 = vrot.lane.b32.xlu0 %v2999, 92
      %v3008 = vpop.permute.xlu0 %3007
      %v3009 = vsel %vm1477, %v3004, %v3006
      %v3010 = vsel %vm1477, %v3006, %v3008
      %v3012 = vsel %vm2022, %v2997, 0
      %v3014 = vsel %vm2026, %v3009, 0
      %v3016 = vsel %vm2026, %v3010, 0
      %v3018 = vsel %vm2026, %v3008, 0
      %3020 = vmatprep.subr.mxu0 %v3016
      %3021 = vmatpush1.msra.mxu0 %v3014
      %3022 = vmatprep.subr.mxu0 0.0
      %3023 = vmatpush1.msra.mxu0 0.0
      %3024 = vmatprep.subr.mxu0 0.0
      %3025 = vmatpush1.msra.mxu0 0.0
      %3026 = vmatprep.subr.mxu0 0.0
      %3027 = vmatpush1.msra.mxu0 0.0
      %3028 = vmatprep.subr.mxu0 0.0
      %3029 = vmatpush1.msra.mxu0 0.0
      %3030 = vmatprep.subr.mxu0 0.0
      %3031 = vmatpush1.msra.mxu0 0.0
      %3032 = vmatprep.subr.mxu0 0.0
      %3033 = vmatpush1.msra.mxu0 0.0
      %3034 = vmatprep.subr.mxu0 0.0
      %3035 = vmatpush1.msra.mxu0 0.0
      %3036 = vmatprep.subr.mxu0 0.0
      %3037 = vmatpush1.msra.mxu0 0.0
      %3038 = vmatprep.subr.mxu0 0.0
      %3039 = vmatpush1.msra.mxu0 0.0
      %3040 = vmatprep.subr.mxu0 0.0
      %3041 = vmatpush1.msra.mxu0 0.0
      %3042 = vmatprep.subr.mxu0 0.0
      %3043 = vmatpush1.msra.mxu0 0.0
      %3044 = vmatprep.subr.mxu0 0.0
      %3045 = vmatpush1.msra.mxu0 0.0
      %3046 = vmatprep.subr.mxu0 0.0
      %3047 = vmatpush1.msra.mxu0 0.0
      %3048 = vmatprep.subr.mxu0 0.0
      %3049 = vmatpush1.msra.mxu0 0.0
      %3050 = vmatprep.subr.mxu0 0.0
      %3051 = vmatpush1.msra.mxu0 0.0
      %3052 = vmatprep.subr.mxu0 0.0
      %3053 = vmatpush1.msra.mxu0 0.0
      %3054 = vmatprep.subr.mxu0 0.0
      %3055 = vmatpush1.msra.mxu0 0.0
      %3056 = vmatprep.subr.mxu0 0.0
      %3057 = vmatpush1.msra.mxu0 0.0
      %3058 = vmatprep.subr.mxu0 0.0
      %3059 = vmatpush1.msra.mxu0 0.0
      %3060 = vmatprep.subr.mxu0 0.0
      %3061 = vmatpush1.msra.mxu0 0.0
      %3062 = vmatprep.subr.mxu0 0.0
      %3063 = vmatpush1.msra.mxu0 0.0
      %3064 = vmatprep.subr.mxu0 0.0
      %3065 = vmatpush1.msra.mxu0 0.0
      %3066 = vmatprep.subr.mxu0 0.0
      %3067 = vmatpush1.msra.mxu0 0.0
      %3068 = vmatprep.subr.mxu0 0.0
      %3069 = vmatpush1.msra.mxu0 0.0
      %3070 = vmatprep.subr.mxu0 0.0
      %3071 = vmatpush1.msra.mxu0 0.0
      %3072 = vmatprep.subr.mxu0 0.0
      %3073 = vmatpush1.msra.mxu0 0.0
      %3074 = vmatprep.subr.mxu0 0.0
      %3075 = vmatpush1.msra.mxu0 0.0
      %3076 = vmatprep.subr.mxu0 0.0
      %3077 = vmatpush1.msra.mxu0 0.0
      %3078 = vmatprep.subr.mxu0 0.0
      %3079 = vmatpush1.msra.mxu0 0.0
      %3080 = vmatprep.subr.mxu0 0.0
      %3081 = vmatpush1.msra.mxu0 0.0
      %3082 = vmatprep.subr.mxu0 0.0
      %3083 = vmatpush1.msra.mxu0 0.0
      %3084 = vmatprep.mubr.f32.mxu0 0.0
      %3085 = vmatmul.mubr.f32.gmra.mrb[0].mxu0 %v3012
      %v3086 = vpop.f32.mrb[0].mxu0
      %v3087 = vadd.f32 0.0, %v3086
      %v3088 = vpop.f32.mrb[0].mxu0
      %v3089 = vadd.f32 0.0, %v3088
      %3090 = vdwg.mxu0
      %3091 = vmatprep.subr.mxu0 0.0
      %3092 = vmatpush1.msra.mxu0 %v3018
      %3093 = vmatprep.subr.mxu0 0.0
      %3094 = vmatpush1.msra.mxu0 0.0
      %3095 = vmatprep.subr.mxu0 0.0
      %3096 = vmatpush1.msra.mxu0 0.0
      %3097 = vmatprep.subr.mxu0 0.0
      %3098 = vmatpush1.msra.mxu0 0.0
      %3099 = vmatprep.subr.mxu0 0.0
      %3100 = vmatpush1.msra.mxu0 0.0
      %3101 = vmatprep.subr.mxu0 0.0
      %3102 = vmatpush1.msra.mxu0 0.0
      %3103 = vmatprep.subr.mxu0 0.0
      %3104 = vmatpush1.msra.mxu0 0.0
      %3105 = vmatprep.subr.mxu0 0.0
      %3106 = vmatpush1.msra.mxu0 0.0
      %3107 = vmatprep.subr.mxu0 0.0
      %3108 = vmatpush1.msra.mxu0 0.0
      %3109 = vmatprep.subr.mxu0 0.0
      %3110 = vmatpush1.msra.mxu0 0.0
      %3111 = vmatprep.subr.mxu0 0.0
      %3112 = vmatpush1.msra.mxu0 0.0
      %3113 = vmatprep.subr.mxu0 0.0
      %3114 = vmatpush1.msra.mxu0 0.0
      %3115 = vmatprep.subr.mxu0 0.0
      %3116 = vmatpush1.msra.mxu0 0.0
      %3117 = vmatprep.subr.mxu0 0.0
      %3118 = vmatpush1.msra.mxu0 0.0
      %3119 = vmatprep.subr.mxu0 0.0
      %3120 = vmatpush1.msra.mxu0 0.0
      %3121 = vmatprep.subr.mxu0 0.0
      %3122 = vmatpush1.msra.mxu0 0.0
      %3123 = vmatprep.subr.mxu0 0.0
      %3124 = vmatpush1.msra.mxu0 0.0
      %3125 = vmatprep.subr.mxu0 0.0
      %3126 = vmatpush1.msra.mxu0 0.0
      %3127 = vmatprep.subr.mxu0 0.0
      %3128 = vmatpush1.msra.mxu0 0.0
      %3129 = vmatprep.subr.mxu0 0.0
      %3130 = vmatpush1.msra.mxu0 0.0
      %3131 = vmatprep.subr.mxu0 0.0
      %3132 = vmatpush1.msra.mxu0 0.0
      %3133 = vmatprep.subr.mxu0 0.0
      %3134 = vmatpush1.msra.mxu0 0.0
      %3135 = vmatprep.subr.mxu0 0.0
      %3136 = vmatpush1.msra.mxu0 0.0
      %3137 = vmatprep.subr.mxu0 0.0
      %3138 = vmatpush1.msra.mxu0 0.0
      %3139 = vmatprep.subr.mxu0 0.0
      %3140 = vmatpush1.msra.mxu0 0.0
      %3141 = vmatprep.subr.mxu0 0.0
      %3142 = vmatpush1.msra.mxu0 0.0
      %3143 = vmatprep.subr.mxu0 0.0
      %3144 = vmatpush1.msra.mxu0 0.0
      %3145 = vmatprep.subr.mxu0 0.0
      %3146 = vmatpush1.msra.mxu0 0.0
      %3147 = vmatprep.subr.mxu0 0.0
      %3148 = vmatpush1.msra.mxu0 0.0
      %3149 = vmatprep.subr.mxu0 0.0
      %3150 = vmatpush1.msra.mxu0 0.0
      %3151 = vmatprep.subr.mxu0 0.0
      %3152 = vmatpush1.msra.mxu0 0.0
      %3153 = vmatprep.subr.mxu0 0.0
      %3154 = vmatpush1.msra.mxu0 0.0
      %3155 = vmatprep.mubr.f32.mxu0 0.0
      %3156 = vmatmul.mubr.f32.gmra.mrb[0].mxu0 %v3012
      %v3157 = vpop.f32.mrb[0].mxu0
      %v3158 = vadd.f32 0.0, %v3157
      %v3159 = vpop.f32.mrb[0].mxu0
      %3160 = vdwg.mxu0
      %v3161 = vadd.f32 %v2993, %v3087
      %v3162 = vadd.f32 %v2994, %v3089
      %v3163 = vadd.f32 %v2995, %v3158
      %s3164 = scalar_lea.vmem %s5, 28
      %v3165 = vld [vmem:[%s3164] sm:$0xf]
      %v3166 = vld [vmem:[#allocation3] sm:$0xff]
      %v3167 = vld [vmem:[#allocation3 + $0x8] sm:$0xf]
      %v3170 = vcombine.high %v3166, %v3166
      %3171 = vrot.lane.b32.xlu0 %v3166, 91
      %v3172 = vpop.permute.xlu0 %3171
      %3173 = vrot.lane.b32.xlu0 %v3170, 91
      %v3174 = vpop.permute.xlu0 %3173
      %3175 = vrot.lane.b32.xlu0 %v3167, 91
      %v3176 = vpop.permute.xlu0 %3175
      %v3177 = vsel %vm1638, %v3172, %v3174
      %v3178 = vsel %vm1638, %v3174, %v3176
      %v3180 = vsel %vm2022, %v3165, 0
      %v3182 = vsel %vm2026, %v3177, 0
      %v3184 = vsel %vm2026, %v3178, 0
      %v3186 = vsel %vm2026, %v3176, 0
      %3188 = vmatprep.subr.mxu0 %v3184
      %3189 = vmatpush1.msra.mxu0 %v3182
      %3190 = vmatprep.subr.mxu0 0.0
      %3191 = vmatpush1.msra.mxu0 0.0
      %3192 = vmatprep.subr.mxu0 0.0
      %3193 = vmatpush1.msra.mxu0 0.0
      %3194 = vmatprep.subr.mxu0 0.0
      %3195 = vmatpush1.msra.mxu0 0.0
      %3196 = vmatprep.subr.mxu0 0.0
      %3197 = vmatpush1.msra.mxu0 0.0
      %3198 = vmatprep.subr.mxu0 0.0
      %3199 = vmatpush1.msra.mxu0 0.0
      %3200 = vmatprep.subr.mxu0 0.0
      %3201 = vmatpush1.msra.mxu0 0.0
      %3202 = vmatprep.subr.mxu0 0.0
      %3203 = vmatpush1.msra.mxu0 0.0
      %3204 = vmatprep.subr.mxu0 0.0
      %3205 = vmatpush1.msra.mxu0 0.0
      %3206 = vmatprep.subr.mxu0 0.0
      %3207 = vmatpush1.msra.mxu0 0.0
      %3208 = vmatprep.subr.mxu0 0.0
      %3209 = vmatpush1.msra.mxu0 0.0
      %3210 = vmatprep.subr.mxu0 0.0
      %3211 = vmatpush1.msra.mxu0 0.0
      %3212 = vmatprep.subr.mxu0 0.0
      %3213 = vmatpush1.msra.mxu0 0.0
      %3214 = vmatprep.subr.mxu0 0.0
      %3215 = vmatpush1.msra.mxu0 0.0
      %3216 = vmatprep.subr.mxu0 0.0
      %3217 = vmatpush1.msra.mxu0 0.0
      %3218 = vmatprep.subr.mxu0 0.0
      %3219 = vmatpush1.msra.mxu0 0.0
      %3220 = vmatprep.subr.mxu0 0.0
      %3221 = vmatpush1.msra.mxu0 0.0
      %3222 = vmatprep.subr.mxu0 0.0
      %3223 = vmatpush1.msra.mxu0 0.0
      %3224 = vmatprep.subr.mxu0 0.0
      %3225 = vmatpush1.msra.mxu0 0.0
      %3226 = vmatprep.subr.mxu0 0.0
      %3227 = vmatpush1.msra.mxu0 0.0
      %3228 = vmatprep.subr.mxu0 0.0
      %3229 = vmatpush1.msra.mxu0 0.0
      %3230 = vmatprep.subr.mxu0 0.0
      %3231 = vmatpush1.msra.mxu0 0.0
      %3232 = vmatprep.subr.mxu0 0.0
      %3233 = vmatpush1.msra.mxu0 0.0
      %3234 = vmatprep.subr.mxu0 0.0
      %3235 = vmatpush1.msra.mxu0 0.0
      %3236 = vmatprep.subr.mxu0 0.0
      %3237 = vmatpush1.msra.mxu0 0.0
      %3238 = vmatprep.subr.mxu0 0.0
      %3239 = vmatpush1.msra.mxu0 0.0
      %3240 = vmatprep.subr.mxu0 0.0
      %3241 = vmatpush1.msra.mxu0 0.0
      %3242 = vmatprep.subr.mxu0 0.0
      %3243 = vmatpush1.msra.mxu0 0.0
      %3244 = vmatprep.subr.mxu0 0.0
      %3245 = vmatpush1.msra.mxu0 0.0
      %3246 = vmatprep.subr.mxu0 0.0
      %3247 = vmatpush1.msra.mxu0 0.0
      %3248 = vmatprep.subr.mxu0 0.0
      %3249 = vmatpush1.msra.mxu0 0.0
      %3250 = vmatprep.subr.mxu0 0.0
      %3251 = vmatpush1.msra.mxu0 0.0
      %3252 = vmatprep.mubr.f32.mxu0 0.0
      %3253 = vmatmul.mubr.f32.gmra.mrb[0].mxu0 %v3180
      %v3254 = vpop.f32.mrb[0].mxu0
      %v3255 = vadd.f32 0.0, %v3254
      %v3256 = vpop.f32.mrb[0].mxu0
      %v3257 = vadd.f32 0.0, %v3256
      %3258 = vdwg.mxu0
      %3259 = vmatprep.subr.mxu0 0.0
      %3260 = vmatpush1.msra.mxu0 %v3186
      %3261 = vmatprep.subr.mxu0 0.0
      %3262 = vmatpush1.msra.mxu0 0.0
      %3263 = vmatprep.subr.mxu0 0.0
      %3264 = vmatpush1.msra.mxu0 0.0
      %3265 = vmatprep.subr.mxu0 0.0
      %3266 = vmatpush1.msra.mxu0 0.0
      %3267 = vmatprep.subr.mxu0 0.0
      %3268 = vmatpush1.msra.mxu0 0.0
      %3269 = vmatprep.subr.mxu0 0.0
      %3270 = vmatpush1.msra.mxu0 0.0
      %3271 = vmatprep.subr.mxu0 0.0
      %3272 = vmatpush1.msra.mxu0 0.0
      %3273 = vmatprep.subr.mxu0 0.0
      %3274 = vmatpush1.msra.mxu0 0.0
      %3275 = vmatprep.subr.mxu0 0.0
      %3276 = vmatpush1.msra.mxu0 0.0
      %3277 = vmatprep.subr.mxu0 0.0
      %3278 = vmatpush1.msra.mxu0 0.0
      %3279 = vmatprep.subr.mxu0 0.0
      %3280 = vmatpush1.msra.mxu0 0.0
      %3281 = vmatprep.subr.mxu0 0.0
      %3282 = vmatpush1.msra.mxu0 0.0
      %3283 = vmatprep.subr.mxu0 0.0
      %3284 = vmatpush1.msra.mxu0 0.0
      %3285 = vmatprep.subr.mxu0 0.0
      %3286 = vmatpush1.msra.mxu0 0.0
      %3287 = vmatprep.subr.mxu0 0.0
      %3288 = vmatpush1.msra.mxu0 0.0
      %3289 = vmatprep.subr.mxu0 0.0
      %3290 = vmatpush1.msra.mxu0 0.0
      %3291 = vmatprep.subr.mxu0 0.0
      %3292 = vmatpush1.msra.mxu0 0.0
      %3293 = vmatprep.subr.mxu0 0.0
      %3294 = vmatpush1.msra.mxu0 0.0
      %3295 = vmatprep.subr.mxu0 0.0
      %3296 = vmatpush1.msra.mxu0 0.0
      %3297 = vmatprep.subr.mxu0 0.0
      %3298 = vmatpush1.msra.mxu0 0.0
      %3299 = vmatprep.subr.mxu0 0.0
      %3300 = vmatpush1.msra.mxu0 0.0
      %3301 = vmatprep.subr.mxu0 0.0
      %3302 = vmatpush1.msra.mxu0 0.0
      %3303 = vmatprep.subr.mxu0 0.0
      %3304 = vmatpush1.msra.mxu0 0.0
      %3305 = vmatprep.subr.mxu0 0.0
      %3306 = vmatpush1.msra.mxu0 0.0
      %3307 = vmatprep.subr.mxu0 0.0
      %3308 = vmatpush1.msra.mxu0 0.0
      %3309 = vmatprep.subr.mxu0 0.0
      %3310 = vmatpush1.msra.mxu0 0.0
      %3311 = vmatprep.subr.mxu0 0.0
      %3312 = vmatpush1.msra.mxu0 0.0
      %3313 = vmatprep.subr.mxu0 0.0
      %3314 = vmatpush1.msra.mxu0 0.0
      %3315 = vmatprep.subr.mxu0 0.0
      %3316 = vmatpush1.msra.mxu0 0.0
      %3317 = vmatprep.subr.mxu0 0.0
      %3318 = vmatpush1.msra.mxu0 0.0
      %3319 = vmatprep.subr.mxu0 0.0
      %3320 = vmatpush1.msra.mxu0 0.0
      %3321 = vmatprep.subr.mxu0 0.0
      %3322 = vmatpush1.msra.mxu0 0.0
      %3323 = vmatprep.mubr.f32.mxu0 0.0
      %3324 = vmatmul.mubr.f32.gmra.mrb[0].mxu0 %v3180
      %v3325 = vpop.f32.mrb[0].mxu0
      %v3326 = vadd.f32 0.0, %v3325
      %v3327 = vpop.f32.mrb[0].mxu0
      %3328 = vdwg.mxu0
      %v3329 = vadd.f32 %v3161, %v3255
      %v3330 = vadd.f32 %v3162, %v3257
      %v3331 = vadd.f32 %v3163, %v3326
      %s3332 = scalar_lea.vmem %s5, 32
      %v3333 = vld [vmem:[%s3332] sm:$0xf]
      %v3334 = vld [vmem:[#allocation3] sm:$0xff]
      %v3335 = vld [vmem:[#allocation3 + $0x8] sm:$0xf]
      %v3338 = vcombine.high %v3334, %v3334
      %3339 = vrot.lane.b32.xlu0 %v3334, 90
      %v3340 = vpop.permute.xlu0 %3339
      %3341 = vrot.lane.b32.xlu0 %v3338, 90
      %v3342 = vpop.permute.xlu0 %3341
      %3343 = vrot.lane.b32.xlu0 %v3335, 90
      %v3344 = vpop.permute.xlu0 %3343
      %v3345 = vsel %vm1799, %v3340, %v3342
      %v3346 = vsel %vm1799, %v3342, %v3344
      %v3348 = vsel %vm2022, %v3333, 0
      %v3350 = vsel %vm2026, %v3345, 0
      %v3352 = vsel %vm2026, %v3346, 0
      %v3354 = vsel %vm2026, %v3344, 0
      %3356 = vmatprep.subr.mxu0 %v3352
      %3357 = vmatpush1.msra.mxu0 %v3350
      %3358 = vmatprep.subr.mxu0 0.0
      %3359 = vmatpush1.msra.mxu0 0.0
      %3360 = vmatprep.subr.mxu0 0.0
      %3361 = vmatpush1.msra.mxu0 0.0
      %3362 = vmatprep.subr.mxu0 0.0
      %3363 = vmatpush1.msra.mxu0 0.0
      %3364 = vmatprep.subr.mxu0 0.0
      %3365 = vmatpush1.msra.mxu0 0.0
      %3366 = vmatprep.subr.mxu0 0.0
      %3367 = vmatpush1.msra.mxu0 0.0
      %3368 = vmatprep.subr.mxu0 0.0
      %3369 = vmatpush1.msra.mxu0 0.0
      %3370 = vmatprep.subr.mxu0 0.0
      %3371 = vmatpush1.msra.mxu0 0.0
      %3372 = vmatprep.subr.mxu0 0.0
      %3373 = vmatpush1.msra.mxu0 0.0
      %3374 = vmatprep.subr.mxu0 0.0
      %3375 = vmatpush1.msra.mxu0 0.0
      %3376 = vmatprep.subr.mxu0 0.0
      %3377 = vmatpush1.msra.mxu0 0.0
      %3378 = vmatprep.subr.mxu0 0.0
      %3379 = vmatpush1.msra.mxu0 0.0
      %3380 = vmatprep.subr.mxu0 0.0
      %3381 = vmatpush1.msra.mxu0 0.0
      %3382 = vmatprep.subr.mxu0 0.0
      %3383 = vmatpush1.msra.mxu0 0.0
      %3384 = vmatprep.subr.mxu0 0.0
      %3385 = vmatpush1.msra.mxu0 0.0
      %3386 = vmatprep.subr.mxu0 0.0
      %3387 = vmatpush1.msra.mxu0 0.0
      %3388 = vmatprep.subr.mxu0 0.0
      %3389 = vmatpush1.msra.mxu0 0.0
      %3390 = vmatprep.subr.mxu0 0.0
      %3391 = vmatpush1.msra.mxu0 0.0
      %3392 = vmatprep.subr.mxu0 0.0
      %3393 = vmatpush1.msra.mxu0 0.0
      %3394 = vmatprep.subr.mxu0 0.0
      %3395 = vmatpush1.msra.mxu0 0.0
      %3396 = vmatprep.subr.mxu0 0.0
      %3397 = vmatpush1.msra.mxu0 0.0
      %3398 = vmatprep.subr.mxu0 0.0
      %3399 = vmatpush1.msra.mxu0 0.0
      %3400 = vmatprep.subr.mxu0 0.0
      %3401 = vmatpush1.msra.mxu0 0.0
      %3402 = vmatprep.subr.mxu0 0.0
      %3403 = vmatpush1.msra.mxu0 0.0
      %3404 = vmatprep.subr.mxu0 0.0
      %3405 = vmatpush1.msra.mxu0 0.0
      %3406 = vmatprep.subr.mxu0 0.0
      %3407 = vmatpush1.msra.mxu0 0.0
      %3408 = vmatprep.subr.mxu0 0.0
      %3409 = vmatpush1.msra.mxu0 0.0
      %3410 = vmatprep.subr.mxu0 0.0
      %3411 = vmatpush1.msra.mxu0 0.0
      %3412 = vmatprep.subr.mxu0 0.0
      %3413 = vmatpush1.msra.mxu0 0.0
      %3414 = vmatprep.subr.mxu0 0.0
      %3415 = vmatpush1.msra.mxu0 0.0
      %3416 = vmatprep.subr.mxu0 0.0
      %3417 = vmatpush1.msra.mxu0 0.0
      %3418 = vmatprep.subr.mxu0 0.0
      %3419 = vmatpush1.msra.mxu0 0.0
      %3420 = vmatprep.mubr.f32.mxu0 0.0
      %3421 = vmatmul.mubr.f32.gmra.mrb[0].mxu0 %v3348
      %v3422 = vpop.f32.mrb[0].mxu0
      %v3423 = vadd.f32 0.0, %v3422
      %v3424 = vpop.f32.mrb[0].mxu0
      %v3425 = vadd.f32 0.0, %v3424
      %3426 = vdwg.mxu0
      %3427 = vmatprep.subr.mxu0 0.0
      %3428 = vmatpush1.msra.mxu0 %v3354
      %3429 = vmatprep.subr.mxu0 0.0
      %3430 = vmatpush1.msra.mxu0 0.0
      %3431 = vmatprep.subr.mxu0 0.0
      %3432 = vmatpush1.msra.mxu0 0.0
      %3433 = vmatprep.subr.mxu0 0.0
      %3434 = vmatpush1.msra.mxu0 0.0
      %3435 = vmatprep.subr.mxu0 0.0
      %3436 = vmatpush1.msra.mxu0 0.0
      %3437 = vmatprep.subr.mxu0 0.0
      %3438 = vmatpush1.msra.mxu0 0.0
      %3439 = vmatprep.subr.mxu0 0.0
      %3440 = vmatpush1.msra.mxu0 0.0
      %3441 = vmatprep.subr.mxu0 0.0
      %3442 = vmatpush1.msra.mxu0 0.0
      %3443 = vmatprep.subr.mxu0 0.0
      %3444 = vmatpush1.msra.mxu0 0.0
      %3445 = vmatprep.subr.mxu0 0.0
      %3446 = vmatpush1.msra.mxu0 0.0
      %3447 = vmatprep.subr.mxu0 0.0
      %3448 = vmatpush1.msra.mxu0 0.0
      %3449 = vmatprep.subr.mxu0 0.0
      %3450 = vmatpush1.msra.mxu0 0.0
      %3451 = vmatprep.subr.mxu0 0.0
      %3452 = vmatpush1.msra.mxu0 0.0
      %3453 = vmatprep.subr.mxu0 0.0
      %3454 = vmatpush1.msra.mxu0 0.0
      %3455 = vmatprep.subr.mxu0 0.0
      %3456 = vmatpush1.msra.mxu0 0.0
      %3457 = vmatprep.subr.mxu0 0.0
      %3458 = vmatpush1.msra.mxu0 0.0
      %3459 = vmatprep.subr.mxu0 0.0
      %3460 = vmatpush1.msra.mxu0 0.0
      %3461 = vmatprep.subr.mxu0 0.0
      %3462 = vmatpush1.msra.mxu0 0.0
      %3463 = vmatprep.subr.mxu0 0.0
      %3464 = vmatpush1.msra.mxu0 0.0
      %3465 = vmatprep.subr.mxu0 0.0
      %3466 = vmatpush1.msra.mxu0 0.0
      %3467 = vmatprep.subr.mxu0 0.0
      %3468 = vmatpush1.msra.mxu0 0.0
      %3469 = vmatprep.subr.mxu0 0.0
      %3470 = vmatpush1.msra.mxu0 0.0
      %3471 = vmatprep.subr.mxu0 0.0
      %3472 = vmatpush1.msra.mxu0 0.0
      %3473 = vmatprep.subr.mxu0 0.0
      %3474 = vmatpush1.msra.mxu0 0.0
      %3475 = vmatprep.subr.mxu0 0.0
      %3476 = vmatpush1.msra.mxu0 0.0
      %3477 = vmatprep.subr.mxu0 0.0
      %3478 = vmatpush1.msra.mxu0 0.0
      %3479 = vmatprep.subr.mxu0 0.0
      %3480 = vmatpush1.msra.mxu0 0.0
      %3481 = vmatprep.subr.mxu0 0.0
      %3482 = vmatpush1.msra.mxu0 0.0
      %3483 = vmatprep.subr.mxu0 0.0
      %3484 = vmatpush1.msra.mxu0 0.0
      %3485 = vmatprep.subr.mxu0 0.0
      %3486 = vmatpush1.msra.mxu0 0.0
      %3487 = vmatprep.subr.mxu0 0.0
      %3488 = vmatpush1.msra.mxu0 0.0
      %3489 = vmatprep.subr.mxu0 0.0
      %3490 = vmatpush1.msra.mxu0 0.0
      %3491 = vmatprep.mubr.f32.mxu0 0.0
      %3492 = vmatmul.mubr.f32.gmra.mrb[0].mxu0 %v3348
      %v3493 = vpop.f32.mrb[0].mxu0
      %v3494 = vadd.f32 0.0, %v3493
      %v3495 = vpop.f32.mrb[0].mxu0
      %3496 = vdwg.mxu0
      %v3497 = vadd.f32 %v3329, %v3423
      %v3498 = vadd.f32 %v3330, %v3425
      %v3499 = vadd.f32 %v3331, %v3494
      %v3500 = vld [vmem:[%s6] sm:$0xf]
      %3502 = vset.pattern.permute.xlu0 0
      %3503 = vperm.xlu0 %3502, %v3500
      %v3504 = vpop.permute.xlu0 %3503
      %v3506 = vadd.f32 %v3497, %v3504
      %v3507 = vadd.f32 %v3498, %v3504
      %v3508 = vadd.f32 %v3499, %v3504
      %v3509 = vmax.f32 %v3506, 0.0
      %v3510 = vmax.f32 %v3507, 0.0
      %v3511 = vmax.f32 %v3508, 0.0
      %v3514 = vcombine.low %v3509, %v3510
      %3516 = vst [vmem:[%s322] sm:$0xff] %v3514
      %vm3517 = vcmask 257024
      %3518 = vst.msk [vmem:[%s322 + $0x8] sm:$0xf] %vm3517, %v3511
      %p3519 = scmp.lt.s32.totalorder %s19, 1
      %s3520 = scalar_select %p3519, %s19, 1
      %s3521 = smul.addr %s3520, 3
      %s3522 = smul.addr %s3521, 4
      %s3523 = scalar_lea.vmem %s8, %s3522
      // Predicated region
      $region53: #{up4_forward.1} parent=51 // pred_check
        %p3524 = pneg %p215
      $region54: #{up4_forward.1} parent=51 // pred_check_branch
        %3526 = sbr.rel (%p3524) target = $region56
      $region55: #{up4_forward.1} parent=51 // pred_region
        _
      $region56: #{up4_forward.1} parent=51 // pred_fallthru
        _
    $region52: #{up4_forward.1} parent=5 // pred_fallthru
      _
    %p3527 = scmp.le.s32.totalorder 2, %s14
    // Predicated region
    $region57: #{up4_forward.1} parent=5 // pred_check
      %p3528 = pneg %p3527
    $region58: #{up4_forward.1} parent=5 // pred_check_branch
      %3530 = sbr.rel (%p3528) target = $region60
    $region59: #{up4_forward.1} parent=5 // pred_region
      %s3531 = ssub.s32 %s14, 2
      // Predicated region
      $region61: #{up4_forward.1} parent=59 // pred_check
        %p3532 = pneg %p221
      $region62: #{up4_forward.1} parent=59 // pred_check_branch
        %3534 = sbr.rel (%p3532) target = $region64
      $region63: #{up4_forward.1} parent=59 // pred_region
        %p3535 = scmp.lt.s32.totalorder %s20, 1
        %s3536 = scalar_select %p3535, %s20, 1
        %s3537 = smul.addr %s3536, 3
        %s3538 = smul.addr %s3537, 4
        %s3539 = scalar_lea.vmem %s8, %s3538
      $region64: #{up4_forward.1} parent=59 // pred_fallthru
        _
    $region60: #{up4_forward.1} parent=5 // pred_fallthru
      _
  $region6: #{up4_forward.1} parent=0 // loop_footer
    %s18 = sadd.s32 1, %s14
  $region7: #{up4_forward.1} parent=0 // loop_footer_branch
    %13 = sbr.rel target = $region3
  $region8: #{up4_forward.1} parent=0 // loop_exit
    _

</llo_original>
